<compile_context>
chip_gen: v7x
topology: tpu7x:2x2x1
jax: 0.10.0
libtpu: 0.0.40
codegen_flags: <defaults>
</compile_context>

<pallas_src>
import jax
import jax.numpy as jnp
from jax.experimental import pallas as pl
from jax.experimental.pallas import tpu as pltpu

KS = 7                      # AttentionGate kernel_size
PAD = (KS - 1) // 2         # padding = 3
BN_EPS = 1e-5

_LANE = 128
_SUBLANE = 8
_BT_VMEM_BUDGET = 8 * 2**20      # per-step live-VMEM target (feedback: 2-8 MiB)


# ---------------------------------------------------------------------------
# VMEM budgeting helpers (static / trace-time only).
# ---------------------------------------------------------------------------
def _rup(v, m):
    return (v + m - 1) // m * m


def _block_vmem_bytes(bt, c, h, w, itemsize):
    # Padded VMEM footprint of one (bt, c, h, w) buffer (lane/sublane rounding).
    return bt * c * _rup(h, _SUBLANE) * _rup(w, _LANE) * itemsize


def _plane_vmem_bytes(bt, c, h, w):
    per = lambda rows, cols: (bt * _rup(rows + 2 * PAD, _SUBLANE)
                              * _rup(cols + 2 * PAD, _LANE) * 4)
    return 2 * per(c, w) + 2 * per(c, h)


def _step_vmem_bytes(bt, c, h, w, itemsize):
    blk = _block_vmem_bytes(bt, c, h, w, itemsize)
    blk_f32 = _block_vmem_bytes(bt, c, h, w, 4)
    # 2 buffers for the input + 2 for each output block, the four conv planes,
    # plus slack for compiler temporaries (reduction inputs / gate broadcasts).
    return 6 * blk + _plane_vmem_bytes(bt, c, h, w) + 2 * blk_f32


def _choose_batch_tile(B, C, H, W, itemsize):
    bt = 1
    for d in range(1, B + 1):
        if B % d:
            continue
        if B >= 2 and d > B // 2:
            # keep >= 2 grid steps so the "parallel" axis can shard across cores
            continue
        if _step_vmem_bytes(d, C, H, W, itemsize) <= _BT_VMEM_BUDGET:
            bt = d
    return bt


# ---------------------------------------------------------------------------
# In-kernel helpers.
# ---------------------------------------------------------------------------
def _write_padded_plane(ref, plane, rows, cols):
    """ref: (Bt, rows+2*PAD, cols+2*PAD) VMEM scratch. Zero PAD border, write plane."""
    bt = ref.shape[0]
    z_tb = jnp.zeros((bt, PAD, cols + 2 * PAD), jnp.float32)
    z_lr = jnp.zeros((bt, rows, PAD), jnp.float32)
    ref[:, 0:PAD, :] = z_tb
    ref[:, PAD + rows:PAD + rows + PAD, :] = z_tb
    ref[:, PAD:PAD + rows, 0:PAD] = z_lr
    ref[:, PAD:PAD + rows, PAD + cols:PAD + cols + PAD] = z_lr
    ref[:, PAD:PAD + rows, PAD:PAD + cols] = plane


def _conv7x7_gate(pmx_ref, pmn_ref, w_ref, b_ref, rows, cols, transpose_taps):
    """7x7 'same' conv (2 in-ch [max, mean] -> 1 out-ch, BN folded) + sigmoid.

    Lane offset (dq) is the outer loop: one shifted slab read per dq; the inner dp
    loop only takes sublane-offset views of that slab.
    If transpose_taps: the plane is stored transposed ((C, H) for the hc branch), so
    the lane offset corresponds to kh and the sublane offset to kw.
    TODO(synk): the 7 lane-offset slab reads could become 1 aligned load + pltpu.roll.
    """
    bt = pmx_ref.shape[0]
    acc = jnp.zeros((bt, rows, cols), jnp.float32)
    for dq in range(KS):                               # lane (column) offset
        slab_mx = pmx_ref[:, :, dq:dq + cols]          # (bt, rows+2*PAD, cols)
        slab_mn = pmn_ref[:, :, dq:dq + cols]
        for dp in range(KS):                           # sublane (row) offset
            kh, kw = (dq, dp) if transpose_taps else (dp, dq)
            wi = kh * KS + kw
            acc = acc + w_ref[wi] * slab_mx[:, dp:dp + rows, :]
            acc = acc + w_ref[KS * KS + wi] * slab_mn[:, dp:dp + rows, :]
    return jax.nn.sigmoid(acc + b_ref[0])


# ---------------------------------------------------------------------------
# Fused Pallas kernel: both branches for one batch tile, x read from HBM once.
# ---------------------------------------------------------------------------
def _triplet_kernel(w1_ref, b1_ref, w2_ref, b2_ref, x_ref,
                    o1_ref, o2_ref, pmx1, pmn1, pmx2, pmn2):
    # w*_ref: (2*KS*KS,) f32 SMEM (BN scale folded); b*_ref: (1,) f32 SMEM.
    # x_ref / o1_ref / o2_ref: (Bt, C, H, W) VMEM blocks (NCHW layout).
    Bt, C, H, W = x_ref.shape
    inv_h = 1.0 / H
    inv_w = 1.0 / W

    # ZPool reductions straight off the VMEM block; no full f32 copy of x kept live.
    # branch cw: ZPool over H -> (Bt, C, W) planes (max, mean)
    _write_padded_plane(pmx1, jnp.max(x_ref[...], axis=2).astype(jnp.float32), C, W)
    _write_padded_plane(pmn1, jnp.sum(x_ref[...], axis=2, dtype=jnp.float32) * inv_h, C, W)
    # branch hc: ZPool over W -> planes stored as (Bt, C, H) (transposed tap indexing)
    _write_padded_plane(pmx2, jnp.max(x_ref[...], axis=3).astype(jnp.float32), C, H)
    _write_padded_plane(pmn2, jnp.sum(x_ref[...], axis=3, dtype=jnp.float32) * inv_w, C, H)

    gate_cw = _conv7x7_gate(pmx1, pmn1, w1_ref, b1_ref, C, W, transpose_taps=False)  # (Bt,C,W)
    gate_hc = _conv7x7_gate(pmx2, pmn2, w2_ref, b2_ref, C, H, transpose_taps=True)   # (Bt,C,H)

    # Final gated multiplies in x's native dtype (bf16 stays bf16 on v6e/v7x).
    dt = x_ref.dtype
    o1_ref[...] = (x_ref[...] * gate_cw.astype(dt)[:, :, None, :]).astype(o1_ref.dtype)
    o2_ref[...] = (x_ref[...] * gate_hc.astype(dt)[:, :, :, None]).astype(o2_ref.dtype)


def _triplet_attention_pallas(x, w_cw, b_cw, w_hc, b_hc, *, bt):
    """x: (B, C, H, W) NCHW. Returns (out1, out2), both NCHW."""
    B, C, H, W = x.shape
    grid = (B // bt,)
    vmem_limit = int(min(100 * 2**20,
                         max(32 * 2**20,
                             1.25 * _step_vmem_bytes(bt, C, H, W, x.dtype.itemsize))))

    block = pl.BlockSpec((bt, C, H, W), lambda b: (b, 0, 0, 0))
    # SMEM weights: whole-array window with a constant (default) index map -> staged
    # into SMEM once, never re-fetched per grid step.
    smem = pl.BlockSpec(memory_space=pltpu.MemorySpace.SMEM)

    return pl.pallas_call(
        _triplet_kernel,
        out_shape=(jax.ShapeDtypeStruct(x.shape, x.dtype),
                   jax.ShapeDtypeStruct(x.shape, x.dtype)),
        grid=grid,
        in_specs=[smem, smem, smem, smem, block],
        out_specs=(block, block),
        scratch_shapes=[
            pltpu.VMEM((bt, C + 2 * PAD, W + 2 * PAD), jnp.float32),   # cw max plane
            pltpu.VMEM((bt, C + 2 * PAD, W + 2 * PAD), jnp.float32),   # cw mean plane
            pltpu.VMEM((bt, C + 2 * PAD, H + 2 * PAD), jnp.float32),   # hc max plane
            pltpu.VMEM((bt, C + 2 * PAD, H + 2 * PAD), jnp.float32),   # hc mean plane
        ],
        compiler_params=pltpu.CompilerParams(
            dimension_semantics=("parallel",),
            vmem_limit_bytes=vmem_limit),
    )(w_cw, b_cw, w_hc, b_hc, x)


# ---------------------------------------------------------------------------
# Parameters (matching the nn.Module shapes) and eval-mode BN folding.
# ---------------------------------------------------------------------------
def init_params(key):
    ks = jax.random.split(key, 6)

    def gate_params(kw, kg, kb):
        return dict(
            w=jax.random.normal(kw, (1, 2, KS, KS), jnp.float32) * 0.1,  # Conv2d(2,1,7)
            gamma=1.0 + 0.1 * jax.random.normal(kg, (1,), jnp.float32),  # BN weight
            beta=0.1 * jax.random.normal(kb, (1,), jnp.float32),         # BN bias
            mean=jnp.zeros((1,), jnp.float32),                           # running_mean
            var=jnp.ones((1,), jnp.float32),                             # running_var
        )

    return dict(cw=gate_params(ks[0], ks[1], ks[2]),
                hc=gate_params(ks[3], ks[4], ks[5]))


def _fold_bn(p):
    # eval-mode BN folded into the (bias-free) conv:  y = conv(x) * s + t
    s = p["gamma"] / jnp.sqrt(p["var"] + BN_EPS)     # (1,)
    t = p["beta"] - p["mean"] * s                    # (1,)
    w_flat = (p["w"][0] * s[0]).reshape(-1)          # (2*KS*KS,) [max taps | mean taps]
    return w_flat, t


# ---------------------------------------------------------------------------
# TripletAttention forward (x is NCHW, like PyTorch). Single fused kernel call.
# ---------------------------------------------------------------------------
@jax.jit
def triplet_attention(x, params):
    cw_w, cw_b = _fold_bn(params["cw"])
    hc_w, hc_b = _fold_bn(params["hc"])
    B, C, H, W = x.shape
    bt = _choose_batch_tile(B, C, H, W, x.dtype.itemsize)
    return _triplet_attention_pallas(x, cw_w, cw_b, hc_w, hc_b, bt=bt)


# ---------------------------------------------------------------------------
# Pure-JAX reference (for correctness checks only).
# ---------------------------------------------------------------------------
def _gate_ref(x_rpq, p):
    mx = jnp.max(x_rpq, axis=1, keepdims=True)
    mn = jnp.mean(x_rpq, axis=1, keepdims=True)
    comp = jnp.concatenate([mx, mn], axis=1)                       # (B,2,P,Q)
    conv = jax.lax.conv_general_dilated(
        comp, p["w"], window_strides=(1, 1),
        padding=[(PAD, PAD), (PAD, PAD)],
        dimension_numbers=("NCHW", "OIHW", "NCHW"))
    s = p["gamma"] / jnp.sqrt(p["var"] + BN_EPS)
    t = p["beta"] - p["mean"] * s
    bn = conv * s[None, :, None, None] + t[None, :, None, None]
    return x_rpq * jax.nn.sigmoid(bn)


def triplet_attention_ref(x, params):
    x1 = jnp.transpose(x, (0, 2, 1, 3))
    out1 = jnp.transpose(_gate_ref(x1, params["cw"]), (0, 2, 1, 3))
    x2 = jnp.transpose(x, (0, 3, 2, 1))
    out2 = jnp.transpose(_gate_ref(x2, params["hc"]), (0, 3, 2, 1))
    return out1, out2


if __name__ == "__main__":
    key = jax.random.PRNGKey(0)
    kp, kx = jax.random.split(key)
    params = init_params(kp)

    # Case 1: small f32 (primary), batch tile Bt=1, grid=(2,)
    x = jax.random.normal(kx, (2, 4, 16, 16), jnp.float32)   # NCHW
    out1, out2 = triplet_attention(x, params)
    jax.block_until_ready((out1, out2))
    r1, r2 = triplet_attention_ref(x, params)
    assert out1.shape == x.shape and out2.shape == x.shape
    assert jnp.allclose(out1, r1, rtol=1e-4, atol=1e-4)
    assert jnp.allclose(out2, r2, rtol=1e-4, atol=1e-4)

    # Case 2: exercises the batch-tiled path (Bt=2, grid=(2,))
    x2 = jax.random.normal(jax.random.PRNGKey(1), (4, 8, 8, 8), jnp.float32)
    o21, o22 = triplet_attention(x2, params)
    jax.block_until_ready((o21, o22))
    r21, r22 = triplet_attention_ref(x2, params)
    assert jnp.allclose(o21, r21, rtol=1e-4, atol=1e-4)
    assert jnp.allclose(o22, r22, rtol=1e-4, atol=1e-4)

    # Case 3: bf16 input (gated multiply/store in bf16; gate math stays f32)
    xb = jax.random.normal(jax.random.PRNGKey(2), (2, 8, 16, 16), jnp.float32)
    xb16 = xb.astype(jnp.bfloat16)
    ob1, ob2 = triplet_attention(xb16, params)
    jax.block_until_ready((ob1, ob2))
    rb1, rb2 = triplet_attention_ref(xb16.astype(jnp.float32), params)
    assert ob1.dtype == jnp.bfloat16 and ob2.dtype == jnp.bfloat16
    assert jnp.allclose(ob1.astype(jnp.float32), rb1, rtol=5e-2, atol=5e-2)
    assert jnp.allclose(ob2.astype(jnp.float32), rb2, rtol=5e-2, atol=5e-2)

    print("KERNEL_OK")
</pallas_src>

<mosaic_0001>
module attributes {stable_mosaic.version = 11 : i64} {
  func.func @_triplet_kernel(%arg0: i32, %arg1: memref<98xf32, #tpu.memory_space<smem>>, %arg2: memref<1xf32, #tpu.memory_space<smem>>, %arg3: memref<98xf32, #tpu.memory_space<smem>>, %arg4: memref<1xf32, #tpu.memory_space<smem>>, %arg5: memref<1x4x16x16xf32, #tpu.memory_space<vmem>>, %arg6: memref<1x4x16x16xf32, #tpu.memory_space<vmem>>, %arg7: memref<1x4x16x16xf32, #tpu.memory_space<vmem>>, %arg8: memref<1x10x22xf32, #tpu.memory_space<vmem>>, %arg9: memref<1x10x22xf32, #tpu.memory_space<vmem>>, %arg10: memref<1x10x22xf32, #tpu.memory_space<vmem>>, %arg11: memref<1x10x22xf32, #tpu.memory_space<vmem>>) attributes {dimension_semantics = [#tpu.dimension_semantics<parallel>], iteration_bounds = array<i64: 2>, scalar_prefetch = 0 : i64, scratch_operands = 4 : i64, tpu.core_type = #tpu.core_type<tc>, window_params = [{transform_indices = @transform_0, window_bounds = array<i64: 98>}, {transform_indices = @transform_1, window_bounds = array<i64: 1>}, {transform_indices = @transform_2, window_bounds = array<i64: 98>}, {transform_indices = @transform_3, window_bounds = array<i64: 1>}, {transform_indices = @transform_4, window_bounds = array<i64: 1, 4, 16, 16>}, {transform_indices = @transform_5, window_bounds = array<i64: 1, 4, 16, 16>}, {transform_indices = @transform_6, window_bounds = array<i64: 1, 4, 16, 16>}]} {
    %c0 = arith.constant 0 : index
    %c0_0 = arith.constant 0 : index
    %c0_1 = arith.constant 0 : index
    %c0_2 = arith.constant 0 : index
    %0 = vector.load %arg5[%c0, %c0_0, %c0_1, %c0_2] : memref<1x4x16x16xf32, #tpu.memory_space<vmem>>, vector<1x4x16x16xf32>
    %cst = arith.constant dense<0xFF800000> : vector<1x4x16xf32>
    %1 = vector.multi_reduction <maximumf>, %0, %cst [2] : vector<1x4x16x16xf32> to vector<1x4x16xf32>
    %cst_3 = arith.constant 0.000000e+00 : f32
    %2 = vector.broadcast %cst_3 : f32 to vector<1x3x22xf32>
    %cst_4 = arith.constant 0.000000e+00 : f32
    %3 = vector.broadcast %cst_4 : f32 to vector<1x4x3xf32>
    %c0_5 = arith.constant 0 : index
    %c0_6 = arith.constant 0 : index
    %c0_7 = arith.constant 0 : index
    %4 = vector.load %arg8[%c0_5, %c0_6, %c0_7] : memref<1x10x22xf32, #tpu.memory_space<vmem>>, vector<1x3x22xf32>
    tpu.vector_store %arg8[%c0_5, %c0_6, %c0_7], %2 {strides = array<i32>} : memref<1x10x22xf32, #tpu.memory_space<vmem>>, vector<1x3x22xf32>,
    %c0_8 = arith.constant 0 : index
    %c7 = arith.constant 7 : index
    %c0_9 = arith.constant 0 : index
    %5 = vector.load %arg8[%c0_8, %c7, %c0_9] : memref<1x10x22xf32, #tpu.memory_space<vmem>>, vector<1x3x22xf32>
    tpu.vector_store %arg8[%c0_8, %c7, %c0_9], %2 {strides = array<i32>} : memref<1x10x22xf32, #tpu.memory_space<vmem>>, vector<1x3x22xf32>,
    %c0_10 = arith.constant 0 : index
    %c3 = arith.constant 3 : index
    %c0_11 = arith.constant 0 : index
    %6 = vector.load %arg8[%c0_10, %c3, %c0_11] : memref<1x10x22xf32, #tpu.memory_space<vmem>>, vector<1x4x3xf32>
    tpu.vector_store %arg8[%c0_10, %c3, %c0_11], %3 {strides = array<i32>} : memref<1x10x22xf32, #tpu.memory_space<vmem>>, vector<1x4x3xf32>,
    %c0_12 = arith.constant 0 : index
    %c3_13 = arith.constant 3 : index
    %c19 = arith.constant 19 : index
    %7 = vector.load %arg8[%c0_12, %c3_13, %c19] : memref<1x10x22xf32, #tpu.memory_space<vmem>>, vector<1x4x3xf32>
    tpu.vector_store %arg8[%c0_12, %c3_13, %c19], %3 {strides = array<i32>} : memref<1x10x22xf32, #tpu.memory_space<vmem>>, vector<1x4x3xf32>,
    %c0_14 = arith.constant 0 : index
    %c3_15 = arith.constant 3 : index
    %c3_16 = arith.constant 3 : index
    %8 = vector.load %arg8[%c0_14, %c3_15, %c3_16] : memref<1x10x22xf32, #tpu.memory_space<vmem>>, vector<1x4x16xf32>
    tpu.vector_store %arg8[%c0_14, %c3_15, %c3_16], %1 {strides = array<i32>} : memref<1x10x22xf32, #tpu.memory_space<vmem>>, vector<1x4x16xf32>,
    %c0_17 = arith.constant 0 : index
    %c0_18 = arith.constant 0 : index
    %c0_19 = arith.constant 0 : index
    %c0_20 = arith.constant 0 : index
    %9 = vector.load %arg5[%c0_17, %c0_18, %c0_19, %c0_20] : memref<1x4x16x16xf32, #tpu.memory_space<vmem>>, vector<1x4x16x16xf32>
    %cst_21 = arith.constant dense<0.000000e+00> : vector<1x4x16xf32>
    %10 = vector.multi_reduction <add>, %9, %cst_21 [2] : vector<1x4x16x16xf32> to vector<1x4x16xf32>
    %cst_22 = arith.constant 6.250000e-02 : f32
    %11 = vector.broadcast %cst_22 : f32 to vector<1x4x16xf32>
    %12 = arith.mulf %10, %11 : vector<1x4x16xf32>
    %cst_23 = arith.constant 0.000000e+00 : f32
    %13 = vector.broadcast %cst_23 : f32 to vector<1x3x22xf32>
    %cst_24 = arith.constant 0.000000e+00 : f32
    %14 = vector.broadcast %cst_24 : f32 to vector<1x4x3xf32>
    %c0_25 = arith.constant 0 : index
    %c0_26 = arith.constant 0 : index
    %c0_27 = arith.constant 0 : index
    %15 = vector.load %arg9[%c0_25, %c0_26, %c0_27] : memref<1x10x22xf32, #tpu.memory_space<vmem>>, vector<1x3x22xf32>
    tpu.vector_store %arg9[%c0_25, %c0_26, %c0_27], %13 {strides = array<i32>} : memref<1x10x22xf32, #tpu.memory_space<vmem>>, vector<1x3x22xf32>,
    %c0_28 = arith.constant 0 : index
    %c7_29 = arith.constant 7 : index
    %c0_30 = arith.constant 0 : index
    %16 = vector.load %arg9[%c0_28, %c7_29, %c0_30] : memref<1x10x22xf32, #tpu.memory_space<vmem>>, vector<1x3x22xf32>
    tpu.vector_store %arg9[%c0_28, %c7_29, %c0_30], %13 {strides = array<i32>} : memref<1x10x22xf32, #tpu.memory_space<vmem>>, vector<1x3x22xf32>,
    %c0_31 = arith.constant 0 : index
    %c3_32 = arith.constant 3 : index
    %c0_33 = arith.constant 0 : index
    %17 = vector.load %arg9[%c0_31, %c3_32, %c0_33] : memref<1x10x22xf32, #tpu.memory_space<vmem>>, vector<1x4x3xf32>
    tpu.vector_store %arg9[%c0_31, %c3_32, %c0_33], %14 {strides = array<i32>} : memref<1x10x22xf32, #tpu.memory_space<vmem>>, vector<1x4x3xf32>,
    %c0_34 = arith.constant 0 : index
    %c3_35 = arith.constant 3 : index
    %c19_36 = arith.constant 19 : index
    %18 = vector.load %arg9[%c0_34, %c3_35, %c19_36] : memref<1x10x22xf32, #tpu.memory_space<vmem>>, vector<1x4x3xf32>
    tpu.vector_store %arg9[%c0_34, %c3_35, %c19_36], %14 {strides = array<i32>} : memref<1x10x22xf32, #tpu.memory_space<vmem>>, vector<1x4x3xf32>,
    %c0_37 = arith.constant 0 : index
    %c3_38 = arith.constant 3 : index
    %c3_39 = arith.constant 3 : index
    %19 = vector.load %arg9[%c0_37, %c3_38, %c3_39] : memref<1x10x22xf32, #tpu.memory_space<vmem>>, vector<1x4x16xf32>
    tpu.vector_store %arg9[%c0_37, %c3_38, %c3_39], %12 {strides = array<i32>} : memref<1x10x22xf32, #tpu.memory_space<vmem>>, vector<1x4x16xf32>,
    %c0_40 = arith.constant 0 : index
    %c0_41 = arith.constant 0 : index
    %c0_42 = arith.constant 0 : index
    %c0_43 = arith.constant 0 : index
    %20 = vector.load %arg5[%c0_40, %c0_41, %c0_42, %c0_43] : memref<1x4x16x16xf32, #tpu.memory_space<vmem>>, vector<1x4x16x16xf32>
    %cst_44 = arith.constant dense<0xFF800000> : vector<1x4x16xf32>
    %21 = vector.multi_reduction <maximumf>, %20, %cst_44 [3] : vector<1x4x16x16xf32> to vector<1x4x16xf32>
    %cst_45 = arith.constant 0.000000e+00 : f32
    %22 = vector.broadcast %cst_45 : f32 to vector<1x3x22xf32>
    %cst_46 = arith.constant 0.000000e+00 : f32
    %23 = vector.broadcast %cst_46 : f32 to vector<1x4x3xf32>
    %c0_47 = arith.constant 0 : index
    %c0_48 = arith.constant 0 : index
    %c0_49 = arith.constant 0 : index
    %24 = vector.load %arg10[%c0_47, %c0_48, %c0_49] : memref<1x10x22xf32, #tpu.memory_space<vmem>>, vector<1x3x22xf32>
    tpu.vector_store %arg10[%c0_47, %c0_48, %c0_49], %22 {strides = array<i32>} : memref<1x10x22xf32, #tpu.memory_space<vmem>>, vector<1x3x22xf32>,
    %c0_50 = arith.constant 0 : index
    %c7_51 = arith.constant 7 : index
    %c0_52 = arith.constant 0 : index
    %25 = vector.load %arg10[%c0_50, %c7_51, %c0_52] : memref<1x10x22xf32, #tpu.memory_space<vmem>>, vector<1x3x22xf32>
    tpu.vector_store %arg10[%c0_50, %c7_51, %c0_52], %22 {strides = array<i32>} : memref<1x10x22xf32, #tpu.memory_space<vmem>>, vector<1x3x22xf32>,
    %c0_53 = arith.constant 0 : index
    %c3_54 = arith.constant 3 : index
    %c0_55 = arith.constant 0 : index
    %26 = vector.load %arg10[%c0_53, %c3_54, %c0_55] : memref<1x10x22xf32, #tpu.memory_space<vmem>>, vector<1x4x3xf32>
    tpu.vector_store %arg10[%c0_53, %c3_54, %c0_55], %23 {strides = array<i32>} : memref<1x10x22xf32, #tpu.memory_space<vmem>>, vector<1x4x3xf32>,
    %c0_56 = arith.constant 0 : index
    %c3_57 = arith.constant 3 : index
    %c19_58 = arith.constant 19 : index
    %27 = vector.load %arg10[%c0_56, %c3_57, %c19_58] : memref<1x10x22xf32, #tpu.memory_space<vmem>>, vector<1x4x3xf32>
    tpu.vector_store %arg10[%c0_56, %c3_57, %c19_58], %23 {strides = array<i32>} : memref<1x10x22xf32, #tpu.memory_space<vmem>>, vector<1x4x3xf32>,
    %c0_59 = arith.constant 0 : index
    %c3_60 = arith.constant 3 : index
    %c3_61 = arith.constant 3 : index
    %28 = vector.load %arg10[%c0_59, %c3_60, %c3_61] : memref<1x10x22xf32, #tpu.memory_space<vmem>>, vector<1x4x16xf32>
    tpu.vector_store %arg10[%c0_59, %c3_60, %c3_61], %21 {strides = array<i32>} : memref<1x10x22xf32, #tpu.memory_space<vmem>>, vector<1x4x16xf32>,
    %c0_62 = arith.constant 0 : index
    %c0_63 = arith.constant 0 : index
    %c0_64 = arith.constant 0 : index
    %c0_65 = arith.constant 0 : index
    %29 = vector.load %arg5[%c0_62, %c0_63, %c0_64, %c0_65] : memref<1x4x16x16xf32, #tpu.memory_space<vmem>>, vector<1x4x16x16xf32>
    %cst_66 = arith.constant dense<0.000000e+00> : vector<1x4x16xf32>
    %30 = vector.multi_reduction <add>, %29, %cst_66 [3] : vector<1x4x16x16xf32> to vector<1x4x16xf32>
    %cst_67 = arith.constant 6.250000e-02 : f32
    %31 = vector.broadcast %cst_67 : f32 to vector<1x4x16xf32>
    %32 = arith.mulf %30, %31 : vector<1x4x16xf32>
    %cst_68 = arith.constant 0.000000e+00 : f32
    %33 = vector.broadcast %cst_68 : f32 to vector<1x3x22xf32>
    %cst_69 = arith.constant 0.000000e+00 : f32
    %34 = vector.broadcast %cst_69 : f32 to vector<1x4x3xf32>
    %c0_70 = arith.constant 0 : index
    %c0_71 = arith.constant 0 : index
    %c0_72 = arith.constant 0 : index
    %35 = vector.load %arg11[%c0_70, %c0_71, %c0_72] : memref<1x10x22xf32, #tpu.memory_space<vmem>>, vector<1x3x22xf32>
    tpu.vector_store %arg11[%c0_70, %c0_71, %c0_72], %33 {strides = array<i32>} : memref<1x10x22xf32, #tpu.memory_space<vmem>>, vector<1x3x22xf32>,
    %c0_73 = arith.constant 0 : index
    %c7_74 = arith.constant 7 : index
    %c0_75 = arith.constant 0 : index
    %36 = vector.load %arg11[%c0_73, %c7_74, %c0_75] : memref<1x10x22xf32, #tpu.memory_space<vmem>>, vector<1x3x22xf32>
    tpu.vector_store %arg11[%c0_73, %c7_74, %c0_75], %33 {strides = array<i32>} : memref<1x10x22xf32, #tpu.memory_space<vmem>>, vector<1x3x22xf32>,
    %c0_76 = arith.constant 0 : index
    %c3_77 = arith.constant 3 : index
    %c0_78 = arith.constant 0 : index
    %37 = vector.load %arg11[%c0_76, %c3_77, %c0_78] : memref<1x10x22xf32, #tpu.memory_space<vmem>>, vector<1x4x3xf32>
    tpu.vector_store %arg11[%c0_76, %c3_77, %c0_78], %34 {strides = array<i32>} : memref<1x10x22xf32, #tpu.memory_space<vmem>>, vector<1x4x3xf32>,
    %c0_79 = arith.constant 0 : index
    %c3_80 = arith.constant 3 : index
    %c19_81 = arith.constant 19 : index
    %38 = vector.load %arg11[%c0_79, %c3_80, %c19_81] : memref<1x10x22xf32, #tpu.memory_space<vmem>>, vector<1x4x3xf32>
    tpu.vector_store %arg11[%c0_79, %c3_80, %c19_81], %34 {strides = array<i32>} : memref<1x10x22xf32, #tpu.memory_space<vmem>>, vector<1x4x3xf32>,
    %c0_82 = arith.constant 0 : index
    %c3_83 = arith.constant 3 : index
    %c3_84 = arith.constant 3 : index
    %39 = vector.load %arg11[%c0_82, %c3_83, %c3_84] : memref<1x10x22xf32, #tpu.memory_space<vmem>>, vector<1x4x16xf32>
    tpu.vector_store %arg11[%c0_82, %c3_83, %c3_84], %32 {strides = array<i32>} : memref<1x10x22xf32, #tpu.memory_space<vmem>>, vector<1x4x16xf32>,
    %cst_85 = arith.constant 0.000000e+00 : f32
    %40 = vector.broadcast %cst_85 : f32 to vector<1x4x16xf32>
    %c0_86 = arith.constant 0 : index
    %c0_87 = arith.constant 0 : index
    %c0_88 = arith.constant 0 : index
    %41 = vector.load %arg8[%c0_86, %c0_87, %c0_88] : memref<1x10x22xf32, #tpu.memory_space<vmem>>, vector<1x10x16xf32>
    %c0_89 = arith.constant 0 : index
    %c0_90 = arith.constant 0 : index
    %c0_91 = arith.constant 0 : index
    %42 = vector.load %arg9[%c0_89, %c0_90, %c0_91] : memref<1x10x22xf32, #tpu.memory_space<vmem>>, vector<1x10x16xf32>
    %c0_92 = arith.constant 0 : index
    %43 = memref.load %arg1[%c0_92] : memref<98xf32, #tpu.memory_space<smem>>
    %44 = vector.extract_strided_slice %41 {offsets = [0, 0, 0], sizes = [1, 4, 16], strides = [1, 1, 1]} : vector<1x10x16xf32> to vector<1x4x16xf32>
    %45 = vector.broadcast %43 : f32 to vector<1x4x16xf32>
    %46 = arith.mulf %45, %44 : vector<1x4x16xf32>
    %47 = arith.addf %40, %46 : vector<1x4x16xf32>
    %c49 = arith.constant 49 : index
    %48 = memref.load %arg1[%c49] : memref<98xf32, #tpu.memory_space<smem>>
    %49 = vector.extract_strided_slice %42 {offsets = [0, 0, 0], sizes = [1, 4, 16], strides = [1, 1, 1]} : vector<1x10x16xf32> to vector<1x4x16xf32>
    %50 = vector.broadcast %48 : f32 to vector<1x4x16xf32>
    %51 = arith.mulf %50, %49 : vector<1x4x16xf32>
    %52 = arith.addf %47, %51 : vector<1x4x16xf32>
    %c7_93 = arith.constant 7 : index
    %53 = memref.load %arg1[%c7_93] : memref<98xf32, #tpu.memory_space<smem>>
    %54 = vector.extract_strided_slice %41 {offsets = [0, 1, 0], sizes = [1, 4, 16], strides = [1, 1, 1]} : vector<1x10x16xf32> to vector<1x4x16xf32>
    %55 = vector.broadcast %53 : f32 to vector<1x4x16xf32>
    %56 = arith.mulf %55, %54 : vector<1x4x16xf32>
    %57 = arith.addf %52, %56 : vector<1x4x16xf32>
    %c56 = arith.constant 56 : index
    %58 = memref.load %arg1[%c56] : memref<98xf32, #tpu.memory_space<smem>>
    %59 = vector.extract_strided_slice %42 {offsets = [0, 1, 0], sizes = [1, 4, 16], strides = [1, 1, 1]} : vector<1x10x16xf32> to vector<1x4x16xf32>
    %60 = vector.broadcast %58 : f32 to vector<1x4x16xf32>
    %61 = arith.mulf %60, %59 : vector<1x4x16xf32>
    %62 = arith.addf %57, %61 : vector<1x4x16xf32>
    %c14 = arith.constant 14 : index
    %63 = memref.load %arg1[%c14] : memref<98xf32, #tpu.memory_space<smem>>
    %64 = vector.extract_strided_slice %41 {offsets = [0, 2, 0], sizes = [1, 4, 16], strides = [1, 1, 1]} : vector<1x10x16xf32> to vector<1x4x16xf32>
    %65 = vector.broadcast %63 : f32 to vector<1x4x16xf32>
    %66 = arith.mulf %65, %64 : vector<1x4x16xf32>
    %67 = arith.addf %62, %66 : vector<1x4x16xf32>
    %c63 = arith.constant 63 : index
    %68 = memref.load %arg1[%c63] : memref<98xf32, #tpu.memory_space<smem>>
    %69 = vector.extract_strided_slice %42 {offsets = [0, 2, 0], sizes = [1, 4, 16], strides = [1, 1, 1]} : vector<1x10x16xf32> to vector<1x4x16xf32>
    %70 = vector.broadcast %68 : f32 to vector<1x4x16xf32>
    %71 = arith.mulf %70, %69 : vector<1x4x16xf32>
    %72 = arith.addf %67, %71 : vector<1x4x16xf32>
    %c21 = arith.constant 21 : index
    %73 = memref.load %arg1[%c21] : memref<98xf32, #tpu.memory_space<smem>>
    %74 = vector.extract_strided_slice %41 {offsets = [0, 3, 0], sizes = [1, 4, 16], strides = [1, 1, 1]} : vector<1x10x16xf32> to vector<1x4x16xf32>
    %75 = vector.broadcast %73 : f32 to vector<1x4x16xf32>
    %76 = arith.mulf %75, %74 : vector<1x4x16xf32>
    %77 = arith.addf %72, %76 : vector<1x4x16xf32>
    %c70 = arith.constant 70 : index
    %78 = memref.load %arg1[%c70] : memref<98xf32, #tpu.memory_space<smem>>
    %79 = vector.extract_strided_slice %42 {offsets = [0, 3, 0], sizes = [1, 4, 16], strides = [1, 1, 1]} : vector<1x10x16xf32> to vector<1x4x16xf32>
    %80 = vector.broadcast %78 : f32 to vector<1x4x16xf32>
    %81 = arith.mulf %80, %79 : vector<1x4x16xf32>
    %82 = arith.addf %77, %81 : vector<1x4x16xf32>
    %c28 = arith.constant 28 : index
    %83 = memref.load %arg1[%c28] : memref<98xf32, #tpu.memory_space<smem>>
    %84 = vector.extract_strided_slice %41 {offsets = [0, 4, 0], sizes = [1, 4, 16], strides = [1, 1, 1]} : vector<1x10x16xf32> to vector<1x4x16xf32>
    %85 = vector.broadcast %83 : f32 to vector<1x4x16xf32>
    %86 = arith.mulf %85, %84 : vector<1x4x16xf32>
    %87 = arith.addf %82, %86 : vector<1x4x16xf32>
    %c77 = arith.constant 77 : index
    %88 = memref.load %arg1[%c77] : memref<98xf32, #tpu.memory_space<smem>>
    %89 = vector.extract_strided_slice %42 {offsets = [0, 4, 0], sizes = [1, 4, 16], strides = [1, 1, 1]} : vector<1x10x16xf32> to vector<1x4x16xf32>
    %90 = vector.broadcast %88 : f32 to vector<1x4x16xf32>
    %91 = arith.mulf %90, %89 : vector<1x4x16xf32>
    %92 = arith.addf %87, %91 : vector<1x4x16xf32>
    %c35 = arith.constant 35 : index
    %93 = memref.load %arg1[%c35] : memref<98xf32, #tpu.memory_space<smem>>
    %94 = vector.extract_strided_slice %41 {offsets = [0, 5, 0], sizes = [1, 4, 16], strides = [1, 1, 1]} : vector<1x10x16xf32> to vector<1x4x16xf32>
    %95 = vector.broadcast %93 : f32 to vector<1x4x16xf32>
    %96 = arith.mulf %95, %94 : vector<1x4x16xf32>
    %97 = arith.addf %92, %96 : vector<1x4x16xf32>
    %c84 = arith.constant 84 : index
    %98 = memref.load %arg1[%c84] : memref<98xf32, #tpu.memory_space<smem>>
    %99 = vector.extract_strided_slice %42 {offsets = [0, 5, 0], sizes = [1, 4, 16], strides = [1, 1, 1]} : vector<1x10x16xf32> to vector<1x4x16xf32>
    %100 = vector.broadcast %98 : f32 to vector<1x4x16xf32>
    %101 = arith.mulf %100, %99 : vector<1x4x16xf32>
    %102 = arith.addf %97, %101 : vector<1x4x16xf32>
    %c42 = arith.constant 42 : index
    %103 = memref.load %arg1[%c42] : memref<98xf32, #tpu.memory_space<smem>>
    %104 = vector.extract_strided_slice %41 {offsets = [0, 6, 0], sizes = [1, 4, 16], strides = [1, 1, 1]} : vector<1x10x16xf32> to vector<1x4x16xf32>
    %105 = vector.broadcast %103 : f32 to vector<1x4x16xf32>
    %106 = arith.mulf %105, %104 : vector<1x4x16xf32>
    %107 = arith.addf %102, %106 : vector<1x4x16xf32>
    %c91 = arith.constant 91 : index
    %108 = memref.load %arg1[%c91] : memref<98xf32, #tpu.memory_space<smem>>
    %109 = vector.extract_strided_slice %42 {offsets = [0, 6, 0], sizes = [1, 4, 16], strides = [1, 1, 1]} : vector<1x10x16xf32> to vector<1x4x16xf32>
    %110 = vector.broadcast %108 : f32 to vector<1x4x16xf32>
    %111 = arith.mulf %110, %109 : vector<1x4x16xf32>
    %112 = arith.addf %107, %111 : vector<1x4x16xf32>
    %c0_94 = arith.constant 0 : index
    %c0_95 = arith.constant 0 : index
    %c1 = arith.constant 1 : index
    %113 = vector.load %arg8[%c0_94, %c0_95, %c1] : memref<1x10x22xf32, #tpu.memory_space<vmem>>, vector<1x10x16xf32>
    %c0_96 = arith.constant 0 : index
    %c0_97 = arith.constant 0 : index
    %c1_98 = arith.constant 1 : index
    %114 = vector.load %arg9[%c0_96, %c0_97, %c1_98] : memref<1x10x22xf32, #tpu.memory_space<vmem>>, vector<1x10x16xf32>
    %c1_99 = arith.constant 1 : index
    %115 = memref.load %arg1[%c1_99] : memref<98xf32, #tpu.memory_space<smem>>
    %116 = vector.extract_strided_slice %113 {offsets = [0, 0, 0], sizes = [1, 4, 16], strides = [1, 1, 1]} : vector<1x10x16xf32> to vector<1x4x16xf32>
    %117 = vector.broadcast %115 : f32 to vector<1x4x16xf32>
    %118 = arith.mulf %117, %116 : vector<1x4x16xf32>
    %119 = arith.addf %112, %118 : vector<1x4x16xf32>
    %c50 = arith.constant 50 : index
    %120 = memref.load %arg1[%c50] : memref<98xf32, #tpu.memory_space<smem>>
    %121 = vector.extract_strided_slice %114 {offsets = [0, 0, 0], sizes = [1, 4, 16], strides = [1, 1, 1]} : vector<1x10x16xf32> to vector<1x4x16xf32>
    %122 = vector.broadcast %120 : f32 to vector<1x4x16xf32>
    %123 = arith.mulf %122, %121 : vector<1x4x16xf32>
    %124 = arith.addf %119, %123 : vector<1x4x16xf32>
    %c8 = arith.constant 8 : index
    %125 = memref.load %arg1[%c8] : memref<98xf32, #tpu.memory_space<smem>>
    %126 = vector.extract_strided_slice %113 {offsets = [0, 1, 0], sizes = [1, 4, 16], strides = [1, 1, 1]} : vector<1x10x16xf32> to vector<1x4x16xf32>
    %127 = vector.broadcast %125 : f32 to vector<1x4x16xf32>
    %128 = arith.mulf %127, %126 : vector<1x4x16xf32>
    %129 = arith.addf %124, %128 : vector<1x4x16xf32>
    %c57 = arith.constant 57 : index
    %130 = memref.load %arg1[%c57] : memref<98xf32, #tpu.memory_space<smem>>
    %131 = vector.extract_strided_slice %114 {offsets = [0, 1, 0], sizes = [1, 4, 16], strides = [1, 1, 1]} : vector<1x10x16xf32> to vector<1x4x16xf32>
    %132 = vector.broadcast %130 : f32 to vector<1x4x16xf32>
    %133 = arith.mulf %132, %131 : vector<1x4x16xf32>
    %134 = arith.addf %129, %133 : vector<1x4x16xf32>
    %c15 = arith.constant 15 : index
    %135 = memref.load %arg1[%c15] : memref<98xf32, #tpu.memory_space<smem>>
    %136 = vector.extract_strided_slice %113 {offsets = [0, 2, 0], sizes = [1, 4, 16], strides = [1, 1, 1]} : vector<1x10x16xf32> to vector<1x4x16xf32>
    %137 = vector.broadcast %135 : f32 to vector<1x4x16xf32>
    %138 = arith.mulf %137, %136 : vector<1x4x16xf32>
    %139 = arith.addf %134, %138 : vector<1x4x16xf32>
    %c64 = arith.constant 64 : index
    %140 = memref.load %arg1[%c64] : memref<98xf32, #tpu.memory_space<smem>>
    %141 = vector.extract_strided_slice %114 {offsets = [0, 2, 0], sizes = [1, 4, 16], strides = [1, 1, 1]} : vector<1x10x16xf32> to vector<1x4x16xf32>
    %142 = vector.broadcast %140 : f32 to vector<1x4x16xf32>
    %143 = arith.mulf %142, %141 : vector<1x4x16xf32>
    %144 = arith.addf %139, %143 : vector<1x4x16xf32>
    %c22 = arith.constant 22 : index
    %145 = memref.load %arg1[%c22] : memref<98xf32, #tpu.memory_space<smem>>
    %146 = vector.extract_strided_slice %113 {offsets = [0, 3, 0], sizes = [1, 4, 16], strides = [1, 1, 1]} : vector<1x10x16xf32> to vector<1x4x16xf32>
    %147 = vector.broadcast %145 : f32 to vector<1x4x16xf32>
    %148 = arith.mulf %147, %146 : vector<1x4x16xf32>
    %149 = arith.addf %144, %148 : vector<1x4x16xf32>
    %c71 = arith.constant 71 : index
    %150 = memref.load %arg1[%c71] : memref<98xf32, #tpu.memory_space<smem>>
    %151 = vector.extract_strided_slice %114 {offsets = [0, 3, 0], sizes = [1, 4, 16], strides = [1, 1, 1]} : vector<1x10x16xf32> to vector<1x4x16xf32>
    %152 = vector.broadcast %150 : f32 to vector<1x4x16xf32>
    %153 = arith.mulf %152, %151 : vector<1x4x16xf32>
    %154 = arith.addf %149, %153 : vector<1x4x16xf32>
    %c29 = arith.constant 29 : index
    %155 = memref.load %arg1[%c29] : memref<98xf32, #tpu.memory_space<smem>>
    %156 = vector.extract_strided_slice %113 {offsets = [0, 4, 0], sizes = [1, 4, 16], strides = [1, 1, 1]} : vector<1x10x16xf32> to vector<1x4x16xf32>
    %157 = vector.broadcast %155 : f32 to vector<1x4x16xf32>
    %158 = arith.mulf %157, %156 : vector<1x4x16xf32>
    %159 = arith.addf %154, %158 : vector<1x4x16xf32>
    %c78 = arith.constant 78 : index
    %160 = memref.load %arg1[%c78] : memref<98xf32, #tpu.memory_space<smem>>
    %161 = vector.extract_strided_slice %114 {offsets = [0, 4, 0], sizes = [1, 4, 16], strides = [1, 1, 1]} : vector<1x10x16xf32> to vector<1x4x16xf32>
    %162 = vector.broadcast %160 : f32 to vector<1x4x16xf32>
    %163 = arith.mulf %162, %161 : vector<1x4x16xf32>
    %164 = arith.addf %159, %163 : vector<1x4x16xf32>
    %c36 = arith.constant 36 : index
    %165 = memref.load %arg1[%c36] : memref<98xf32, #tpu.memory_space<smem>>
    %166 = vector.extract_strided_slice %113 {offsets = [0, 5, 0], sizes = [1, 4, 16], strides = [1, 1, 1]} : vector<1x10x16xf32> to vector<1x4x16xf32>
    %167 = vector.broadcast %165 : f32 to vector<1x4x16xf32>
    %168 = arith.mulf %167, %166 : vector<1x4x16xf32>
    %169 = arith.addf %164, %168 : vector<1x4x16xf32>
    %c85 = arith.constant 85 : index
    %170 = memref.load %arg1[%c85] : memref<98xf32, #tpu.memory_space<smem>>
    %171 = vector.extract_strided_slice %114 {offsets = [0, 5, 0], sizes = [1, 4, 16], strides = [1, 1, 1]} : vector<1x10x16xf32> to vector<1x4x16xf32>
    %172 = vector.broadcast %170 : f32 to vector<1x4x16xf32>
    %173 = arith.mulf %172, %171 : vector<1x4x16xf32>
    %174 = arith.addf %169, %173 : vector<1x4x16xf32>
    %c43 = arith.constant 43 : index
    %175 = memref.load %arg1[%c43] : memref<98xf32, #tpu.memory_space<smem>>
    %176 = vector.extract_strided_slice %113 {offsets = [0, 6, 0], sizes = [1, 4, 16], strides = [1, 1, 1]} : vector<1x10x16xf32> to vector<1x4x16xf32>
    %177 = vector.broadcast %175 : f32 to vector<1x4x16xf32>
    %178 = arith.mulf %177, %176 : vector<1x4x16xf32>
    %179 = arith.addf %174, %178 : vector<1x4x16xf32>
    %c92 = arith.constant 92 : index
    %180 = memref.load %arg1[%c92] : memref<98xf32, #tpu.memory_space<smem>>
    %181 = vector.extract_strided_slice %114 {offsets = [0, 6, 0], sizes = [1, 4, 16], strides = [1, 1, 1]} : vector<1x10x16xf32> to vector<1x4x16xf32>
    %182 = vector.broadcast %180 : f32 to vector<1x4x16xf32>
    %183 = arith.mulf %182, %181 : vector<1x4x16xf32>
    %184 = arith.addf %179, %183 : vector<1x4x16xf32>
    %c0_100 = arith.constant 0 : index
    %c0_101 = arith.constant 0 : index
    %c2 = arith.constant 2 : index
    %185 = vector.load %arg8[%c0_100, %c0_101, %c2] : memref<1x10x22xf32, #tpu.memory_space<vmem>>, vector<1x10x16xf32>
    %c0_102 = arith.constant 0 : index
    %c0_103 = arith.constant 0 : index
    %c2_104 = arith.constant 2 : index
    %186 = vector.load %arg9[%c0_102, %c0_103, %c2_104] : memref<1x10x22xf32, #tpu.memory_space<vmem>>, vector<1x10x16xf32>
    %c2_105 = arith.constant 2 : index
    %187 = memref.load %arg1[%c2_105] : memref<98xf32, #tpu.memory_space<smem>>
    %188 = vector.extract_strided_slice %185 {offsets = [0, 0, 0], sizes = [1, 4, 16], strides = [1, 1, 1]} : vector<1x10x16xf32> to vector<1x4x16xf32>
    %189 = vector.broadcast %187 : f32 to vector<1x4x16xf32>
    %190 = arith.mulf %189, %188 : vector<1x4x16xf32>
    %191 = arith.addf %184, %190 : vector<1x4x16xf32>
    %c51 = arith.constant 51 : index
    %192 = memref.load %arg1[%c51] : memref<98xf32, #tpu.memory_space<smem>>
    %193 = vector.extract_strided_slice %186 {offsets = [0, 0, 0], sizes = [1, 4, 16], strides = [1, 1, 1]} : vector<1x10x16xf32> to vector<1x4x16xf32>
    %194 = vector.broadcast %192 : f32 to vector<1x4x16xf32>
    %195 = arith.mulf %194, %193 : vector<1x4x16xf32>
    %196 = arith.addf %191, %195 : vector<1x4x16xf32>
    %c9 = arith.constant 9 : index
    %197 = memref.load %arg1[%c9] : memref<98xf32, #tpu.memory_space<smem>>
    %198 = vector.extract_strided_slice %185 {offsets = [0, 1, 0], sizes = [1, 4, 16], strides = [1, 1, 1]} : vector<1x10x16xf32> to vector<1x4x16xf32>
    %199 = vector.broadcast %197 : f32 to vector<1x4x16xf32>
    %200 = arith.mulf %199, %198 : vector<1x4x16xf32>
    %201 = arith.addf %196, %200 : vector<1x4x16xf32>
    %c58 = arith.constant 58 : index
    %202 = memref.load %arg1[%c58] : memref<98xf32, #tpu.memory_space<smem>>
    %203 = vector.extract_strided_slice %186 {offsets = [0, 1, 0], sizes = [1, 4, 16], strides = [1, 1, 1]} : vector<1x10x16xf32> to vector<1x4x16xf32>
    %204 = vector.broadcast %202 : f32 to vector<1x4x16xf32>
    %205 = arith.mulf %204, %203 : vector<1x4x16xf32>
    %206 = arith.addf %201, %205 : vector<1x4x16xf32>
    %c16 = arith.constant 16 : index
    %207 = memref.load %arg1[%c16] : memref<98xf32, #tpu.memory_space<smem>>
    %208 = vector.extract_strided_slice %185 {offsets = [0, 2, 0], sizes = [1, 4, 16], strides = [1, 1, 1]} : vector<1x10x16xf32> to vector<1x4x16xf32>
    %209 = vector.broadcast %207 : f32 to vector<1x4x16xf32>
    %210 = arith.mulf %209, %208 : vector<1x4x16xf32>
    %211 = arith.addf %206, %210 : vector<1x4x16xf32>
    %c65 = arith.constant 65 : index
    %212 = memref.load %arg1[%c65] : memref<98xf32, #tpu.memory_space<smem>>
    %213 = vector.extract_strided_slice %186 {offsets = [0, 2, 0], sizes = [1, 4, 16], strides = [1, 1, 1]} : vector<1x10x16xf32> to vector<1x4x16xf32>
    %214 = vector.broadcast %212 : f32 to vector<1x4x16xf32>
    %215 = arith.mulf %214, %213 : vector<1x4x16xf32>
    %216 = arith.addf %211, %215 : vector<1x4x16xf32>
    %c23 = arith.constant 23 : index
    %217 = memref.load %arg1[%c23] : memref<98xf32, #tpu.memory_space<smem>>
    %218 = vector.extract_strided_slice %185 {offsets = [0, 3, 0], sizes = [1, 4, 16], strides = [1, 1, 1]} : vector<1x10x16xf32> to vector<1x4x16xf32>
    %219 = vector.broadcast %217 : f32 to vector<1x4x16xf32>
    %220 = arith.mulf %219, %218 : vector<1x4x16xf32>
    %221 = arith.addf %216, %220 : vector<1x4x16xf32>
    %c72 = arith.constant 72 : index
    %222 = memref.load %arg1[%c72] : memref<98xf32, #tpu.memory_space<smem>>
    %223 = vector.extract_strided_slice %186 {offsets = [0, 3, 0], sizes = [1, 4, 16], strides = [1, 1, 1]} : vector<1x10x16xf32> to vector<1x4x16xf32>
    %224 = vector.broadcast %222 : f32 to vector<1x4x16xf32>
    %225 = arith.mulf %224, %223 : vector<1x4x16xf32>
    %226 = arith.addf %221, %225 : vector<1x4x16xf32>
    %c30 = arith.constant 30 : index
    %227 = memref.load %arg1[%c30] : memref<98xf32, #tpu.memory_space<smem>>
    %228 = vector.extract_strided_slice %185 {offsets = [0, 4, 0], sizes = [1, 4, 16], strides = [1, 1, 1]} : vector<1x10x16xf32> to vector<1x4x16xf32>
    %229 = vector.broadcast %227 : f32 to vector<1x4x16xf32>
    %230 = arith.mulf %229, %228 : vector<1x4x16xf32>
    %231 = arith.addf %226, %230 : vector<1x4x16xf32>
    %c79 = arith.constant 79 : index
    %232 = memref.load %arg1[%c79] : memref<98xf32, #tpu.memory_space<smem>>
    %233 = vector.extract_strided_slice %186 {offsets = [0, 4, 0], sizes = [1, 4, 16], strides = [1, 1, 1]} : vector<1x10x16xf32> to vector<1x4x16xf32>
    %234 = vector.broadcast %232 : f32 to vector<1x4x16xf32>
    %235 = arith.mulf %234, %233 : vector<1x4x16xf32>
    %236 = arith.addf %231, %235 : vector<1x4x16xf32>
    %c37 = arith.constant 37 : index
    %237 = memref.load %arg1[%c37] : memref<98xf32, #tpu.memory_space<smem>>
    %238 = vector.extract_strided_slice %185 {offsets = [0, 5, 0], sizes = [1, 4, 16], strides = [1, 1, 1]} : vector<1x10x16xf32> to vector<1x4x16xf32>
    %239 = vector.broadcast %237 : f32 to vector<1x4x16xf32>
    %240 = arith.mulf %239, %238 : vector<1x4x16xf32>
    %241 = arith.addf %236, %240 : vector<1x4x16xf32>
    %c86 = arith.constant 86 : index
    %242 = memref.load %arg1[%c86] : memref<98xf32, #tpu.memory_space<smem>>
    %243 = vector.extract_strided_slice %186 {offsets = [0, 5, 0], sizes = [1, 4, 16], strides = [1, 1, 1]} : vector<1x10x16xf32> to vector<1x4x16xf32>
    %244 = vector.broadcast %242 : f32 to vector<1x4x16xf32>
    %245 = arith.mulf %244, %243 : vector<1x4x16xf32>
    %246 = arith.addf %241, %245 : vector<1x4x16xf32>
    %c44 = arith.constant 44 : index
    %247 = memref.load %arg1[%c44] : memref<98xf32, #tpu.memory_space<smem>>
    %248 = vector.extract_strided_slice %185 {offsets = [0, 6, 0], sizes = [1, 4, 16], strides = [1, 1, 1]} : vector<1x10x16xf32> to vector<1x4x16xf32>
    %249 = vector.broadcast %247 : f32 to vector<1x4x16xf32>
    %250 = arith.mulf %249, %248 : vector<1x4x16xf32>
    %251 = arith.addf %246, %250 : vector<1x4x16xf32>
    %c93 = arith.constant 93 : index
    %252 = memref.load %arg1[%c93] : memref<98xf32, #tpu.memory_space<smem>>
    %253 = vector.extract_strided_slice %186 {offsets = [0, 6, 0], sizes = [1, 4, 16], strides = [1, 1, 1]} : vector<1x10x16xf32> to vector<1x4x16xf32>
    %254 = vector.broadcast %252 : f32 to vector<1x4x16xf32>
    %255 = arith.mulf %254, %253 : vector<1x4x16xf32>
    %256 = arith.addf %251, %255 : vector<1x4x16xf32>
    %c0_106 = arith.constant 0 : index
    %c0_107 = arith.constant 0 : index
    %c3_108 = arith.constant 3 : index
    %257 = vector.load %arg8[%c0_106, %c0_107, %c3_108] : memref<1x10x22xf32, #tpu.memory_space<vmem>>, vector<1x10x16xf32>
    %c0_109 = arith.constant 0 : index
    %c0_110 = arith.constant 0 : index
    %c3_111 = arith.constant 3 : index
    %258 = vector.load %arg9[%c0_109, %c0_110, %c3_111] : memref<1x10x22xf32, #tpu.memory_space<vmem>>, vector<1x10x16xf32>
    %c3_112 = arith.constant 3 : index
    %259 = memref.load %arg1[%c3_112] : memref<98xf32, #tpu.memory_space<smem>>
    %260 = vector.extract_strided_slice %257 {offsets = [0, 0, 0], sizes = [1, 4, 16], strides = [1, 1, 1]} : vector<1x10x16xf32> to vector<1x4x16xf32>
    %261 = vector.broadcast %259 : f32 to vector<1x4x16xf32>
    %262 = arith.mulf %261, %260 : vector<1x4x16xf32>
    %263 = arith.addf %256, %262 : vector<1x4x16xf32>
    %c52 = arith.constant 52 : index
    %264 = memref.load %arg1[%c52] : memref<98xf32, #tpu.memory_space<smem>>
    %265 = vector.extract_strided_slice %258 {offsets = [0, 0, 0], sizes = [1, 4, 16], strides = [1, 1, 1]} : vector<1x10x16xf32> to vector<1x4x16xf32>
    %266 = vector.broadcast %264 : f32 to vector<1x4x16xf32>
    %267 = arith.mulf %266, %265 : vector<1x4x16xf32>
    %268 = arith.addf %263, %267 : vector<1x4x16xf32>
    %c10 = arith.constant 10 : index
    %269 = memref.load %arg1[%c10] : memref<98xf32, #tpu.memory_space<smem>>
    %270 = vector.extract_strided_slice %257 {offsets = [0, 1, 0], sizes = [1, 4, 16], strides = [1, 1, 1]} : vector<1x10x16xf32> to vector<1x4x16xf32>
    %271 = vector.broadcast %269 : f32 to vector<1x4x16xf32>
    %272 = arith.mulf %271, %270 : vector<1x4x16xf32>
    %273 = arith.addf %268, %272 : vector<1x4x16xf32>
    %c59 = arith.constant 59 : index
    %274 = memref.load %arg1[%c59] : memref<98xf32, #tpu.memory_space<smem>>
    %275 = vector.extract_strided_slice %258 {offsets = [0, 1, 0], sizes = [1, 4, 16], strides = [1, 1, 1]} : vector<1x10x16xf32> to vector<1x4x16xf32>
    %276 = vector.broadcast %274 : f32 to vector<1x4x16xf32>
    %277 = arith.mulf %276, %275 : vector<1x4x16xf32>
    %278 = arith.addf %273, %277 : vector<1x4x16xf32>
    %c17 = arith.constant 17 : index
    %279 = memref.load %arg1[%c17] : memref<98xf32, #tpu.memory_space<smem>>
    %280 = vector.extract_strided_slice %257 {offsets = [0, 2, 0], sizes = [1, 4, 16], strides = [1, 1, 1]} : vector<1x10x16xf32> to vector<1x4x16xf32>
    %281 = vector.broadcast %279 : f32 to vector<1x4x16xf32>
    %282 = arith.mulf %281, %280 : vector<1x4x16xf32>
    %283 = arith.addf %278, %282 : vector<1x4x16xf32>
    %c66 = arith.constant 66 : index
    %284 = memref.load %arg1[%c66] : memref<98xf32, #tpu.memory_space<smem>>
    %285 = vector.extract_strided_slice %258 {offsets = [0, 2, 0], sizes = [1, 4, 16], strides = [1, 1, 1]} : vector<1x10x16xf32> to vector<1x4x16xf32>
    %286 = vector.broadcast %284 : f32 to vector<1x4x16xf32>
    %287 = arith.mulf %286, %285 : vector<1x4x16xf32>
    %288 = arith.addf %283, %287 : vector<1x4x16xf32>
    %c24 = arith.constant 24 : index
    %289 = memref.load %arg1[%c24] : memref<98xf32, #tpu.memory_space<smem>>
    %290 = vector.extract_strided_slice %257 {offsets = [0, 3, 0], sizes = [1, 4, 16], strides = [1, 1, 1]} : vector<1x10x16xf32> to vector<1x4x16xf32>
    %291 = vector.broadcast %289 : f32 to vector<1x4x16xf32>
    %292 = arith.mulf %291, %290 : vector<1x4x16xf32>
    %293 = arith.addf %288, %292 : vector<1x4x16xf32>
    %c73 = arith.constant 73 : index
    %294 = memref.load %arg1[%c73] : memref<98xf32, #tpu.memory_space<smem>>
    %295 = vector.extract_strided_slice %258 {offsets = [0, 3, 0], sizes = [1, 4, 16], strides = [1, 1, 1]} : vector<1x10x16xf32> to vector<1x4x16xf32>
    %296 = vector.broadcast %294 : f32 to vector<1x4x16xf32>
    %297 = arith.mulf %296, %295 : vector<1x4x16xf32>
    %298 = arith.addf %293, %297 : vector<1x4x16xf32>
    %c31 = arith.constant 31 : index
    %299 = memref.load %arg1[%c31] : memref<98xf32, #tpu.memory_space<smem>>
    %300 = vector.extract_strided_slice %257 {offsets = [0, 4, 0], sizes = [1, 4, 16], strides = [1, 1, 1]} : vector<1x10x16xf32> to vector<1x4x16xf32>
    %301 = vector.broadcast %299 : f32 to vector<1x4x16xf32>
    %302 = arith.mulf %301, %300 : vector<1x4x16xf32>
    %303 = arith.addf %298, %302 : vector<1x4x16xf32>
    %c80 = arith.constant 80 : index
    %304 = memref.load %arg1[%c80] : memref<98xf32, #tpu.memory_space<smem>>
    %305 = vector.extract_strided_slice %258 {offsets = [0, 4, 0], sizes = [1, 4, 16], strides = [1, 1, 1]} : vector<1x10x16xf32> to vector<1x4x16xf32>
    %306 = vector.broadcast %304 : f32 to vector<1x4x16xf32>
    %307 = arith.mulf %306, %305 : vector<1x4x16xf32>
    %308 = arith.addf %303, %307 : vector<1x4x16xf32>
    %c38 = arith.constant 38 : index
    %309 = memref.load %arg1[%c38] : memref<98xf32, #tpu.memory_space<smem>>
    %310 = vector.extract_strided_slice %257 {offsets = [0, 5, 0], sizes = [1, 4, 16], strides = [1, 1, 1]} : vector<1x10x16xf32> to vector<1x4x16xf32>
    %311 = vector.broadcast %309 : f32 to vector<1x4x16xf32>
    %312 = arith.mulf %311, %310 : vector<1x4x16xf32>
    %313 = arith.addf %308, %312 : vector<1x4x16xf32>
    %c87 = arith.constant 87 : index
    %314 = memref.load %arg1[%c87] : memref<98xf32, #tpu.memory_space<smem>>
    %315 = vector.extract_strided_slice %258 {offsets = [0, 5, 0], sizes = [1, 4, 16], strides = [1, 1, 1]} : vector<1x10x16xf32> to vector<1x4x16xf32>
    %316 = vector.broadcast %314 : f32 to vector<1x4x16xf32>
    %317 = arith.mulf %316, %315 : vector<1x4x16xf32>
    %318 = arith.addf %313, %317 : vector<1x4x16xf32>
    %c45 = arith.constant 45 : index
    %319 = memref.load %arg1[%c45] : memref<98xf32, #tpu.memory_space<smem>>
    %320 = vector.extract_strided_slice %257 {offsets = [0, 6, 0], sizes = [1, 4, 16], strides = [1, 1, 1]} : vector<1x10x16xf32> to vector<1x4x16xf32>
    %321 = vector.broadcast %319 : f32 to vector<1x4x16xf32>
    %322 = arith.mulf %321, %320 : vector<1x4x16xf32>
    %323 = arith.addf %318, %322 : vector<1x4x16xf32>
    %c94 = arith.constant 94 : index
    %324 = memref.load %arg1[%c94] : memref<98xf32, #tpu.memory_space<smem>>
    %325 = vector.extract_strided_slice %258 {offsets = [0, 6, 0], sizes = [1, 4, 16], strides = [1, 1, 1]} : vector<1x10x16xf32> to vector<1x4x16xf32>
    %326 = vector.broadcast %324 : f32 to vector<1x4x16xf32>
    %327 = arith.mulf %326, %325 : vector<1x4x16xf32>
    %328 = arith.addf %323, %327 : vector<1x4x16xf32>
    %c0_113 = arith.constant 0 : index
    %c0_114 = arith.constant 0 : index
    %c4 = arith.constant 4 : index
    %329 = vector.load %arg8[%c0_113, %c0_114, %c4] : memref<1x10x22xf32, #tpu.memory_space<vmem>>, vector<1x10x16xf32>
    %c0_115 = arith.constant 0 : index
    %c0_116 = arith.constant 0 : index
    %c4_117 = arith.constant 4 : index
    %330 = vector.load %arg9[%c0_115, %c0_116, %c4_117] : memref<1x10x22xf32, #tpu.memory_space<vmem>>, vector<1x10x16xf32>
    %c4_118 = arith.constant 4 : index
    %331 = memref.load %arg1[%c4_118] : memref<98xf32, #tpu.memory_space<smem>>
    %332 = vector.extract_strided_slice %329 {offsets = [0, 0, 0], sizes = [1, 4, 16], strides = [1, 1, 1]} : vector<1x10x16xf32> to vector<1x4x16xf32>
    %333 = vector.broadcast %331 : f32 to vector<1x4x16xf32>
    %334 = arith.mulf %333, %332 : vector<1x4x16xf32>
    %335 = arith.addf %328, %334 : vector<1x4x16xf32>
    %c53 = arith.constant 53 : index
    %336 = memref.load %arg1[%c53] : memref<98xf32, #tpu.memory_space<smem>>
    %337 = vector.extract_strided_slice %330 {offsets = [0, 0, 0], sizes = [1, 4, 16], strides = [1, 1, 1]} : vector<1x10x16xf32> to vector<1x4x16xf32>
    %338 = vector.broadcast %336 : f32 to vector<1x4x16xf32>
    %339 = arith.mulf %338, %337 : vector<1x4x16xf32>
    %340 = arith.addf %335, %339 : vector<1x4x16xf32>
    %c11 = arith.constant 11 : index
    %341 = memref.load %arg1[%c11] : memref<98xf32, #tpu.memory_space<smem>>
    %342 = vector.extract_strided_slice %329 {offsets = [0, 1, 0], sizes = [1, 4, 16], strides = [1, 1, 1]} : vector<1x10x16xf32> to vector<1x4x16xf32>
    %343 = vector.broadcast %341 : f32 to vector<1x4x16xf32>
    %344 = arith.mulf %343, %342 : vector<1x4x16xf32>
    %345 = arith.addf %340, %344 : vector<1x4x16xf32>
    %c60 = arith.constant 60 : index
    %346 = memref.load %arg1[%c60] : memref<98xf32, #tpu.memory_space<smem>>
    %347 = vector.extract_strided_slice %330 {offsets = [0, 1, 0], sizes = [1, 4, 16], strides = [1, 1, 1]} : vector<1x10x16xf32> to vector<1x4x16xf32>
    %348 = vector.broadcast %346 : f32 to vector<1x4x16xf32>
    %349 = arith.mulf %348, %347 : vector<1x4x16xf32>
    %350 = arith.addf %345, %349 : vector<1x4x16xf32>
    %c18 = arith.constant 18 : index
    %351 = memref.load %arg1[%c18] : memref<98xf32, #tpu.memory_space<smem>>
    %352 = vector.extract_strided_slice %329 {offsets = [0, 2, 0], sizes = [1, 4, 16], strides = [1, 1, 1]} : vector<1x10x16xf32> to vector<1x4x16xf32>
    %353 = vector.broadcast %351 : f32 to vector<1x4x16xf32>
    %354 = arith.mulf %353, %352 : vector<1x4x16xf32>
    %355 = arith.addf %350, %354 : vector<1x4x16xf32>
    %c67 = arith.constant 67 : index
    %356 = memref.load %arg1[%c67] : memref<98xf32, #tpu.memory_space<smem>>
    %357 = vector.extract_strided_slice %330 {offsets = [0, 2, 0], sizes = [1, 4, 16], strides = [1, 1, 1]} : vector<1x10x16xf32> to vector<1x4x16xf32>
    %358 = vector.broadcast %356 : f32 to vector<1x4x16xf32>
    %359 = arith.mulf %358, %357 : vector<1x4x16xf32>
    %360 = arith.addf %355, %359 : vector<1x4x16xf32>
    %c25 = arith.constant 25 : index
    %361 = memref.load %arg1[%c25] : memref<98xf32, #tpu.memory_space<smem>>
    %362 = vector.extract_strided_slice %329 {offsets = [0, 3, 0], sizes = [1, 4, 16], strides = [1, 1, 1]} : vector<1x10x16xf32> to vector<1x4x16xf32>
    %363 = vector.broadcast %361 : f32 to vector<1x4x16xf32>
    %364 = arith.mulf %363, %362 : vector<1x4x16xf32>
    %365 = arith.addf %360, %364 : vector<1x4x16xf32>
    %c74 = arith.constant 74 : index
    %366 = memref.load %arg1[%c74] : memref<98xf32, #tpu.memory_space<smem>>
    %367 = vector.extract_strided_slice %330 {offsets = [0, 3, 0], sizes = [1, 4, 16], strides = [1, 1, 1]} : vector<1x10x16xf32> to vector<1x4x16xf32>
    %368 = vector.broadcast %366 : f32 to vector<1x4x16xf32>
    %369 = arith.mulf %368, %367 : vector<1x4x16xf32>
    %370 = arith.addf %365, %369 : vector<1x4x16xf32>
    %c32 = arith.constant 32 : index
    %371 = memref.load %arg1[%c32] : memref<98xf32, #tpu.memory_space<smem>>
    %372 = vector.extract_strided_slice %329 {offsets = [0, 4, 0], sizes = [1, 4, 16], strides = [1, 1, 1]} : vector<1x10x16xf32> to vector<1x4x16xf32>
    %373 = vector.broadcast %371 : f32 to vector<1x4x16xf32>
    %374 = arith.mulf %373, %372 : vector<1x4x16xf32>
    %375 = arith.addf %370, %374 : vector<1x4x16xf32>
    %c81 = arith.constant 81 : index
    %376 = memref.load %arg1[%c81] : memref<98xf32, #tpu.memory_space<smem>>
    %377 = vector.extract_strided_slice %330 {offsets = [0, 4, 0], sizes = [1, 4, 16], strides = [1, 1, 1]} : vector<1x10x16xf32> to vector<1x4x16xf32>
    %378 = vector.broadcast %376 : f32 to vector<1x4x16xf32>
    %379 = arith.mulf %378, %377 : vector<1x4x16xf32>
    %380 = arith.addf %375, %379 : vector<1x4x16xf32>
    %c39 = arith.constant 39 : index
    %381 = memref.load %arg1[%c39] : memref<98xf32, #tpu.memory_space<smem>>
    %382 = vector.extract_strided_slice %329 {offsets = [0, 5, 0], sizes = [1, 4, 16], strides = [1, 1, 1]} : vector<1x10x16xf32> to vector<1x4x16xf32>
    %383 = vector.broadcast %381 : f32 to vector<1x4x16xf32>
    %384 = arith.mulf %383, %382 : vector<1x4x16xf32>
    %385 = arith.addf %380, %384 : vector<1x4x16xf32>
    %c88 = arith.constant 88 : index
    %386 = memref.load %arg1[%c88] : memref<98xf32, #tpu.memory_space<smem>>
    %387 = vector.extract_strided_slice %330 {offsets = [0, 5, 0], sizes = [1, 4, 16], strides = [1, 1, 1]} : vector<1x10x16xf32> to vector<1x4x16xf32>
    %388 = vector.broadcast %386 : f32 to vector<1x4x16xf32>
    %389 = arith.mulf %388, %387 : vector<1x4x16xf32>
    %390 = arith.addf %385, %389 : vector<1x4x16xf32>
    %c46 = arith.constant 46 : index
    %391 = memref.load %arg1[%c46] : memref<98xf32, #tpu.memory_space<smem>>
    %392 = vector.extract_strided_slice %329 {offsets = [0, 6, 0], sizes = [1, 4, 16], strides = [1, 1, 1]} : vector<1x10x16xf32> to vector<1x4x16xf32>
    %393 = vector.broadcast %391 : f32 to vector<1x4x16xf32>
    %394 = arith.mulf %393, %392 : vector<1x4x16xf32>
    %395 = arith.addf %390, %394 : vector<1x4x16xf32>
    %c95 = arith.constant 95 : index
    %396 = memref.load %arg1[%c95] : memref<98xf32, #tpu.memory_space<smem>>
    %397 = vector.extract_strided_slice %330 {offsets = [0, 6, 0], sizes = [1, 4, 16], strides = [1, 1, 1]} : vector<1x10x16xf32> to vector<1x4x16xf32>
    %398 = vector.broadcast %396 : f32 to vector<1x4x16xf32>
    %399 = arith.mulf %398, %397 : vector<1x4x16xf32>
    %400 = arith.addf %395, %399 : vector<1x4x16xf32>
    %c0_119 = arith.constant 0 : index
    %c0_120 = arith.constant 0 : index
    %c5 = arith.constant 5 : index
    %401 = vector.load %arg8[%c0_119, %c0_120, %c5] : memref<1x10x22xf32, #tpu.memory_space<vmem>>, vector<1x10x16xf32>
    %c0_121 = arith.constant 0 : index
    %c0_122 = arith.constant 0 : index
    %c5_123 = arith.constant 5 : index
    %402 = vector.load %arg9[%c0_121, %c0_122, %c5_123] : memref<1x10x22xf32, #tpu.memory_space<vmem>>, vector<1x10x16xf32>
    %c5_124 = arith.constant 5 : index
    %403 = memref.load %arg1[%c5_124] : memref<98xf32, #tpu.memory_space<smem>>
    %404 = vector.extract_strided_slice %401 {offsets = [0, 0, 0], sizes = [1, 4, 16], strides = [1, 1, 1]} : vector<1x10x16xf32> to vector<1x4x16xf32>
    %405 = vector.broadcast %403 : f32 to vector<1x4x16xf32>
    %406 = arith.mulf %405, %404 : vector<1x4x16xf32>
    %407 = arith.addf %400, %406 : vector<1x4x16xf32>
    %c54 = arith.constant 54 : index
    %408 = memref.load %arg1[%c54] : memref<98xf32, #tpu.memory_space<smem>>
    %409 = vector.extract_strided_slice %402 {offsets = [0, 0, 0], sizes = [1, 4, 16], strides = [1, 1, 1]} : vector<1x10x16xf32> to vector<1x4x16xf32>
    %410 = vector.broadcast %408 : f32 to vector<1x4x16xf32>
    %411 = arith.mulf %410, %409 : vector<1x4x16xf32>
    %412 = arith.addf %407, %411 : vector<1x4x16xf32>
    %c12 = arith.constant 12 : index
    %413 = memref.load %arg1[%c12] : memref<98xf32, #tpu.memory_space<smem>>
    %414 = vector.extract_strided_slice %401 {offsets = [0, 1, 0], sizes = [1, 4, 16], strides = [1, 1, 1]} : vector<1x10x16xf32> to vector<1x4x16xf32>
    %415 = vector.broadcast %413 : f32 to vector<1x4x16xf32>
    %416 = arith.mulf %415, %414 : vector<1x4x16xf32>
    %417 = arith.addf %412, %416 : vector<1x4x16xf32>
    %c61 = arith.constant 61 : index
    %418 = memref.load %arg1[%c61] : memref<98xf32, #tpu.memory_space<smem>>
    %419 = vector.extract_strided_slice %402 {offsets = [0, 1, 0], sizes = [1, 4, 16], strides = [1, 1, 1]} : vector<1x10x16xf32> to vector<1x4x16xf32>
    %420 = vector.broadcast %418 : f32 to vector<1x4x16xf32>
    %421 = arith.mulf %420, %419 : vector<1x4x16xf32>
    %422 = arith.addf %417, %421 : vector<1x4x16xf32>
    %c19_125 = arith.constant 19 : index
    %423 = memref.load %arg1[%c19_125] : memref<98xf32, #tpu.memory_space<smem>>
    %424 = vector.extract_strided_slice %401 {offsets = [0, 2, 0], sizes = [1, 4, 16], strides = [1, 1, 1]} : vector<1x10x16xf32> to vector<1x4x16xf32>
    %425 = vector.broadcast %423 : f32 to vector<1x4x16xf32>
    %426 = arith.mulf %425, %424 : vector<1x4x16xf32>
    %427 = arith.addf %422, %426 : vector<1x4x16xf32>
    %c68 = arith.constant 68 : index
    %428 = memref.load %arg1[%c68] : memref<98xf32, #tpu.memory_space<smem>>
    %429 = vector.extract_strided_slice %402 {offsets = [0, 2, 0], sizes = [1, 4, 16], strides = [1, 1, 1]} : vector<1x10x16xf32> to vector<1x4x16xf32>
    %430 = vector.broadcast %428 : f32 to vector<1x4x16xf32>
    %431 = arith.mulf %430, %429 : vector<1x4x16xf32>
    %432 = arith.addf %427, %431 : vector<1x4x16xf32>
    %c26 = arith.constant 26 : index
    %433 = memref.load %arg1[%c26] : memref<98xf32, #tpu.memory_space<smem>>
    %434 = vector.extract_strided_slice %401 {offsets = [0, 3, 0], sizes = [1, 4, 16], strides = [1, 1, 1]} : vector<1x10x16xf32> to vector<1x4x16xf32>
    %435 = vector.broadcast %433 : f32 to vector<1x4x16xf32>
    %436 = arith.mulf %435, %434 : vector<1x4x16xf32>
    %437 = arith.addf %432, %436 : vector<1x4x16xf32>
    %c75 = arith.constant 75 : index
    %438 = memref.load %arg1[%c75] : memref<98xf32, #tpu.memory_space<smem>>
    %439 = vector.extract_strided_slice %402 {offsets = [0, 3, 0], sizes = [1, 4, 16], strides = [1, 1, 1]} : vector<1x10x16xf32> to vector<1x4x16xf32>
    %440 = vector.broadcast %438 : f32 to vector<1x4x16xf32>
    %441 = arith.mulf %440, %439 : vector<1x4x16xf32>
    %442 = arith.addf %437, %441 : vector<1x4x16xf32>
    %c33 = arith.constant 33 : index
    %443 = memref.load %arg1[%c33] : memref<98xf32, #tpu.memory_space<smem>>
    %444 = vector.extract_strided_slice %401 {offsets = [0, 4, 0], sizes = [1, 4, 16], strides = [1, 1, 1]} : vector<1x10x16xf32> to vector<1x4x16xf32>
    %445 = vector.broadcast %443 : f32 to vector<1x4x16xf32>
    %446 = arith.mulf %445, %444 : vector<1x4x16xf32>
    %447 = arith.addf %442, %446 : vector<1x4x16xf32>
    %c82 = arith.constant 82 : index
    %448 = memref.load %arg1[%c82] : memref<98xf32, #tpu.memory_space<smem>>
    %449 = vector.extract_strided_slice %402 {offsets = [0, 4, 0], sizes = [1, 4, 16], strides = [1, 1, 1]} : vector<1x10x16xf32> to vector<1x4x16xf32>
    %450 = vector.broadcast %448 : f32 to vector<1x4x16xf32>
    %451 = arith.mulf %450, %449 : vector<1x4x16xf32>
    %452 = arith.addf %447, %451 : vector<1x4x16xf32>
    %c40 = arith.constant 40 : index
    %453 = memref.load %arg1[%c40] : memref<98xf32, #tpu.memory_space<smem>>
    %454 = vector.extract_strided_slice %401 {offsets = [0, 5, 0], sizes = [1, 4, 16], strides = [1, 1, 1]} : vector<1x10x16xf32> to vector<1x4x16xf32>
    %455 = vector.broadcast %453 : f32 to vector<1x4x16xf32>
    %456 = arith.mulf %455, %454 : vector<1x4x16xf32>
    %457 = arith.addf %452, %456 : vector<1x4x16xf32>
    %c89 = arith.constant 89 : index
    %458 = memref.load %arg1[%c89] : memref<98xf32, #tpu.memory_space<smem>>
    %459 = vector.extract_strided_slice %402 {offsets = [0, 5, 0], sizes = [1, 4, 16], strides = [1, 1, 1]} : vector<1x10x16xf32> to vector<1x4x16xf32>
    %460 = vector.broadcast %458 : f32 to vector<1x4x16xf32>
    %461 = arith.mulf %460, %459 : vector<1x4x16xf32>
    %462 = arith.addf %457, %461 : vector<1x4x16xf32>
    %c47 = arith.constant 47 : index
    %463 = memref.load %arg1[%c47] : memref<98xf32, #tpu.memory_space<smem>>
    %464 = vector.extract_strided_slice %401 {offsets = [0, 6, 0], sizes = [1, 4, 16], strides = [1, 1, 1]} : vector<1x10x16xf32> to vector<1x4x16xf32>
    %465 = vector.broadcast %463 : f32 to vector<1x4x16xf32>
    %466 = arith.mulf %465, %464 : vector<1x4x16xf32>
    %467 = arith.addf %462, %466 : vector<1x4x16xf32>
    %c96 = arith.constant 96 : index
    %468 = memref.load %arg1[%c96] : memref<98xf32, #tpu.memory_space<smem>>
    %469 = vector.extract_strided_slice %402 {offsets = [0, 6, 0], sizes = [1, 4, 16], strides = [1, 1, 1]} : vector<1x10x16xf32> to vector<1x4x16xf32>
    %470 = vector.broadcast %468 : f32 to vector<1x4x16xf32>
    %471 = arith.mulf %470, %469 : vector<1x4x16xf32>
    %472 = arith.addf %467, %471 : vector<1x4x16xf32>
    %c0_126 = arith.constant 0 : index
    %c0_127 = arith.constant 0 : index
    %c6 = arith.constant 6 : index
    %473 = vector.load %arg8[%c0_126, %c0_127, %c6] : memref<1x10x22xf32, #tpu.memory_space<vmem>>, vector<1x10x16xf32>
    %c0_128 = arith.constant 0 : index
    %c0_129 = arith.constant 0 : index
    %c6_130 = arith.constant 6 : index
    %474 = vector.load %arg9[%c0_128, %c0_129, %c6_130] : memref<1x10x22xf32, #tpu.memory_space<vmem>>, vector<1x10x16xf32>
    %c6_131 = arith.constant 6 : index
    %475 = memref.load %arg1[%c6_131] : memref<98xf32, #tpu.memory_space<smem>>
    %476 = vector.extract_strided_slice %473 {offsets = [0, 0, 0], sizes = [1, 4, 16], strides = [1, 1, 1]} : vector<1x10x16xf32> to vector<1x4x16xf32>
    %477 = vector.broadcast %475 : f32 to vector<1x4x16xf32>
    %478 = arith.mulf %477, %476 : vector<1x4x16xf32>
    %479 = arith.addf %472, %478 : vector<1x4x16xf32>
    %c55 = arith.constant 55 : index
    %480 = memref.load %arg1[%c55] : memref<98xf32, #tpu.memory_space<smem>>
    %481 = vector.extract_strided_slice %474 {offsets = [0, 0, 0], sizes = [1, 4, 16], strides = [1, 1, 1]} : vector<1x10x16xf32> to vector<1x4x16xf32>
    %482 = vector.broadcast %480 : f32 to vector<1x4x16xf32>
    %483 = arith.mulf %482, %481 : vector<1x4x16xf32>
    %484 = arith.addf %479, %483 : vector<1x4x16xf32>
    %c13 = arith.constant 13 : index
    %485 = memref.load %arg1[%c13] : memref<98xf32, #tpu.memory_space<smem>>
    %486 = vector.extract_strided_slice %473 {offsets = [0, 1, 0], sizes = [1, 4, 16], strides = [1, 1, 1]} : vector<1x10x16xf32> to vector<1x4x16xf32>
    %487 = vector.broadcast %485 : f32 to vector<1x4x16xf32>
    %488 = arith.mulf %487, %486 : vector<1x4x16xf32>
    %489 = arith.addf %484, %488 : vector<1x4x16xf32>
    %c62 = arith.constant 62 : index
    %490 = memref.load %arg1[%c62] : memref<98xf32, #tpu.memory_space<smem>>
    %491 = vector.extract_strided_slice %474 {offsets = [0, 1, 0], sizes = [1, 4, 16], strides = [1, 1, 1]} : vector<1x10x16xf32> to vector<1x4x16xf32>
    %492 = vector.broadcast %490 : f32 to vector<1x4x16xf32>
    %493 = arith.mulf %492, %491 : vector<1x4x16xf32>
    %494 = arith.addf %489, %493 : vector<1x4x16xf32>
    %c20 = arith.constant 20 : index
    %495 = memref.load %arg1[%c20] : memref<98xf32, #tpu.memory_space<smem>>
    %496 = vector.extract_strided_slice %473 {offsets = [0, 2, 0], sizes = [1, 4, 16], strides = [1, 1, 1]} : vector<1x10x16xf32> to vector<1x4x16xf32>
    %497 = vector.broadcast %495 : f32 to vector<1x4x16xf32>
    %498 = arith.mulf %497, %496 : vector<1x4x16xf32>
    %499 = arith.addf %494, %498 : vector<1x4x16xf32>
    %c69 = arith.constant 69 : index
    %500 = memref.load %arg1[%c69] : memref<98xf32, #tpu.memory_space<smem>>
    %501 = vector.extract_strided_slice %474 {offsets = [0, 2, 0], sizes = [1, 4, 16], strides = [1, 1, 1]} : vector<1x10x16xf32> to vector<1x4x16xf32>
    %502 = vector.broadcast %500 : f32 to vector<1x4x16xf32>
    %503 = arith.mulf %502, %501 : vector<1x4x16xf32>
    %504 = arith.addf %499, %503 : vector<1x4x16xf32>
    %c27 = arith.constant 27 : index
    %505 = memref.load %arg1[%c27] : memref<98xf32, #tpu.memory_space<smem>>
    %506 = vector.extract_strided_slice %473 {offsets = [0, 3, 0], sizes = [1, 4, 16], strides = [1, 1, 1]} : vector<1x10x16xf32> to vector<1x4x16xf32>
    %507 = vector.broadcast %505 : f32 to vector<1x4x16xf32>
    %508 = arith.mulf %507, %506 : vector<1x4x16xf32>
    %509 = arith.addf %504, %508 : vector<1x4x16xf32>
    %c76 = arith.constant 76 : index
    %510 = memref.load %arg1[%c76] : memref<98xf32, #tpu.memory_space<smem>>
    %511 = vector.extract_strided_slice %474 {offsets = [0, 3, 0], sizes = [1, 4, 16], strides = [1, 1, 1]} : vector<1x10x16xf32> to vector<1x4x16xf32>
    %512 = vector.broadcast %510 : f32 to vector<1x4x16xf32>
    %513 = arith.mulf %512, %511 : vector<1x4x16xf32>
    %514 = arith.addf %509, %513 : vector<1x4x16xf32>
    %c34 = arith.constant 34 : index
    %515 = memref.load %arg1[%c34] : memref<98xf32, #tpu.memory_space<smem>>
    %516 = vector.extract_strided_slice %473 {offsets = [0, 4, 0], sizes = [1, 4, 16], strides = [1, 1, 1]} : vector<1x10x16xf32> to vector<1x4x16xf32>
    %517 = vector.broadcast %515 : f32 to vector<1x4x16xf32>
    %518 = arith.mulf %517, %516 : vector<1x4x16xf32>
    %519 = arith.addf %514, %518 : vector<1x4x16xf32>
    %c83 = arith.constant 83 : index
    %520 = memref.load %arg1[%c83] : memref<98xf32, #tpu.memory_space<smem>>
    %521 = vector.extract_strided_slice %474 {offsets = [0, 4, 0], sizes = [1, 4, 16], strides = [1, 1, 1]} : vector<1x10x16xf32> to vector<1x4x16xf32>
    %522 = vector.broadcast %520 : f32 to vector<1x4x16xf32>
    %523 = arith.mulf %522, %521 : vector<1x4x16xf32>
    %524 = arith.addf %519, %523 : vector<1x4x16xf32>
    %c41 = arith.constant 41 : index
    %525 = memref.load %arg1[%c41] : memref<98xf32, #tpu.memory_space<smem>>
    %526 = vector.extract_strided_slice %473 {offsets = [0, 5, 0], sizes = [1, 4, 16], strides = [1, 1, 1]} : vector<1x10x16xf32> to vector<1x4x16xf32>
    %527 = vector.broadcast %525 : f32 to vector<1x4x16xf32>
    %528 = arith.mulf %527, %526 : vector<1x4x16xf32>
    %529 = arith.addf %524, %528 : vector<1x4x16xf32>
    %c90 = arith.constant 90 : index
    %530 = memref.load %arg1[%c90] : memref<98xf32, #tpu.memory_space<smem>>
    %531 = vector.extract_strided_slice %474 {offsets = [0, 5, 0], sizes = [1, 4, 16], strides = [1, 1, 1]} : vector<1x10x16xf32> to vector<1x4x16xf32>
    %532 = vector.broadcast %530 : f32 to vector<1x4x16xf32>
    %533 = arith.mulf %532, %531 : vector<1x4x16xf32>
    %534 = arith.addf %529, %533 : vector<1x4x16xf32>
    %c48 = arith.constant 48 : index
    %535 = memref.load %arg1[%c48] : memref<98xf32, #tpu.memory_space<smem>>
    %536 = vector.extract_strided_slice %473 {offsets = [0, 6, 0], sizes = [1, 4, 16], strides = [1, 1, 1]} : vector<1x10x16xf32> to vector<1x4x16xf32>
    %537 = vector.broadcast %535 : f32 to vector<1x4x16xf32>
    %538 = arith.mulf %537, %536 : vector<1x4x16xf32>
    %539 = arith.addf %534, %538 : vector<1x4x16xf32>
    %c97 = arith.constant 97 : index
    %540 = memref.load %arg1[%c97] : memref<98xf32, #tpu.memory_space<smem>>
    %541 = vector.extract_strided_slice %474 {offsets = [0, 6, 0], sizes = [1, 4, 16], strides = [1, 1, 1]} : vector<1x10x16xf32> to vector<1x4x16xf32>
    %542 = vector.broadcast %540 : f32 to vector<1x4x16xf32>
    %543 = arith.mulf %542, %541 : vector<1x4x16xf32>
    %544 = arith.addf %539, %543 : vector<1x4x16xf32>
    %c0_132 = arith.constant 0 : index
    %545 = memref.load %arg2[%c0_132] : memref<1xf32, #tpu.memory_space<smem>>
    %546 = vector.broadcast %545 : f32 to vector<1x4x16xf32>
    %547 = arith.addf %544, %546 : vector<1x4x16xf32>
    %548 = arith.negf %547 : vector<1x4x16xf32>
    %549 = math.exp %548 : vector<1x4x16xf32>
    %cst_133 = arith.constant 1.000000e+00 : f32
    %550 = vector.broadcast %cst_133 : f32 to vector<1x4x16xf32>
    %551 = arith.addf %550, %549 : vector<1x4x16xf32>
    %552 = arith.divf %550, %551 : vector<1x4x16xf32>
    %cst_134 = arith.constant 0.000000e+00 : f32
    %553 = vector.broadcast %cst_134 : f32 to vector<1x4x16xf32>
    %c0_135 = arith.constant 0 : index
    %c0_136 = arith.constant 0 : index
    %c0_137 = arith.constant 0 : index
    %554 = vector.load %arg10[%c0_135, %c0_136, %c0_137] : memref<1x10x22xf32, #tpu.memory_space<vmem>>, vector<1x10x16xf32>
    %c0_138 = arith.constant 0 : index
    %c0_139 = arith.constant 0 : index
    %c0_140 = arith.constant 0 : index
    %555 = vector.load %arg11[%c0_138, %c0_139, %c0_140] : memref<1x10x22xf32, #tpu.memory_space<vmem>>, vector<1x10x16xf32>
    %c0_141 = arith.constant 0 : index
    %556 = memref.load %arg3[%c0_141] : memref<98xf32, #tpu.memory_space<smem>>
    %557 = vector.extract_strided_slice %554 {offsets = [0, 0, 0], sizes = [1, 4, 16], strides = [1, 1, 1]} : vector<1x10x16xf32> to vector<1x4x16xf32>
    %558 = vector.broadcast %556 : f32 to vector<1x4x16xf32>
    %559 = arith.mulf %558, %557 : vector<1x4x16xf32>
    %560 = arith.addf %553, %559 : vector<1x4x16xf32>
    %c49_142 = arith.constant 49 : index
    %561 = memref.load %arg3[%c49_142] : memref<98xf32, #tpu.memory_space<smem>>
    %562 = vector.extract_strided_slice %555 {offsets = [0, 0, 0], sizes = [1, 4, 16], strides = [1, 1, 1]} : vector<1x10x16xf32> to vector<1x4x16xf32>
    %563 = vector.broadcast %561 : f32 to vector<1x4x16xf32>
    %564 = arith.mulf %563, %562 : vector<1x4x16xf32>
    %565 = arith.addf %560, %564 : vector<1x4x16xf32>
    %c1_143 = arith.constant 1 : index
    %566 = memref.load %arg3[%c1_143] : memref<98xf32, #tpu.memory_space<smem>>
    %567 = vector.extract_strided_slice %554 {offsets = [0, 1, 0], sizes = [1, 4, 16], strides = [1, 1, 1]} : vector<1x10x16xf32> to vector<1x4x16xf32>
    %568 = vector.broadcast %566 : f32 to vector<1x4x16xf32>
    %569 = arith.mulf %568, %567 : vector<1x4x16xf32>
    %570 = arith.addf %565, %569 : vector<1x4x16xf32>
    %c50_144 = arith.constant 50 : index
    %571 = memref.load %arg3[%c50_144] : memref<98xf32, #tpu.memory_space<smem>>
    %572 = vector.extract_strided_slice %555 {offsets = [0, 1, 0], sizes = [1, 4, 16], strides = [1, 1, 1]} : vector<1x10x16xf32> to vector<1x4x16xf32>
    %573 = vector.broadcast %571 : f32 to vector<1x4x16xf32>
    %574 = arith.mulf %573, %572 : vector<1x4x16xf32>
    %575 = arith.addf %570, %574 : vector<1x4x16xf32>
    %c2_145 = arith.constant 2 : index
    %576 = memref.load %arg3[%c2_145] : memref<98xf32, #tpu.memory_space<smem>>
    %577 = vector.extract_strided_slice %554 {offsets = [0, 2, 0], sizes = [1, 4, 16], strides = [1, 1, 1]} : vector<1x10x16xf32> to vector<1x4x16xf32>
    %578 = vector.broadcast %576 : f32 to vector<1x4x16xf32>
    %579 = arith.mulf %578, %577 : vector<1x4x16xf32>
    %580 = arith.addf %575, %579 : vector<1x4x16xf32>
    %c51_146 = arith.constant 51 : index
    %581 = memref.load %arg3[%c51_146] : memref<98xf32, #tpu.memory_space<smem>>
    %582 = vector.extract_strided_slice %555 {offsets = [0, 2, 0], sizes = [1, 4, 16], strides = [1, 1, 1]} : vector<1x10x16xf32> to vector<1x4x16xf32>
    %583 = vector.broadcast %581 : f32 to vector<1x4x16xf32>
    %584 = arith.mulf %583, %582 : vector<1x4x16xf32>
    %585 = arith.addf %580, %584 : vector<1x4x16xf32>
    %c3_147 = arith.constant 3 : index
    %586 = memref.load %arg3[%c3_147] : memref<98xf32, #tpu.memory_space<smem>>
    %587 = vector.extract_strided_slice %554 {offsets = [0, 3, 0], sizes = [1, 4, 16], strides = [1, 1, 1]} : vector<1x10x16xf32> to vector<1x4x16xf32>
    %588 = vector.broadcast %586 : f32 to vector<1x4x16xf32>
    %589 = arith.mulf %588, %587 : vector<1x4x16xf32>
    %590 = arith.addf %585, %589 : vector<1x4x16xf32>
    %c52_148 = arith.constant 52 : index
    %591 = memref.load %arg3[%c52_148] : memref<98xf32, #tpu.memory_space<smem>>
    %592 = vector.extract_strided_slice %555 {offsets = [0, 3, 0], sizes = [1, 4, 16], strides = [1, 1, 1]} : vector<1x10x16xf32> to vector<1x4x16xf32>
    %593 = vector.broadcast %591 : f32 to vector<1x4x16xf32>
    %594 = arith.mulf %593, %592 : vector<1x4x16xf32>
    %595 = arith.addf %590, %594 : vector<1x4x16xf32>
    %c4_149 = arith.constant 4 : index
    %596 = memref.load %arg3[%c4_149] : memref<98xf32, #tpu.memory_space<smem>>
    %597 = vector.extract_strided_slice %554 {offsets = [0, 4, 0], sizes = [1, 4, 16], strides = [1, 1, 1]} : vector<1x10x16xf32> to vector<1x4x16xf32>
    %598 = vector.broadcast %596 : f32 to vector<1x4x16xf32>
    %599 = arith.mulf %598, %597 : vector<1x4x16xf32>
    %600 = arith.addf %595, %599 : vector<1x4x16xf32>
    %c53_150 = arith.constant 53 : index
    %601 = memref.load %arg3[%c53_150] : memref<98xf32, #tpu.memory_space<smem>>
    %602 = vector.extract_strided_slice %555 {offsets = [0, 4, 0], sizes = [1, 4, 16], strides = [1, 1, 1]} : vector<1x10x16xf32> to vector<1x4x16xf32>
    %603 = vector.broadcast %601 : f32 to vector<1x4x16xf32>
    %604 = arith.mulf %603, %602 : vector<1x4x16xf32>
    %605 = arith.addf %600, %604 : vector<1x4x16xf32>
    %c5_151 = arith.constant 5 : index
    %606 = memref.load %arg3[%c5_151] : memref<98xf32, #tpu.memory_space<smem>>
    %607 = vector.extract_strided_slice %554 {offsets = [0, 5, 0], sizes = [1, 4, 16], strides = [1, 1, 1]} : vector<1x10x16xf32> to vector<1x4x16xf32>
    %608 = vector.broadcast %606 : f32 to vector<1x4x16xf32>
    %609 = arith.mulf %608, %607 : vector<1x4x16xf32>
    %610 = arith.addf %605, %609 : vector<1x4x16xf32>
    %c54_152 = arith.constant 54 : index
    %611 = memref.load %arg3[%c54_152] : memref<98xf32, #tpu.memory_space<smem>>
    %612 = vector.extract_strided_slice %555 {offsets = [0, 5, 0], sizes = [1, 4, 16], strides = [1, 1, 1]} : vector<1x10x16xf32> to vector<1x4x16xf32>
    %613 = vector.broadcast %611 : f32 to vector<1x4x16xf32>
    %614 = arith.mulf %613, %612 : vector<1x4x16xf32>
    %615 = arith.addf %610, %614 : vector<1x4x16xf32>
    %c6_153 = arith.constant 6 : index
    %616 = memref.load %arg3[%c6_153] : memref<98xf32, #tpu.memory_space<smem>>
    %617 = vector.extract_strided_slice %554 {offsets = [0, 6, 0], sizes = [1, 4, 16], strides = [1, 1, 1]} : vector<1x10x16xf32> to vector<1x4x16xf32>
    %618 = vector.broadcast %616 : f32 to vector<1x4x16xf32>
    %619 = arith.mulf %618, %617 : vector<1x4x16xf32>
    %620 = arith.addf %615, %619 : vector<1x4x16xf32>
    %c55_154 = arith.constant 55 : index
    %621 = memref.load %arg3[%c55_154] : memref<98xf32, #tpu.memory_space<smem>>
    %622 = vector.extract_strided_slice %555 {offsets = [0, 6, 0], sizes = [1, 4, 16], strides = [1, 1, 1]} : vector<1x10x16xf32> to vector<1x4x16xf32>
    %623 = vector.broadcast %621 : f32 to vector<1x4x16xf32>
    %624 = arith.mulf %623, %622 : vector<1x4x16xf32>
    %625 = arith.addf %620, %624 : vector<1x4x16xf32>
    %c0_155 = arith.constant 0 : index
    %c0_156 = arith.constant 0 : index
    %c1_157 = arith.constant 1 : index
    %626 = vector.load %arg10[%c0_155, %c0_156, %c1_157] : memref<1x10x22xf32, #tpu.memory_space<vmem>>, vector<1x10x16xf32>
    %c0_158 = arith.constant 0 : index
    %c0_159 = arith.constant 0 : index
    %c1_160 = arith.constant 1 : index
    %627 = vector.load %arg11[%c0_158, %c0_159, %c1_160] : memref<1x10x22xf32, #tpu.memory_space<vmem>>, vector<1x10x16xf32>
    %c7_161 = arith.constant 7 : index
    %628 = memref.load %arg3[%c7_161] : memref<98xf32, #tpu.memory_space<smem>>
    %629 = vector.extract_strided_slice %626 {offsets = [0, 0, 0], sizes = [1, 4, 16], strides = [1, 1, 1]} : vector<1x10x16xf32> to vector<1x4x16xf32>
    %630 = vector.broadcast %628 : f32 to vector<1x4x16xf32>
    %631 = arith.mulf %630, %629 : vector<1x4x16xf32>
    %632 = arith.addf %625, %631 : vector<1x4x16xf32>
    %c56_162 = arith.constant 56 : index
    %633 = memref.load %arg3[%c56_162] : memref<98xf32, #tpu.memory_space<smem>>
    %634 = vector.extract_strided_slice %627 {offsets = [0, 0, 0], sizes = [1, 4, 16], strides = [1, 1, 1]} : vector<1x10x16xf32> to vector<1x4x16xf32>
    %635 = vector.broadcast %633 : f32 to vector<1x4x16xf32>
    %636 = arith.mulf %635, %634 : vector<1x4x16xf32>
    %637 = arith.addf %632, %636 : vector<1x4x16xf32>
    %c8_163 = arith.constant 8 : index
    %638 = memref.load %arg3[%c8_163] : memref<98xf32, #tpu.memory_space<smem>>
    %639 = vector.extract_strided_slice %626 {offsets = [0, 1, 0], sizes = [1, 4, 16], strides = [1, 1, 1]} : vector<1x10x16xf32> to vector<1x4x16xf32>
    %640 = vector.broadcast %638 : f32 to vector<1x4x16xf32>
    %641 = arith.mulf %640, %639 : vector<1x4x16xf32>
    %642 = arith.addf %637, %641 : vector<1x4x16xf32>
    %c57_164 = arith.constant 57 : index
    %643 = memref.load %arg3[%c57_164] : memref<98xf32, #tpu.memory_space<smem>>
    %644 = vector.extract_strided_slice %627 {offsets = [0, 1, 0], sizes = [1, 4, 16], strides = [1, 1, 1]} : vector<1x10x16xf32> to vector<1x4x16xf32>
    %645 = vector.broadcast %643 : f32 to vector<1x4x16xf32>
    %646 = arith.mulf %645, %644 : vector<1x4x16xf32>
    %647 = arith.addf %642, %646 : vector<1x4x16xf32>
    %c9_165 = arith.constant 9 : index
    %648 = memref.load %arg3[%c9_165] : memref<98xf32, #tpu.memory_space<smem>>
    %649 = vector.extract_strided_slice %626 {offsets = [0, 2, 0], sizes = [1, 4, 16], strides = [1, 1, 1]} : vector<1x10x16xf32> to vector<1x4x16xf32>
    %650 = vector.broadcast %648 : f32 to vector<1x4x16xf32>
    %651 = arith.mulf %650, %649 : vector<1x4x16xf32>
    %652 = arith.addf %647, %651 : vector<1x4x16xf32>
    %c58_166 = arith.constant 58 : index
    %653 = memref.load %arg3[%c58_166] : memref<98xf32, #tpu.memory_space<smem>>
    %654 = vector.extract_strided_slice %627 {offsets = [0, 2, 0], sizes = [1, 4, 16], strides = [1, 1, 1]} : vector<1x10x16xf32> to vector<1x4x16xf32>
    %655 = vector.broadcast %653 : f32 to vector<1x4x16xf32>
    %656 = arith.mulf %655, %654 : vector<1x4x16xf32>
    %657 = arith.addf %652, %656 : vector<1x4x16xf32>
    %c10_167 = arith.constant 10 : index
    %658 = memref.load %arg3[%c10_167] : memref<98xf32, #tpu.memory_space<smem>>
    %659 = vector.extract_strided_slice %626 {offsets = [0, 3, 0], sizes = [1, 4, 16], strides = [1, 1, 1]} : vector<1x10x16xf32> to vector<1x4x16xf32>
    %660 = vector.broadcast %658 : f32 to vector<1x4x16xf32>
    %661 = arith.mulf %660, %659 : vector<1x4x16xf32>
    %662 = arith.addf %657, %661 : vector<1x4x16xf32>
    %c59_168 = arith.constant 59 : index
    %663 = memref.load %arg3[%c59_168] : memref<98xf32, #tpu.memory_space<smem>>
    %664 = vector.extract_strided_slice %627 {offsets = [0, 3, 0], sizes = [1, 4, 16], strides = [1, 1, 1]} : vector<1x10x16xf32> to vector<1x4x16xf32>
    %665 = vector.broadcast %663 : f32 to vector<1x4x16xf32>
    %666 = arith.mulf %665, %664 : vector<1x4x16xf32>
    %667 = arith.addf %662, %666 : vector<1x4x16xf32>
    %c11_169 = arith.constant 11 : index
    %668 = memref.load %arg3[%c11_169] : memref<98xf32, #tpu.memory_space<smem>>
    %669 = vector.extract_strided_slice %626 {offsets = [0, 4, 0], sizes = [1, 4, 16], strides = [1, 1, 1]} : vector<1x10x16xf32> to vector<1x4x16xf32>
    %670 = vector.broadcast %668 : f32 to vector<1x4x16xf32>
    %671 = arith.mulf %670, %669 : vector<1x4x16xf32>
    %672 = arith.addf %667, %671 : vector<1x4x16xf32>
    %c60_170 = arith.constant 60 : index
    %673 = memref.load %arg3[%c60_170] : memref<98xf32, #tpu.memory_space<smem>>
    %674 = vector.extract_strided_slice %627 {offsets = [0, 4, 0], sizes = [1, 4, 16], strides = [1, 1, 1]} : vector<1x10x16xf32> to vector<1x4x16xf32>
    %675 = vector.broadcast %673 : f32 to vector<1x4x16xf32>
    %676 = arith.mulf %675, %674 : vector<1x4x16xf32>
    %677 = arith.addf %672, %676 : vector<1x4x16xf32>
    %c12_171 = arith.constant 12 : index
    %678 = memref.load %arg3[%c12_171] : memref<98xf32, #tpu.memory_space<smem>>
    %679 = vector.extract_strided_slice %626 {offsets = [0, 5, 0], sizes = [1, 4, 16], strides = [1, 1, 1]} : vector<1x10x16xf32> to vector<1x4x16xf32>
    %680 = vector.broadcast %678 : f32 to vector<1x4x16xf32>
    %681 = arith.mulf %680, %679 : vector<1x4x16xf32>
    %682 = arith.addf %677, %681 : vector<1x4x16xf32>
    %c61_172 = arith.constant 61 : index
    %683 = memref.load %arg3[%c61_172] : memref<98xf32, #tpu.memory_space<smem>>
    %684 = vector.extract_strided_slice %627 {offsets = [0, 5, 0], sizes = [1, 4, 16], strides = [1, 1, 1]} : vector<1x10x16xf32> to vector<1x4x16xf32>
    %685 = vector.broadcast %683 : f32 to vector<1x4x16xf32>
    %686 = arith.mulf %685, %684 : vector<1x4x16xf32>
    %687 = arith.addf %682, %686 : vector<1x4x16xf32>
    %c13_173 = arith.constant 13 : index
    %688 = memref.load %arg3[%c13_173] : memref<98xf32, #tpu.memory_space<smem>>
    %689 = vector.extract_strided_slice %626 {offsets = [0, 6, 0], sizes = [1, 4, 16], strides = [1, 1, 1]} : vector<1x10x16xf32> to vector<1x4x16xf32>
    %690 = vector.broadcast %688 : f32 to vector<1x4x16xf32>
    %691 = arith.mulf %690, %689 : vector<1x4x16xf32>
    %692 = arith.addf %687, %691 : vector<1x4x16xf32>
    %c62_174 = arith.constant 62 : index
    %693 = memref.load %arg3[%c62_174] : memref<98xf32, #tpu.memory_space<smem>>
    %694 = vector.extract_strided_slice %627 {offsets = [0, 6, 0], sizes = [1, 4, 16], strides = [1, 1, 1]} : vector<1x10x16xf32> to vector<1x4x16xf32>
    %695 = vector.broadcast %693 : f32 to vector<1x4x16xf32>
    %696 = arith.mulf %695, %694 : vector<1x4x16xf32>
    %697 = arith.addf %692, %696 : vector<1x4x16xf32>
    %c0_175 = arith.constant 0 : index
    %c0_176 = arith.constant 0 : index
    %c2_177 = arith.constant 2 : index
    %698 = vector.load %arg10[%c0_175, %c0_176, %c2_177] : memref<1x10x22xf32, #tpu.memory_space<vmem>>, vector<1x10x16xf32>
    %c0_178 = arith.constant 0 : index
    %c0_179 = arith.constant 0 : index
    %c2_180 = arith.constant 2 : index
    %699 = vector.load %arg11[%c0_178, %c0_179, %c2_180] : memref<1x10x22xf32, #tpu.memory_space<vmem>>, vector<1x10x16xf32>
    %c14_181 = arith.constant 14 : index
    %700 = memref.load %arg3[%c14_181] : memref<98xf32, #tpu.memory_space<smem>>
    %701 = vector.extract_strided_slice %698 {offsets = [0, 0, 0], sizes = [1, 4, 16], strides = [1, 1, 1]} : vector<1x10x16xf32> to vector<1x4x16xf32>
    %702 = vector.broadcast %700 : f32 to vector<1x4x16xf32>
    %703 = arith.mulf %702, %701 : vector<1x4x16xf32>
    %704 = arith.addf %697, %703 : vector<1x4x16xf32>
    %c63_182 = arith.constant 63 : index
    %705 = memref.load %arg3[%c63_182] : memref<98xf32, #tpu.memory_space<smem>>
    %706 = vector.extract_strided_slice %699 {offsets = [0, 0, 0], sizes = [1, 4, 16], strides = [1, 1, 1]} : vector<1x10x16xf32> to vector<1x4x16xf32>
    %707 = vector.broadcast %705 : f32 to vector<1x4x16xf32>
    %708 = arith.mulf %707, %706 : vector<1x4x16xf32>
    %709 = arith.addf %704, %708 : vector<1x4x16xf32>
    %c15_183 = arith.constant 15 : index
    %710 = memref.load %arg3[%c15_183] : memref<98xf32, #tpu.memory_space<smem>>
    %711 = vector.extract_strided_slice %698 {offsets = [0, 1, 0], sizes = [1, 4, 16], strides = [1, 1, 1]} : vector<1x10x16xf32> to vector<1x4x16xf32>
    %712 = vector.broadcast %710 : f32 to vector<1x4x16xf32>
    %713 = arith.mulf %712, %711 : vector<1x4x16xf32>
    %714 = arith.addf %709, %713 : vector<1x4x16xf32>
    %c64_184 = arith.constant 64 : index
    %715 = memref.load %arg3[%c64_184] : memref<98xf32, #tpu.memory_space<smem>>
    %716 = vector.extract_strided_slice %699 {offsets = [0, 1, 0], sizes = [1, 4, 16], strides = [1, 1, 1]} : vector<1x10x16xf32> to vector<1x4x16xf32>
    %717 = vector.broadcast %715 : f32 to vector<1x4x16xf32>
    %718 = arith.mulf %717, %716 : vector<1x4x16xf32>
    %719 = arith.addf %714, %718 : vector<1x4x16xf32>
    %c16_185 = arith.constant 16 : index
    %720 = memref.load %arg3[%c16_185] : memref<98xf32, #tpu.memory_space<smem>>
    %721 = vector.extract_strided_slice %698 {offsets = [0, 2, 0], sizes = [1, 4, 16], strides = [1, 1, 1]} : vector<1x10x16xf32> to vector<1x4x16xf32>
    %722 = vector.broadcast %720 : f32 to vector<1x4x16xf32>
    %723 = arith.mulf %722, %721 : vector<1x4x16xf32>
    %724 = arith.addf %719, %723 : vector<1x4x16xf32>
    %c65_186 = arith.constant 65 : index
    %725 = memref.load %arg3[%c65_186] : memref<98xf32, #tpu.memory_space<smem>>
    %726 = vector.extract_strided_slice %699 {offsets = [0, 2, 0], sizes = [1, 4, 16], strides = [1, 1, 1]} : vector<1x10x16xf32> to vector<1x4x16xf32>
    %727 = vector.broadcast %725 : f32 to vector<1x4x16xf32>
    %728 = arith.mulf %727, %726 : vector<1x4x16xf32>
    %729 = arith.addf %724, %728 : vector<1x4x16xf32>
    %c17_187 = arith.constant 17 : index
    %730 = memref.load %arg3[%c17_187] : memref<98xf32, #tpu.memory_space<smem>>
    %731 = vector.extract_strided_slice %698 {offsets = [0, 3, 0], sizes = [1, 4, 16], strides = [1, 1, 1]} : vector<1x10x16xf32> to vector<1x4x16xf32>
    %732 = vector.broadcast %730 : f32 to vector<1x4x16xf32>
    %733 = arith.mulf %732, %731 : vector<1x4x16xf32>
    %734 = arith.addf %729, %733 : vector<1x4x16xf32>
    %c66_188 = arith.constant 66 : index
    %735 = memref.load %arg3[%c66_188] : memref<98xf32, #tpu.memory_space<smem>>
    %736 = vector.extract_strided_slice %699 {offsets = [0, 3, 0], sizes = [1, 4, 16], strides = [1, 1, 1]} : vector<1x10x16xf32> to vector<1x4x16xf32>
    %737 = vector.broadcast %735 : f32 to vector<1x4x16xf32>
    %738 = arith.mulf %737, %736 : vector<1x4x16xf32>
    %739 = arith.addf %734, %738 : vector<1x4x16xf32>
    %c18_189 = arith.constant 18 : index
    %740 = memref.load %arg3[%c18_189] : memref<98xf32, #tpu.memory_space<smem>>
    %741 = vector.extract_strided_slice %698 {offsets = [0, 4, 0], sizes = [1, 4, 16], strides = [1, 1, 1]} : vector<1x10x16xf32> to vector<1x4x16xf32>
    %742 = vector.broadcast %740 : f32 to vector<1x4x16xf32>
    %743 = arith.mulf %742, %741 : vector<1x4x16xf32>
    %744 = arith.addf %739, %743 : vector<1x4x16xf32>
    %c67_190 = arith.constant 67 : index
    %745 = memref.load %arg3[%c67_190] : memref<98xf32, #tpu.memory_space<smem>>
    %746 = vector.extract_strided_slice %699 {offsets = [0, 4, 0], sizes = [1, 4, 16], strides = [1, 1, 1]} : vector<1x10x16xf32> to vector<1x4x16xf32>
    %747 = vector.broadcast %745 : f32 to vector<1x4x16xf32>
    %748 = arith.mulf %747, %746 : vector<1x4x16xf32>
    %749 = arith.addf %744, %748 : vector<1x4x16xf32>
    %c19_191 = arith.constant 19 : index
    %750 = memref.load %arg3[%c19_191] : memref<98xf32, #tpu.memory_space<smem>>
    %751 = vector.extract_strided_slice %698 {offsets = [0, 5, 0], sizes = [1, 4, 16], strides = [1, 1, 1]} : vector<1x10x16xf32> to vector<1x4x16xf32>
    %752 = vector.broadcast %750 : f32 to vector<1x4x16xf32>
    %753 = arith.mulf %752, %751 : vector<1x4x16xf32>
    %754 = arith.addf %749, %753 : vector<1x4x16xf32>
    %c68_192 = arith.constant 68 : index
    %755 = memref.load %arg3[%c68_192] : memref<98xf32, #tpu.memory_space<smem>>
    %756 = vector.extract_strided_slice %699 {offsets = [0, 5, 0], sizes = [1, 4, 16], strides = [1, 1, 1]} : vector<1x10x16xf32> to vector<1x4x16xf32>
    %757 = vector.broadcast %755 : f32 to vector<1x4x16xf32>
    %758 = arith.mulf %757, %756 : vector<1x4x16xf32>
    %759 = arith.addf %754, %758 : vector<1x4x16xf32>
    %c20_193 = arith.constant 20 : index
    %760 = memref.load %arg3[%c20_193] : memref<98xf32, #tpu.memory_space<smem>>
    %761 = vector.extract_strided_slice %698 {offsets = [0, 6, 0], sizes = [1, 4, 16], strides = [1, 1, 1]} : vector<1x10x16xf32> to vector<1x4x16xf32>
    %762 = vector.broadcast %760 : f32 to vector<1x4x16xf32>
    %763 = arith.mulf %762, %761 : vector<1x4x16xf32>
    %764 = arith.addf %759, %763 : vector<1x4x16xf32>
    %c69_194 = arith.constant 69 : index
    %765 = memref.load %arg3[%c69_194] : memref<98xf32, #tpu.memory_space<smem>>
    %766 = vector.extract_strided_slice %699 {offsets = [0, 6, 0], sizes = [1, 4, 16], strides = [1, 1, 1]} : vector<1x10x16xf32> to vector<1x4x16xf32>
    %767 = vector.broadcast %765 : f32 to vector<1x4x16xf32>
    %768 = arith.mulf %767, %766 : vector<1x4x16xf32>
    %769 = arith.addf %764, %768 : vector<1x4x16xf32>
    %c0_195 = arith.constant 0 : index
    %c0_196 = arith.constant 0 : index
    %c3_197 = arith.constant 3 : index
    %770 = vector.load %arg10[%c0_195, %c0_196, %c3_197] : memref<1x10x22xf32, #tpu.memory_space<vmem>>, vector<1x10x16xf32>
    %c0_198 = arith.constant 0 : index
    %c0_199 = arith.constant 0 : index
    %c3_200 = arith.constant 3 : index
    %771 = vector.load %arg11[%c0_198, %c0_199, %c3_200] : memref<1x10x22xf32, #tpu.memory_space<vmem>>, vector<1x10x16xf32>
    %c21_201 = arith.constant 21 : index
    %772 = memref.load %arg3[%c21_201] : memref<98xf32, #tpu.memory_space<smem>>
    %773 = vector.extract_strided_slice %770 {offsets = [0, 0, 0], sizes = [1, 4, 16], strides = [1, 1, 1]} : vector<1x10x16xf32> to vector<1x4x16xf32>
    %774 = vector.broadcast %772 : f32 to vector<1x4x16xf32>
    %775 = arith.mulf %774, %773 : vector<1x4x16xf32>
    %776 = arith.addf %769, %775 : vector<1x4x16xf32>
    %c70_202 = arith.constant 70 : index
    %777 = memref.load %arg3[%c70_202] : memref<98xf32, #tpu.memory_space<smem>>
    %778 = vector.extract_strided_slice %771 {offsets = [0, 0, 0], sizes = [1, 4, 16], strides = [1, 1, 1]} : vector<1x10x16xf32> to vector<1x4x16xf32>
    %779 = vector.broadcast %777 : f32 to vector<1x4x16xf32>
    %780 = arith.mulf %779, %778 : vector<1x4x16xf32>
    %781 = arith.addf %776, %780 : vector<1x4x16xf32>
    %c22_203 = arith.constant 22 : index
    %782 = memref.load %arg3[%c22_203] : memref<98xf32, #tpu.memory_space<smem>>
    %783 = vector.extract_strided_slice %770 {offsets = [0, 1, 0], sizes = [1, 4, 16], strides = [1, 1, 1]} : vector<1x10x16xf32> to vector<1x4x16xf32>
    %784 = vector.broadcast %782 : f32 to vector<1x4x16xf32>
    %785 = arith.mulf %784, %783 : vector<1x4x16xf32>
    %786 = arith.addf %781, %785 : vector<1x4x16xf32>
    %c71_204 = arith.constant 71 : index
    %787 = memref.load %arg3[%c71_204] : memref<98xf32, #tpu.memory_space<smem>>
    %788 = vector.extract_strided_slice %771 {offsets = [0, 1, 0], sizes = [1, 4, 16], strides = [1, 1, 1]} : vector<1x10x16xf32> to vector<1x4x16xf32>
    %789 = vector.broadcast %787 : f32 to vector<1x4x16xf32>
    %790 = arith.mulf %789, %788 : vector<1x4x16xf32>
    %791 = arith.addf %786, %790 : vector<1x4x16xf32>
    %c23_205 = arith.constant 23 : index
    %792 = memref.load %arg3[%c23_205] : memref<98xf32, #tpu.memory_space<smem>>
    %793 = vector.extract_strided_slice %770 {offsets = [0, 2, 0], sizes = [1, 4, 16], strides = [1, 1, 1]} : vector<1x10x16xf32> to vector<1x4x16xf32>
    %794 = vector.broadcast %792 : f32 to vector<1x4x16xf32>
    %795 = arith.mulf %794, %793 : vector<1x4x16xf32>
    %796 = arith.addf %791, %795 : vector<1x4x16xf32>
    %c72_206 = arith.constant 72 : index
    %797 = memref.load %arg3[%c72_206] : memref<98xf32, #tpu.memory_space<smem>>
    %798 = vector.extract_strided_slice %771 {offsets = [0, 2, 0], sizes = [1, 4, 16], strides = [1, 1, 1]} : vector<1x10x16xf32> to vector<1x4x16xf32>
    %799 = vector.broadcast %797 : f32 to vector<1x4x16xf32>
    %800 = arith.mulf %799, %798 : vector<1x4x16xf32>
    %801 = arith.addf %796, %800 : vector<1x4x16xf32>
    %c24_207 = arith.constant 24 : index
    %802 = memref.load %arg3[%c24_207] : memref<98xf32, #tpu.memory_space<smem>>
    %803 = vector.extract_strided_slice %770 {offsets = [0, 3, 0], sizes = [1, 4, 16], strides = [1, 1, 1]} : vector<1x10x16xf32> to vector<1x4x16xf32>
    %804 = vector.broadcast %802 : f32 to vector<1x4x16xf32>
    %805 = arith.mulf %804, %803 : vector<1x4x16xf32>
    %806 = arith.addf %801, %805 : vector<1x4x16xf32>
    %c73_208 = arith.constant 73 : index
    %807 = memref.load %arg3[%c73_208] : memref<98xf32, #tpu.memory_space<smem>>
    %808 = vector.extract_strided_slice %771 {offsets = [0, 3, 0], sizes = [1, 4, 16], strides = [1, 1, 1]} : vector<1x10x16xf32> to vector<1x4x16xf32>
    %809 = vector.broadcast %807 : f32 to vector<1x4x16xf32>
    %810 = arith.mulf %809, %808 : vector<1x4x16xf32>
    %811 = arith.addf %806, %810 : vector<1x4x16xf32>
    %c25_209 = arith.constant 25 : index
    %812 = memref.load %arg3[%c25_209] : memref<98xf32, #tpu.memory_space<smem>>
    %813 = vector.extract_strided_slice %770 {offsets = [0, 4, 0], sizes = [1, 4, 16], strides = [1, 1, 1]} : vector<1x10x16xf32> to vector<1x4x16xf32>
    %814 = vector.broadcast %812 : f32 to vector<1x4x16xf32>
    %815 = arith.mulf %814, %813 : vector<1x4x16xf32>
    %816 = arith.addf %811, %815 : vector<1x4x16xf32>
    %c74_210 = arith.constant 74 : index
    %817 = memref.load %arg3[%c74_210] : memref<98xf32, #tpu.memory_space<smem>>
    %818 = vector.extract_strided_slice %771 {offsets = [0, 4, 0], sizes = [1, 4, 16], strides = [1, 1, 1]} : vector<1x10x16xf32> to vector<1x4x16xf32>
    %819 = vector.broadcast %817 : f32 to vector<1x4x16xf32>
    %820 = arith.mulf %819, %818 : vector<1x4x16xf32>
    %821 = arith.addf %816, %820 : vector<1x4x16xf32>
    %c26_211 = arith.constant 26 : index
    %822 = memref.load %arg3[%c26_211] : memref<98xf32, #tpu.memory_space<smem>>
    %823 = vector.extract_strided_slice %770 {offsets = [0, 5, 0], sizes = [1, 4, 16], strides = [1, 1, 1]} : vector<1x10x16xf32> to vector<1x4x16xf32>
    %824 = vector.broadcast %822 : f32 to vector<1x4x16xf32>
    %825 = arith.mulf %824, %823 : vector<1x4x16xf32>
    %826 = arith.addf %821, %825 : vector<1x4x16xf32>
    %c75_212 = arith.constant 75 : index
    %827 = memref.load %arg3[%c75_212] : memref<98xf32, #tpu.memory_space<smem>>
    %828 = vector.extract_strided_slice %771 {offsets = [0, 5, 0], sizes = [1, 4, 16], strides = [1, 1, 1]} : vector<1x10x16xf32> to vector<1x4x16xf32>
    %829 = vector.broadcast %827 : f32 to vector<1x4x16xf32>
    %830 = arith.mulf %829, %828 : vector<1x4x16xf32>
    %831 = arith.addf %826, %830 : vector<1x4x16xf32>
    %c27_213 = arith.constant 27 : index
    %832 = memref.load %arg3[%c27_213] : memref<98xf32, #tpu.memory_space<smem>>
    %833 = vector.extract_strided_slice %770 {offsets = [0, 6, 0], sizes = [1, 4, 16], strides = [1, 1, 1]} : vector<1x10x16xf32> to vector<1x4x16xf32>
    %834 = vector.broadcast %832 : f32 to vector<1x4x16xf32>
    %835 = arith.mulf %834, %833 : vector<1x4x16xf32>
    %836 = arith.addf %831, %835 : vector<1x4x16xf32>
    %c76_214 = arith.constant 76 : index
    %837 = memref.load %arg3[%c76_214] : memref<98xf32, #tpu.memory_space<smem>>
    %838 = vector.extract_strided_slice %771 {offsets = [0, 6, 0], sizes = [1, 4, 16], strides = [1, 1, 1]} : vector<1x10x16xf32> to vector<1x4x16xf32>
    %839 = vector.broadcast %837 : f32 to vector<1x4x16xf32>
    %840 = arith.mulf %839, %838 : vector<1x4x16xf32>
    %841 = arith.addf %836, %840 : vector<1x4x16xf32>
    %c0_215 = arith.constant 0 : index
    %c0_216 = arith.constant 0 : index
    %c4_217 = arith.constant 4 : index
    %842 = vector.load %arg10[%c0_215, %c0_216, %c4_217] : memref<1x10x22xf32, #tpu.memory_space<vmem>>, vector<1x10x16xf32>
    %c0_218 = arith.constant 0 : index
    %c0_219 = arith.constant 0 : index
    %c4_220 = arith.constant 4 : index
    %843 = vector.load %arg11[%c0_218, %c0_219, %c4_220] : memref<1x10x22xf32, #tpu.memory_space<vmem>>, vector<1x10x16xf32>
    %c28_221 = arith.constant 28 : index
    %844 = memref.load %arg3[%c28_221] : memref<98xf32, #tpu.memory_space<smem>>
    %845 = vector.extract_strided_slice %842 {offsets = [0, 0, 0], sizes = [1, 4, 16], strides = [1, 1, 1]} : vector<1x10x16xf32> to vector<1x4x16xf32>
    %846 = vector.broadcast %844 : f32 to vector<1x4x16xf32>
    %847 = arith.mulf %846, %845 : vector<1x4x16xf32>
    %848 = arith.addf %841, %847 : vector<1x4x16xf32>
    %c77_222 = arith.constant 77 : index
    %849 = memref.load %arg3[%c77_222] : memref<98xf32, #tpu.memory_space<smem>>
    %850 = vector.extract_strided_slice %843 {offsets = [0, 0, 0], sizes = [1, 4, 16], strides = [1, 1, 1]} : vector<1x10x16xf32> to vector<1x4x16xf32>
    %851 = vector.broadcast %849 : f32 to vector<1x4x16xf32>
    %852 = arith.mulf %851, %850 : vector<1x4x16xf32>
    %853 = arith.addf %848, %852 : vector<1x4x16xf32>
    %c29_223 = arith.constant 29 : index
    %854 = memref.load %arg3[%c29_223] : memref<98xf32, #tpu.memory_space<smem>>
    %855 = vector.extract_strided_slice %842 {offsets = [0, 1, 0], sizes = [1, 4, 16], strides = [1, 1, 1]} : vector<1x10x16xf32> to vector<1x4x16xf32>
    %856 = vector.broadcast %854 : f32 to vector<1x4x16xf32>
    %857 = arith.mulf %856, %855 : vector<1x4x16xf32>
    %858 = arith.addf %853, %857 : vector<1x4x16xf32>
    %c78_224 = arith.constant 78 : index
    %859 = memref.load %arg3[%c78_224] : memref<98xf32, #tpu.memory_space<smem>>
    %860 = vector.extract_strided_slice %843 {offsets = [0, 1, 0], sizes = [1, 4, 16], strides = [1, 1, 1]} : vector<1x10x16xf32> to vector<1x4x16xf32>
    %861 = vector.broadcast %859 : f32 to vector<1x4x16xf32>
    %862 = arith.mulf %861, %860 : vector<1x4x16xf32>
    %863 = arith.addf %858, %862 : vector<1x4x16xf32>
    %c30_225 = arith.constant 30 : index
    %864 = memref.load %arg3[%c30_225] : memref<98xf32, #tpu.memory_space<smem>>
    %865 = vector.extract_strided_slice %842 {offsets = [0, 2, 0], sizes = [1, 4, 16], strides = [1, 1, 1]} : vector<1x10x16xf32> to vector<1x4x16xf32>
    %866 = vector.broadcast %864 : f32 to vector<1x4x16xf32>
    %867 = arith.mulf %866, %865 : vector<1x4x16xf32>
    %868 = arith.addf %863, %867 : vector<1x4x16xf32>
    %c79_226 = arith.constant 79 : index
    %869 = memref.load %arg3[%c79_226] : memref<98xf32, #tpu.memory_space<smem>>
    %870 = vector.extract_strided_slice %843 {offsets = [0, 2, 0], sizes = [1, 4, 16], strides = [1, 1, 1]} : vector<1x10x16xf32> to vector<1x4x16xf32>
    %871 = vector.broadcast %869 : f32 to vector<1x4x16xf32>
    %872 = arith.mulf %871, %870 : vector<1x4x16xf32>
    %873 = arith.addf %868, %872 : vector<1x4x16xf32>
    %c31_227 = arith.constant 31 : index
    %874 = memref.load %arg3[%c31_227] : memref<98xf32, #tpu.memory_space<smem>>
    %875 = vector.extract_strided_slice %842 {offsets = [0, 3, 0], sizes = [1, 4, 16], strides = [1, 1, 1]} : vector<1x10x16xf32> to vector<1x4x16xf32>
    %876 = vector.broadcast %874 : f32 to vector<1x4x16xf32>
    %877 = arith.mulf %876, %875 : vector<1x4x16xf32>
    %878 = arith.addf %873, %877 : vector<1x4x16xf32>
    %c80_228 = arith.constant 80 : index
    %879 = memref.load %arg3[%c80_228] : memref<98xf32, #tpu.memory_space<smem>>
    %880 = vector.extract_strided_slice %843 {offsets = [0, 3, 0], sizes = [1, 4, 16], strides = [1, 1, 1]} : vector<1x10x16xf32> to vector<1x4x16xf32>
    %881 = vector.broadcast %879 : f32 to vector<1x4x16xf32>
    %882 = arith.mulf %881, %880 : vector<1x4x16xf32>
    %883 = arith.addf %878, %882 : vector<1x4x16xf32>
    %c32_229 = arith.constant 32 : index
    %884 = memref.load %arg3[%c32_229] : memref<98xf32, #tpu.memory_space<smem>>
    %885 = vector.extract_strided_slice %842 {offsets = [0, 4, 0], sizes = [1, 4, 16], strides = [1, 1, 1]} : vector<1x10x16xf32> to vector<1x4x16xf32>
    %886 = vector.broadcast %884 : f32 to vector<1x4x16xf32>
    %887 = arith.mulf %886, %885 : vector<1x4x16xf32>
    %888 = arith.addf %883, %887 : vector<1x4x16xf32>
    %c81_230 = arith.constant 81 : index
    %889 = memref.load %arg3[%c81_230] : memref<98xf32, #tpu.memory_space<smem>>
    %890 = vector.extract_strided_slice %843 {offsets = [0, 4, 0], sizes = [1, 4, 16], strides = [1, 1, 1]} : vector<1x10x16xf32> to vector<1x4x16xf32>
    %891 = vector.broadcast %889 : f32 to vector<1x4x16xf32>
    %892 = arith.mulf %891, %890 : vector<1x4x16xf32>
    %893 = arith.addf %888, %892 : vector<1x4x16xf32>
    %c33_231 = arith.constant 33 : index
    %894 = memref.load %arg3[%c33_231] : memref<98xf32, #tpu.memory_space<smem>>
    %895 = vector.extract_strided_slice %842 {offsets = [0, 5, 0], sizes = [1, 4, 16], strides = [1, 1, 1]} : vector<1x10x16xf32> to vector<1x4x16xf32>
    %896 = vector.broadcast %894 : f32 to vector<1x4x16xf32>
    %897 = arith.mulf %896, %895 : vector<1x4x16xf32>
    %898 = arith.addf %893, %897 : vector<1x4x16xf32>
    %c82_232 = arith.constant 82 : index
    %899 = memref.load %arg3[%c82_232] : memref<98xf32, #tpu.memory_space<smem>>
    %900 = vector.extract_strided_slice %843 {offsets = [0, 5, 0], sizes = [1, 4, 16], strides = [1, 1, 1]} : vector<1x10x16xf32> to vector<1x4x16xf32>
    %901 = vector.broadcast %899 : f32 to vector<1x4x16xf32>
    %902 = arith.mulf %901, %900 : vector<1x4x16xf32>
    %903 = arith.addf %898, %902 : vector<1x4x16xf32>
    %c34_233 = arith.constant 34 : index
    %904 = memref.load %arg3[%c34_233] : memref<98xf32, #tpu.memory_space<smem>>
    %905 = vector.extract_strided_slice %842 {offsets = [0, 6, 0], sizes = [1, 4, 16], strides = [1, 1, 1]} : vector<1x10x16xf32> to vector<1x4x16xf32>
    %906 = vector.broadcast %904 : f32 to vector<1x4x16xf32>
    %907 = arith.mulf %906, %905 : vector<1x4x16xf32>
    %908 = arith.addf %903, %907 : vector<1x4x16xf32>
    %c83_234 = arith.constant 83 : index
    %909 = memref.load %arg3[%c83_234] : memref<98xf32, #tpu.memory_space<smem>>
    %910 = vector.extract_strided_slice %843 {offsets = [0, 6, 0], sizes = [1, 4, 16], strides = [1, 1, 1]} : vector<1x10x16xf32> to vector<1x4x16xf32>
    %911 = vector.broadcast %909 : f32 to vector<1x4x16xf32>
    %912 = arith.mulf %911, %910 : vector<1x4x16xf32>
    %913 = arith.addf %908, %912 : vector<1x4x16xf32>
    %c0_235 = arith.constant 0 : index
    %c0_236 = arith.constant 0 : index
    %c5_237 = arith.constant 5 : index
    %914 = vector.load %arg10[%c0_235, %c0_236, %c5_237] : memref<1x10x22xf32, #tpu.memory_space<vmem>>, vector<1x10x16xf32>
    %c0_238 = arith.constant 0 : index
    %c0_239 = arith.constant 0 : index
    %c5_240 = arith.constant 5 : index
    %915 = vector.load %arg11[%c0_238, %c0_239, %c5_240] : memref<1x10x22xf32, #tpu.memory_space<vmem>>, vector<1x10x16xf32>
    %c35_241 = arith.constant 35 : index
    %916 = memref.load %arg3[%c35_241] : memref<98xf32, #tpu.memory_space<smem>>
    %917 = vector.extract_strided_slice %914 {offsets = [0, 0, 0], sizes = [1, 4, 16], strides = [1, 1, 1]} : vector<1x10x16xf32> to vector<1x4x16xf32>
    %918 = vector.broadcast %916 : f32 to vector<1x4x16xf32>
    %919 = arith.mulf %918, %917 : vector<1x4x16xf32>
    %920 = arith.addf %913, %919 : vector<1x4x16xf32>
    %c84_242 = arith.constant 84 : index
    %921 = memref.load %arg3[%c84_242] : memref<98xf32, #tpu.memory_space<smem>>
    %922 = vector.extract_strided_slice %915 {offsets = [0, 0, 0], sizes = [1, 4, 16], strides = [1, 1, 1]} : vector<1x10x16xf32> to vector<1x4x16xf32>
    %923 = vector.broadcast %921 : f32 to vector<1x4x16xf32>
    %924 = arith.mulf %923, %922 : vector<1x4x16xf32>
    %925 = arith.addf %920, %924 : vector<1x4x16xf32>
    %c36_243 = arith.constant 36 : index
    %926 = memref.load %arg3[%c36_243] : memref<98xf32, #tpu.memory_space<smem>>
    %927 = vector.extract_strided_slice %914 {offsets = [0, 1, 0], sizes = [1, 4, 16], strides = [1, 1, 1]} : vector<1x10x16xf32> to vector<1x4x16xf32>
    %928 = vector.broadcast %926 : f32 to vector<1x4x16xf32>
    %929 = arith.mulf %928, %927 : vector<1x4x16xf32>
    %930 = arith.addf %925, %929 : vector<1x4x16xf32>
    %c85_244 = arith.constant 85 : index
    %931 = memref.load %arg3[%c85_244] : memref<98xf32, #tpu.memory_space<smem>>
    %932 = vector.extract_strided_slice %915 {offsets = [0, 1, 0], sizes = [1, 4, 16], strides = [1, 1, 1]} : vector<1x10x16xf32> to vector<1x4x16xf32>
    %933 = vector.broadcast %931 : f32 to vector<1x4x16xf32>
    %934 = arith.mulf %933, %932 : vector<1x4x16xf32>
    %935 = arith.addf %930, %934 : vector<1x4x16xf32>
    %c37_245 = arith.constant 37 : index
    %936 = memref.load %arg3[%c37_245] : memref<98xf32, #tpu.memory_space<smem>>
    %937 = vector.extract_strided_slice %914 {offsets = [0, 2, 0], sizes = [1, 4, 16], strides = [1, 1, 1]} : vector<1x10x16xf32> to vector<1x4x16xf32>
    %938 = vector.broadcast %936 : f32 to vector<1x4x16xf32>
    %939 = arith.mulf %938, %937 : vector<1x4x16xf32>
    %940 = arith.addf %935, %939 : vector<1x4x16xf32>
    %c86_246 = arith.constant 86 : index
    %941 = memref.load %arg3[%c86_246] : memref<98xf32, #tpu.memory_space<smem>>
    %942 = vector.extract_strided_slice %915 {offsets = [0, 2, 0], sizes = [1, 4, 16], strides = [1, 1, 1]} : vector<1x10x16xf32> to vector<1x4x16xf32>
    %943 = vector.broadcast %941 : f32 to vector<1x4x16xf32>
    %944 = arith.mulf %943, %942 : vector<1x4x16xf32>
    %945 = arith.addf %940, %944 : vector<1x4x16xf32>
    %c38_247 = arith.constant 38 : index
    %946 = memref.load %arg3[%c38_247] : memref<98xf32, #tpu.memory_space<smem>>
    %947 = vector.extract_strided_slice %914 {offsets = [0, 3, 0], sizes = [1, 4, 16], strides = [1, 1, 1]} : vector<1x10x16xf32> to vector<1x4x16xf32>
    %948 = vector.broadcast %946 : f32 to vector<1x4x16xf32>
    %949 = arith.mulf %948, %947 : vector<1x4x16xf32>
    %950 = arith.addf %945, %949 : vector<1x4x16xf32>
    %c87_248 = arith.constant 87 : index
    %951 = memref.load %arg3[%c87_248] : memref<98xf32, #tpu.memory_space<smem>>
    %952 = vector.extract_strided_slice %915 {offsets = [0, 3, 0], sizes = [1, 4, 16], strides = [1, 1, 1]} : vector<1x10x16xf32> to vector<1x4x16xf32>
    %953 = vector.broadcast %951 : f32 to vector<1x4x16xf32>
    %954 = arith.mulf %953, %952 : vector<1x4x16xf32>
    %955 = arith.addf %950, %954 : vector<1x4x16xf32>
    %c39_249 = arith.constant 39 : index
    %956 = memref.load %arg3[%c39_249] : memref<98xf32, #tpu.memory_space<smem>>
    %957 = vector.extract_strided_slice %914 {offsets = [0, 4, 0], sizes = [1, 4, 16], strides = [1, 1, 1]} : vector<1x10x16xf32> to vector<1x4x16xf32>
    %958 = vector.broadcast %956 : f32 to vector<1x4x16xf32>
    %959 = arith.mulf %958, %957 : vector<1x4x16xf32>
    %960 = arith.addf %955, %959 : vector<1x4x16xf32>
    %c88_250 = arith.constant 88 : index
    %961 = memref.load %arg3[%c88_250] : memref<98xf32, #tpu.memory_space<smem>>
    %962 = vector.extract_strided_slice %915 {offsets = [0, 4, 0], sizes = [1, 4, 16], strides = [1, 1, 1]} : vector<1x10x16xf32> to vector<1x4x16xf32>
    %963 = vector.broadcast %961 : f32 to vector<1x4x16xf32>
    %964 = arith.mulf %963, %962 : vector<1x4x16xf32>
    %965 = arith.addf %960, %964 : vector<1x4x16xf32>
    %c40_251 = arith.constant 40 : index
    %966 = memref.load %arg3[%c40_251] : memref<98xf32, #tpu.memory_space<smem>>
    %967 = vector.extract_strided_slice %914 {offsets = [0, 5, 0], sizes = [1, 4, 16], strides = [1, 1, 1]} : vector<1x10x16xf32> to vector<1x4x16xf32>
    %968 = vector.broadcast %966 : f32 to vector<1x4x16xf32>
    %969 = arith.mulf %968, %967 : vector<1x4x16xf32>
    %970 = arith.addf %965, %969 : vector<1x4x16xf32>
    %c89_252 = arith.constant 89 : index
    %971 = memref.load %arg3[%c89_252] : memref<98xf32, #tpu.memory_space<smem>>
    %972 = vector.extract_strided_slice %915 {offsets = [0, 5, 0], sizes = [1, 4, 16], strides = [1, 1, 1]} : vector<1x10x16xf32> to vector<1x4x16xf32>
    %973 = vector.broadcast %971 : f32 to vector<1x4x16xf32>
    %974 = arith.mulf %973, %972 : vector<1x4x16xf32>
    %975 = arith.addf %970, %974 : vector<1x4x16xf32>
    %c41_253 = arith.constant 41 : index
    %976 = memref.load %arg3[%c41_253] : memref<98xf32, #tpu.memory_space<smem>>
    %977 = vector.extract_strided_slice %914 {offsets = [0, 6, 0], sizes = [1, 4, 16], strides = [1, 1, 1]} : vector<1x10x16xf32> to vector<1x4x16xf32>
    %978 = vector.broadcast %976 : f32 to vector<1x4x16xf32>
    %979 = arith.mulf %978, %977 : vector<1x4x16xf32>
    %980 = arith.addf %975, %979 : vector<1x4x16xf32>
    %c90_254 = arith.constant 90 : index
    %981 = memref.load %arg3[%c90_254] : memref<98xf32, #tpu.memory_space<smem>>
    %982 = vector.extract_strided_slice %915 {offsets = [0, 6, 0], sizes = [1, 4, 16], strides = [1, 1, 1]} : vector<1x10x16xf32> to vector<1x4x16xf32>
    %983 = vector.broadcast %981 : f32 to vector<1x4x16xf32>
    %984 = arith.mulf %983, %982 : vector<1x4x16xf32>
    %985 = arith.addf %980, %984 : vector<1x4x16xf32>
    %c0_255 = arith.constant 0 : index
    %c0_256 = arith.constant 0 : index
    %c6_257 = arith.constant 6 : index
    %986 = vector.load %arg10[%c0_255, %c0_256, %c6_257] : memref<1x10x22xf32, #tpu.memory_space<vmem>>, vector<1x10x16xf32>
    %c0_258 = arith.constant 0 : index
    %c0_259 = arith.constant 0 : index
    %c6_260 = arith.constant 6 : index
    %987 = vector.load %arg11[%c0_258, %c0_259, %c6_260] : memref<1x10x22xf32, #tpu.memory_space<vmem>>, vector<1x10x16xf32>
    %c42_261 = arith.constant 42 : index
    %988 = memref.load %arg3[%c42_261] : memref<98xf32, #tpu.memory_space<smem>>
    %989 = vector.extract_strided_slice %986 {offsets = [0, 0, 0], sizes = [1, 4, 16], strides = [1, 1, 1]} : vector<1x10x16xf32> to vector<1x4x16xf32>
    %990 = vector.broadcast %988 : f32 to vector<1x4x16xf32>
    %991 = arith.mulf %990, %989 : vector<1x4x16xf32>
    %992 = arith.addf %985, %991 : vector<1x4x16xf32>
    %c91_262 = arith.constant 91 : index
    %993 = memref.load %arg3[%c91_262] : memref<98xf32, #tpu.memory_space<smem>>
    %994 = vector.extract_strided_slice %987 {offsets = [0, 0, 0], sizes = [1, 4, 16], strides = [1, 1, 1]} : vector<1x10x16xf32> to vector<1x4x16xf32>
    %995 = vector.broadcast %993 : f32 to vector<1x4x16xf32>
    %996 = arith.mulf %995, %994 : vector<1x4x16xf32>
    %997 = arith.addf %992, %996 : vector<1x4x16xf32>
    %c43_263 = arith.constant 43 : index
    %998 = memref.load %arg3[%c43_263] : memref<98xf32, #tpu.memory_space<smem>>
    %999 = vector.extract_strided_slice %986 {offsets = [0, 1, 0], sizes = [1, 4, 16], strides = [1, 1, 1]} : vector<1x10x16xf32> to vector<1x4x16xf32>
    %1000 = vector.broadcast %998 : f32 to vector<1x4x16xf32>
    %1001 = arith.mulf %1000, %999 : vector<1x4x16xf32>
    %1002 = arith.addf %997, %1001 : vector<1x4x16xf32>
    %c92_264 = arith.constant 92 : index
    %1003 = memref.load %arg3[%c92_264] : memref<98xf32, #tpu.memory_space<smem>>
    %1004 = vector.extract_strided_slice %987 {offsets = [0, 1, 0], sizes = [1, 4, 16], strides = [1, 1, 1]} : vector<1x10x16xf32> to vector<1x4x16xf32>
    %1005 = vector.broadcast %1003 : f32 to vector<1x4x16xf32>
    %1006 = arith.mulf %1005, %1004 : vector<1x4x16xf32>
    %1007 = arith.addf %1002, %1006 : vector<1x4x16xf32>
    %c44_265 = arith.constant 44 : index
    %1008 = memref.load %arg3[%c44_265] : memref<98xf32, #tpu.memory_space<smem>>
    %1009 = vector.extract_strided_slice %986 {offsets = [0, 2, 0], sizes = [1, 4, 16], strides = [1, 1, 1]} : vector<1x10x16xf32> to vector<1x4x16xf32>
    %1010 = vector.broadcast %1008 : f32 to vector<1x4x16xf32>
    %1011 = arith.mulf %1010, %1009 : vector<1x4x16xf32>
    %1012 = arith.addf %1007, %1011 : vector<1x4x16xf32>
    %c93_266 = arith.constant 93 : index
    %1013 = memref.load %arg3[%c93_266] : memref<98xf32, #tpu.memory_space<smem>>
    %1014 = vector.extract_strided_slice %987 {offsets = [0, 2, 0], sizes = [1, 4, 16], strides = [1, 1, 1]} : vector<1x10x16xf32> to vector<1x4x16xf32>
    %1015 = vector.broadcast %1013 : f32 to vector<1x4x16xf32>
    %1016 = arith.mulf %1015, %1014 : vector<1x4x16xf32>
    %1017 = arith.addf %1012, %1016 : vector<1x4x16xf32>
    %c45_267 = arith.constant 45 : index
    %1018 = memref.load %arg3[%c45_267] : memref<98xf32, #tpu.memory_space<smem>>
    %1019 = vector.extract_strided_slice %986 {offsets = [0, 3, 0], sizes = [1, 4, 16], strides = [1, 1, 1]} : vector<1x10x16xf32> to vector<1x4x16xf32>
    %1020 = vector.broadcast %1018 : f32 to vector<1x4x16xf32>
    %1021 = arith.mulf %1020, %1019 : vector<1x4x16xf32>
    %1022 = arith.addf %1017, %1021 : vector<1x4x16xf32>
    %c94_268 = arith.constant 94 : index
    %1023 = memref.load %arg3[%c94_268] : memref<98xf32, #tpu.memory_space<smem>>
    %1024 = vector.extract_strided_slice %987 {offsets = [0, 3, 0], sizes = [1, 4, 16], strides = [1, 1, 1]} : vector<1x10x16xf32> to vector<1x4x16xf32>
    %1025 = vector.broadcast %1023 : f32 to vector<1x4x16xf32>
    %1026 = arith.mulf %1025, %1024 : vector<1x4x16xf32>
    %1027 = arith.addf %1022, %1026 : vector<1x4x16xf32>
    %c46_269 = arith.constant 46 : index
    %1028 = memref.load %arg3[%c46_269] : memref<98xf32, #tpu.memory_space<smem>>
    %1029 = vector.extract_strided_slice %986 {offsets = [0, 4, 0], sizes = [1, 4, 16], strides = [1, 1, 1]} : vector<1x10x16xf32> to vector<1x4x16xf32>
    %1030 = vector.broadcast %1028 : f32 to vector<1x4x16xf32>
    %1031 = arith.mulf %1030, %1029 : vector<1x4x16xf32>
    %1032 = arith.addf %1027, %1031 : vector<1x4x16xf32>
    %c95_270 = arith.constant 95 : index
    %1033 = memref.load %arg3[%c95_270] : memref<98xf32, #tpu.memory_space<smem>>
    %1034 = vector.extract_strided_slice %987 {offsets = [0, 4, 0], sizes = [1, 4, 16], strides = [1, 1, 1]} : vector<1x10x16xf32> to vector<1x4x16xf32>
    %1035 = vector.broadcast %1033 : f32 to vector<1x4x16xf32>
    %1036 = arith.mulf %1035, %1034 : vector<1x4x16xf32>
    %1037 = arith.addf %1032, %1036 : vector<1x4x16xf32>
    %c47_271 = arith.constant 47 : index
    %1038 = memref.load %arg3[%c47_271] : memref<98xf32, #tpu.memory_space<smem>>
    %1039 = vector.extract_strided_slice %986 {offsets = [0, 5, 0], sizes = [1, 4, 16], strides = [1, 1, 1]} : vector<1x10x16xf32> to vector<1x4x16xf32>
    %1040 = vector.broadcast %1038 : f32 to vector<1x4x16xf32>
    %1041 = arith.mulf %1040, %1039 : vector<1x4x16xf32>
    %1042 = arith.addf %1037, %1041 : vector<1x4x16xf32>
    %c96_272 = arith.constant 96 : index
    %1043 = memref.load %arg3[%c96_272] : memref<98xf32, #tpu.memory_space<smem>>
    %1044 = vector.extract_strided_slice %987 {offsets = [0, 5, 0], sizes = [1, 4, 16], strides = [1, 1, 1]} : vector<1x10x16xf32> to vector<1x4x16xf32>
    %1045 = vector.broadcast %1043 : f32 to vector<1x4x16xf32>
    %1046 = arith.mulf %1045, %1044 : vector<1x4x16xf32>
    %1047 = arith.addf %1042, %1046 : vector<1x4x16xf32>
    %c48_273 = arith.constant 48 : index
    %1048 = memref.load %arg3[%c48_273] : memref<98xf32, #tpu.memory_space<smem>>
    %1049 = vector.extract_strided_slice %986 {offsets = [0, 6, 0], sizes = [1, 4, 16], strides = [1, 1, 1]} : vector<1x10x16xf32> to vector<1x4x16xf32>
    %1050 = vector.broadcast %1048 : f32 to vector<1x4x16xf32>
    %1051 = arith.mulf %1050, %1049 : vector<1x4x16xf32>
    %1052 = arith.addf %1047, %1051 : vector<1x4x16xf32>
    %c97_274 = arith.constant 97 : index
    %1053 = memref.load %arg3[%c97_274] : memref<98xf32, #tpu.memory_space<smem>>
    %1054 = vector.extract_strided_slice %987 {offsets = [0, 6, 0], sizes = [1, 4, 16], strides = [1, 1, 1]} : vector<1x10x16xf32> to vector<1x4x16xf32>
    %1055 = vector.broadcast %1053 : f32 to vector<1x4x16xf32>
    %1056 = arith.mulf %1055, %1054 : vector<1x4x16xf32>
    %1057 = arith.addf %1052, %1056 : vector<1x4x16xf32>
    %c0_275 = arith.constant 0 : index
    %1058 = memref.load %arg4[%c0_275] : memref<1xf32, #tpu.memory_space<smem>>
    %1059 = vector.broadcast %1058 : f32 to vector<1x4x16xf32>
    %1060 = arith.addf %1057, %1059 : vector<1x4x16xf32>
    %1061 = arith.negf %1060 : vector<1x4x16xf32>
    %1062 = math.exp %1061 : vector<1x4x16xf32>
    %cst_276 = arith.constant 1.000000e+00 : f32
    %1063 = vector.broadcast %cst_276 : f32 to vector<1x4x16xf32>
    %1064 = arith.addf %1063, %1062 : vector<1x4x16xf32>
    %1065 = arith.divf %1063, %1064 : vector<1x4x16xf32>
    %c0_277 = arith.constant 0 : index
    %c0_278 = arith.constant 0 : index
    %c0_279 = arith.constant 0 : index
    %c0_280 = arith.constant 0 : index
    %1066 = vector.load %arg5[%c0_277, %c0_278, %c0_279, %c0_280] : memref<1x4x16x16xf32, #tpu.memory_space<vmem>>, vector<1x4x16x16xf32>
    %1067 = vector.shape_cast %552 : vector<1x4x16xf32> to vector<1x4x1x16xf32>
    %1068 = vector.broadcast %1067 : vector<1x4x1x16xf32> to vector<1x4x16x16xf32>
    %1069 = arith.mulf %1066, %1068 : vector<1x4x16x16xf32>
    %c0_281 = arith.constant 0 : index
    %c0_282 = arith.constant 0 : index
    %c0_283 = arith.constant 0 : index
    %c0_284 = arith.constant 0 : index
    %1070 = vector.load %arg6[%c0_281, %c0_282, %c0_283, %c0_284] : memref<1x4x16x16xf32, #tpu.memory_space<vmem>>, vector<1x4x16x16xf32>
    tpu.vector_store %arg6[%c0_281, %c0_282, %c0_283, %c0_284], %1069 {strides = array<i32>} : memref<1x4x16x16xf32, #tpu.memory_space<vmem>>, vector<1x4x16x16xf32>,
    %c0_285 = arith.constant 0 : index
    %c0_286 = arith.constant 0 : index
    %c0_287 = arith.constant 0 : index
    %c0_288 = arith.constant 0 : index
    %1071 = vector.load %arg5[%c0_285, %c0_286, %c0_287, %c0_288] : memref<1x4x16x16xf32, #tpu.memory_space<vmem>>, vector<1x4x16x16xf32>
    %1072 = vector.shape_cast %1065 : vector<1x4x16xf32> to vector<1x4x16x1xf32>
    %1073 = vector.broadcast %1072 : vector<1x4x16x1xf32> to vector<1x4x16x16xf32>
    %1074 = arith.mulf %1071, %1073 : vector<1x4x16x16xf32>
    %c0_289 = arith.constant 0 : index
    %c0_290 = arith.constant 0 : index
    %c0_291 = arith.constant 0 : index
    %c0_292 = arith.constant 0 : index
    %1075 = vector.load %arg7[%c0_289, %c0_290, %c0_291, %c0_292] : memref<1x4x16x16xf32, #tpu.memory_space<vmem>>, vector<1x4x16x16xf32>
    tpu.vector_store %arg7[%c0_289, %c0_290, %c0_291, %c0_292], %1074 {strides = array<i32>} : memref<1x4x16x16xf32, #tpu.memory_space<vmem>>, vector<1x4x16x16xf32>,
    return
  }
  func.func @transform_0(%arg0: i32) -> i32 {
    %c0_i32 = arith.constant 0 : i32
    %c0_i32_0 = arith.constant 0 : i32
    return %c0_i32 : i32
  }
  func.func @transform_1(%arg0: i32) -> i32 {
    %c0_i32 = arith.constant 0 : i32
    %c0_i32_0 = arith.constant 0 : i32
    return %c0_i32 : i32
  }
  func.func @transform_2(%arg0: i32) -> i32 {
    %c0_i32 = arith.constant 0 : i32
    %c0_i32_0 = arith.constant 0 : i32
    return %c0_i32 : i32
  }
  func.func @transform_3(%arg0: i32) -> i32 {
    %c0_i32 = arith.constant 0 : i32
    %c0_i32_0 = arith.constant 0 : i32
    return %c0_i32 : i32
  }
  func.func @transform_4(%arg0: i32) -> (i32, i32, i32, i32) {
    %c0_i32 = arith.constant 0 : i32
    %c0_i32_0 = arith.constant 0 : i32
    %c0_i32_1 = arith.constant 0 : i32
    %c0_i32_2 = arith.constant 0 : i32
    return %arg0, %c0_i32, %c0_i32_0, %c0_i32_1 : i32, i32, i32, i32
  }
  func.func @transform_5(%arg0: i32) -> (i32, i32, i32, i32) {
    %c0_i32 = arith.constant 0 : i32
    %c0_i32_0 = arith.constant 0 : i32
    %c0_i32_1 = arith.constant 0 : i32
    %c0_i32_2 = arith.constant 0 : i32
    return %arg0, %c0_i32, %c0_i32_0, %c0_i32_1 : i32, i32, i32, i32
  }
  func.func @transform_6(%arg0: i32) -> (i32, i32, i32, i32) {
    %c0_i32 = arith.constant 0 : i32
    %c0_i32_0 = arith.constant 0 : i32
    %c0_i32_1 = arith.constant 0 : i32
    %c0_i32_2 = arith.constant 0 : i32
    return %arg0, %c0_i32, %c0_i32_0, %c0_i32_1 : i32, i32, i32, i32
  }
}

</mosaic_0001>

<llo_original>
// kernel: triplet_attention.1
$region0: #{triplet_attention.1}
  #allocation0 [shape = 'u32[]', space=smem, size = 0x4, offset = 0x4, fixed_abs, tag = 'smem constant byte address 0x4 - core index']
  #allocation1 [shape = 'u32[144,128]{1,0:T(1,128)}', space=vmem, size = 0x12000, scoped, tag = 'internal scratch']
  #allocation2 [shape = 'f32[1,10,22]{2,1,0:T(8,128)}', space=vmem, size = 0x2000, scoped, tag = 'scratch operand']
  #allocation3 [shape = 'f32[1,10,22]{2,1,0:T(8,128)}', space=vmem, size = 0x2000, scoped, tag = 'scratch operand']
  #allocation4 [shape = 'f32[1,10,22]{2,1,0:T(8,128)}', space=vmem, size = 0x2000, scoped, tag = 'scratch operand']
  #allocation5 [shape = 'f32[1,10,22]{2,1,0:T(8,128)}', space=vmem, size = 0x2000, scoped, tag = 'scratch operand']
  #allocation6 [shape = 'f32[1]{0:T(128)S(6)}', space=smem, size = 0x200, scoped, tag = 'scoped memory for triplet_attention.1']
  #allocation7 [shape = 'f32[1]{0:T(128)S(6)}', space=smem, size = 0x200, scoped, tag = 'scoped memory for triplet_attention.1']
  %s0 = inlined_call_operand.vmem [shape: f32[98], index: 0, kind: input, shape index: {}]
  %s1 = inlined_call_operand.<no memory space> [shape: f32[1], index: 1, kind: input, shape index: {}]
  %s2 = inlined_call_operand.vmem [shape: f32[98], index: 2, kind: input, shape index: {}]
  %s3 = inlined_call_operand.<no memory space> [shape: f32[1], index: 3, kind: input, shape index: {}]
  %s4 = inlined_call_operand.vmem [shape: f32[2,4,16,16], index: 4, kind: input, shape index: {}]
  %s5 = inlined_call_operand.hbm [shape: f32[2,4,16,16], index: 5, kind: output, shape index: {0}]
  %s6 = inlined_call_operand.hbm [shape: f32[2,4,16,16], index: 6, kind: output, shape index: {1}]
  %7 = xla_tuple %s5, %s6
  %s8 = sld [smem:[#allocation0]]
  $region69: #{triplet_attention.1} parent=0
    _
  %s10 = ssub.s32 1, %s8
  %s11 = scalar_select 0, %s10, %s8
  %12 = sst [smem:[#allocation6]] %s1
  %13 = sst [smem:[#allocation7]] %s3
  $region1: #{triplet_attention.1} parent=0
    #allocation8 [shape = 'u8[512]{0}', space=smem, size = 0x200, scoped, tag = 'input window, operand 0, single buffered']
    #allocation9 [shape = 's32[2]{0}', space=sflag, size = 0x8, scoped, tag = 'scoped memory for triplet_attention.1']
    #allocation10 [shape = 's32[2]{0}', space=sflag, size = 0x8, scoped, tag = 'scoped memory for triplet_attention.1']
    #allocation11 [shape = 'u8[512]{0}', space=smem, size = 0x200, scoped, tag = 'input window, operand 2, single buffered']
    #allocation12 [shape = 's32[1]{0}', space=sflag, size = 0x4, scoped, tag = 'scoped memory for triplet_attention.1']
    #allocation13 [shape = 'u8[65536]{0}', space=vmem, size = 0x10000, scoped, tag = 'output window, operand 0']
    #allocation14 [shape = 'u8[65536]{0}', space=vmem, size = 0x10000, scoped, tag = 'output window, operand 1']
    #allocation15 [shape = 's32[2]{0}', space=sflag, size = 0x8, scoped, tag = 'scoped memory for triplet_attention.1']
    %14 = vsyncpa [#allocation10], 0
    %15 = vsyncpa [#allocation12], 0
    %16 = vsyncpa [#allocation9], 0
    %s17 = scalar_lea.sflag [#allocation9], 1
    %18 = vsyncpa %s17, 0
    %19 = vsyncpa [#allocation15], 0
    %s20 = scalar_lea.sflag [#allocation15], 1
    %21 = vsyncpa %s20, 0
    loop: start=0, step=1, limit=4
    $region2: #{triplet_attention.1} parent=1 // loop_pre_header
      _
    $region3: #{triplet_attention.1} parent=1 // loop_header
      %s23 = sphi 0, %s27
      %p24 = scmp.ge.s32.totalorder %s23, 4
      %s31 = sphi 0, %s31
      %s33 = sphi 0, %s31
      %s34 = sphi 0, %s33
      %s48 = sphi 0, %s34
      %s52 = sphi 0, %s52
      %s54 = sphi 0, %s52
      %s55 = sphi 0, %s54
      %s69 = sphi 0, %s55
      %s73 = sphi 0, %s73
      %s75 = sphi 0, %s73
      %s76 = sphi 0, %s75
      %s90 = sphi 0, %s76
      %s94 = sphi 0, %s94
      %s96 = sphi 0, %s94
      %s97 = sphi 0, %s96
      %s111 = sphi 0, %s97
      %s117 = sphi 0, %s119
      %s120 = sphi 0, %s117
      %s121 = sphi 0, %s120
      %s137 = sphi 0, %s121
      %s143 = sphi 0, %s145
      %s146 = sphi 0, %s143
      %s147 = sphi 0, %s146
      %s163 = sphi 0, %s147
      %s169 = sphi 0, %s171
      %s172 = sphi 0, %s169
      %s173 = sphi 0, %s172
      %s189 = sphi 0, %s173
    $region4: #{triplet_attention.1} parent=1 // loop_header_branch
      %26 = sbr.rel (%p24) target = $region8
    $region5: #{triplet_attention.1} parent=1 // loop_body
      %s28 = ssub.s32 %s23, 1
      %s29 = ssub.s32 %s23, 2
      %s30 = sadd.s32 %s23, 1
      %s32 = sadd.s32 %s31, 1
      %p35 = scmp.eq.s32.totalorder %s23, 1
      %p36 = scmp.ne.s32.totalorder %s31, %s33
      %p37 = scmp.eq.s32.totalorder %s23, 0
      %p38 = por %p36, %p37
      %p39 = scmp.ne.s32.totalorder %s31, %s33
      %p40 = scmp.eq.s32.totalorder %s28, 1
      %p41 = por %p39, %p40
      %p42 = scmp.ne.s32.totalorder %s33, %s34
      %p43 = scmp.eq.s32.totalorder %s28, 0
      %p44 = por %p42, %p43
      %p45 = scmp.ne.s32.totalorder %s33, %s34
      %p46 = scmp.eq.s32.totalorder %s29, 1
      %p47 = por %p45, %p46
      %p49 = scmp.ne.s32.totalorder %s34, %s48
      %p50 = scmp.eq.s32.totalorder %s29, 0
      %p51 = por %p49, %p50
      %s53 = sadd.s32 %s52, 1
      %p56 = scmp.eq.s32.totalorder %s23, 1
      %p57 = scmp.ne.s32.totalorder %s52, %s54
      %p58 = scmp.eq.s32.totalorder %s23, 0
      %p59 = por %p57, %p58
      %p60 = scmp.ne.s32.totalorder %s52, %s54
      %p61 = scmp.eq.s32.totalorder %s28, 1
      %p62 = por %p60, %p61
      %p63 = scmp.ne.s32.totalorder %s54, %s55
      %p64 = scmp.eq.s32.totalorder %s28, 0
      %p65 = por %p63, %p64
      %p66 = scmp.ne.s32.totalorder %s54, %s55
      %p67 = scmp.eq.s32.totalorder %s29, 1
      %p68 = por %p66, %p67
      %p70 = scmp.ne.s32.totalorder %s55, %s69
      %p71 = scmp.eq.s32.totalorder %s29, 0
      %p72 = por %p70, %p71
      %s74 = sadd.s32 %s73, 1
      %p77 = scmp.eq.s32.totalorder %s23, 1
      %p78 = scmp.ne.s32.totalorder %s73, %s75
      %p79 = scmp.eq.s32.totalorder %s23, 0
      %p80 = por %p78, %p79
      %p81 = scmp.ne.s32.totalorder %s73, %s75
      %p82 = scmp.eq.s32.totalorder %s28, 1
      %p83 = por %p81, %p82
      %p84 = scmp.ne.s32.totalorder %s75, %s76
      %p85 = scmp.eq.s32.totalorder %s28, 0
      %p86 = por %p84, %p85
      %p87 = scmp.ne.s32.totalorder %s75, %s76
      %p88 = scmp.eq.s32.totalorder %s29, 1
      %p89 = por %p87, %p88
      %p91 = scmp.ne.s32.totalorder %s76, %s90
      %p92 = scmp.eq.s32.totalorder %s29, 0
      %p93 = por %p91, %p92
      %s95 = sadd.s32 %s94, 1
      %p98 = scmp.eq.s32.totalorder %s23, 1
      %p99 = scmp.ne.s32.totalorder %s94, %s96
      %p100 = scmp.eq.s32.totalorder %s23, 0
      %p101 = por %p99, %p100
      %p102 = scmp.ne.s32.totalorder %s94, %s96
      %p103 = scmp.eq.s32.totalorder %s28, 1
      %p104 = por %p102, %p103
      %p105 = scmp.ne.s32.totalorder %s96, %s97
      %p106 = scmp.eq.s32.totalorder %s28, 0
      %p107 = por %p105, %p106
      %p108 = scmp.ne.s32.totalorder %s96, %s97
      %p109 = scmp.eq.s32.totalorder %s29, 1
      %p110 = por %p108, %p109
      %p112 = scmp.ne.s32.totalorder %s97, %s111
      %p113 = scmp.eq.s32.totalorder %s29, 0
      %p114 = por %p112, %p113
      %s115 = ssub.s32 %s23, %s30
      %p116 = scmp.eq.s32.totalorder %s115, 0
      %s118 = sadd.s32 %s117, 1
      %s119 = scalar_select %p116, %s117, %s118
      %p122 = pneg %p116
      %p123 = scmp.eq.s32.totalorder %s23, 1
      %p124 = por %p122, %p123
      %p125 = scmp.ne.s32.totalorder %s117, %s120
      %p126 = scmp.eq.s32.totalorder %s23, 0
      %p127 = por %p125, %p126
      %p128 = scmp.ne.s32.totalorder %s117, %s120
      %p129 = scmp.eq.s32.totalorder %s28, 1
      %p130 = por %p128, %p129
      %p131 = scmp.ne.s32.totalorder %s120, %s121
      %p132 = scmp.eq.s32.totalorder %s28, 0
      %p133 = por %p131, %p132
      %p134 = scmp.ne.s32.totalorder %s120, %s121
      %p135 = scmp.eq.s32.totalorder %s29, 1
      %p136 = por %p134, %p135
      %p138 = scmp.ne.s32.totalorder %s121, %s137
      %p139 = scmp.eq.s32.totalorder %s29, 0
      %p140 = por %p138, %p139
      %s141 = ssub.s32 %s23, %s30
      %p142 = scmp.eq.s32.totalorder %s141, 0
      %s144 = sadd.s32 %s143, 1
      %s145 = scalar_select %p142, %s143, %s144
      %p148 = pneg %p142
      %p149 = scmp.eq.s32.totalorder %s23, 1
      %p150 = por %p148, %p149
      %p151 = scmp.ne.s32.totalorder %s143, %s146
      %p152 = scmp.eq.s32.totalorder %s23, 0
      %p153 = por %p151, %p152
      %p154 = scmp.ne.s32.totalorder %s143, %s146
      %p155 = scmp.eq.s32.totalorder %s28, 1
      %p156 = por %p154, %p155
      %p157 = scmp.ne.s32.totalorder %s146, %s147
      %p158 = scmp.eq.s32.totalorder %s28, 0
      %p159 = por %p157, %p158
      %p160 = scmp.ne.s32.totalorder %s146, %s147
      %p161 = scmp.eq.s32.totalorder %s29, 1
      %p162 = por %p160, %p161
      %p164 = scmp.ne.s32.totalorder %s147, %s163
      %p165 = scmp.eq.s32.totalorder %s29, 0
      %p166 = por %p164, %p165
      %s167 = ssub.s32 %s23, %s30
      %p168 = scmp.eq.s32.totalorder %s167, 0
      %s170 = sadd.s32 %s169, 1
      %s171 = scalar_select %p168, %s169, %s170
      %p174 = pneg %p168
      %p175 = scmp.eq.s32.totalorder %s23, 1
      %p176 = por %p174, %p175
      %p177 = scmp.ne.s32.totalorder %s169, %s172
      %p178 = scmp.eq.s32.totalorder %s23, 0
      %p179 = por %p177, %p178
      %p180 = scmp.ne.s32.totalorder %s169, %s172
      %p181 = scmp.eq.s32.totalorder %s28, 1
      %p182 = por %p180, %p181
      %p183 = scmp.ne.s32.totalorder %s172, %s173
      %p184 = scmp.eq.s32.totalorder %s28, 0
      %p185 = por %p183, %p184
      %p186 = scmp.ne.s32.totalorder %s172, %s173
      %p187 = scmp.eq.s32.totalorder %s29, 1
      %p188 = por %p186, %p187
      %p190 = scmp.ne.s32.totalorder %s173, %s189
      %p191 = scmp.eq.s32.totalorder %s29, 0
      %p192 = por %p190, %p191
      %p193 = scmp.le.s32.totalorder 1, %s23
      %p194 = scmp.lt.s32.totalorder %s23, 3
      %p195 = pnand %p193, %p194
      %p196 = pneg %p195
      // Predicated region
      $region9: #{triplet_attention.1} parent=5 // pred_check
        _
      $region10: #{triplet_attention.1} parent=5 // pred_check_branch
        %198 = sbr.rel (%p195) target = $region12
      $region11: #{triplet_attention.1} parent=5 // pred_region
        %s199 = ssub.s32 %s23, 1
        // Predicated region
        $region13: #{triplet_attention.1} parent=11 // pred_check
          %p200 = pneg %p44
        $region14: #{triplet_attention.1} parent=11 // pred_check_branch
          %202 = sbr.rel (%p200) target = $region16
        $region15: #{triplet_attention.1} parent=11 // pred_region
          %s204 = ssub.s32 16, 16
          %205 = vsyncadd [#allocation10], %s204
          %s207 = sshll.u32 %s0, 4
          %s208 = int_to_ptr.vmem [resolvable:$true] %s207
          %210 = dma.vmem_to_smem %s208, 16, [#allocation8], [#allocation10]
        $region16: #{triplet_attention.1} parent=11 // pred_fallthru
          _
        // Predicated region
        $region17: #{triplet_attention.1} parent=11 // pred_check
          %p211 = pneg %p65
        $region18: #{triplet_attention.1} parent=11 // pred_check_branch
          %213 = sbr.rel (%p211) target = $region20
        $region19: #{triplet_attention.1} parent=11 // pred_region
          _
        $region20: #{triplet_attention.1} parent=11 // pred_fallthru
          _
        // Predicated region
        $region21: #{triplet_attention.1} parent=11 // pred_check
          %p214 = pneg %p86
        $region22: #{triplet_attention.1} parent=11 // pred_check_branch
          %216 = sbr.rel (%p214) target = $region24
        $region23: #{triplet_attention.1} parent=11 // pred_region
          %s218 = ssub.s32 16, 16
          %219 = vsyncadd [#allocation12], %s218
          %s221 = sshll.u32 %s2, 4
          %s222 = int_to_ptr.vmem [resolvable:$true] %s221
          %224 = dma.vmem_to_smem %s222, 16, [#allocation11], [#allocation12]
        $region24: #{triplet_attention.1} parent=11 // pred_fallthru
          _
        // Predicated region
        $region25: #{triplet_attention.1} parent=11 // pred_check
          %p225 = pneg %p107
        $region26: #{triplet_attention.1} parent=11 // pred_check_branch
          %227 = sbr.rel (%p225) target = $region28
        $region27: #{triplet_attention.1} parent=11 // pred_region
          _
        $region28: #{triplet_attention.1} parent=11 // pred_fallthru
          _
      $region12: #{triplet_attention.1} parent=5 // pred_fallthru
        _
      %p228 = scmp.lt.s32.totalorder %s23, 2
      // Predicated region
      $region29: #{triplet_attention.1} parent=5 // pred_check
        %p229 = pneg %p228
      $region30: #{triplet_attention.1} parent=5 // pred_check_branch
        %231 = sbr.rel (%p229) target = $region32
      $region31: #{triplet_attention.1} parent=5 // pred_region
        // Predicated region
        $region33: #{triplet_attention.1} parent=31 // pred_check
          %p232 = pneg %p127
        $region34: #{triplet_attention.1} parent=31 // pred_check_branch
          %234 = sbr.rel (%p232) target = $region36
        $region35: #{triplet_attention.1} parent=31 // pred_region
          %p235 = scmp.lt.s32.totalorder %s23, 1
          %s236 = scalar_select %p235, %s23, 1
          %s237 = smul.addr %s236, 8
          %s238 = smul.addr %s237, 8
          %s239 = scalar_lea.vmem %s4, %s238
        $region36: #{triplet_attention.1} parent=31 // pred_fallthru
          _
      $region32: #{triplet_attention.1} parent=5 // pred_fallthru
        _
      %p240 = scmp.le.s32.totalorder 1, %s23
      %p241 = scmp.lt.s32.totalorder %s23, 3
      %p242 = pnand %p240, %p241
      %p243 = pneg %p242
      // Predicated region
      $region37: #{triplet_attention.1} parent=5 // pred_check
        _
      $region38: #{triplet_attention.1} parent=5 // pred_check_branch
        %245 = sbr.rel (%p242) target = $region40
      $region39: #{triplet_attention.1} parent=5 // pred_region
        %s246 = ssub.s32 %s23, 1
        // Predicated region
        $region41: #{triplet_attention.1} parent=39 // pred_check
          %p247 = pneg %p44
        $region42: #{triplet_attention.1} parent=39 // pred_check_branch
          %249 = sbr.rel (%p247) target = $region44
        $region43: #{triplet_attention.1} parent=39 // pred_region
          %250 = dma.done [#allocation10], 16
        $region44: #{triplet_attention.1} parent=39 // pred_fallthru
          _
        // Predicated region
        $region45: #{triplet_attention.1} parent=39 // pred_check
          %p251 = pneg %p86
        $region46: #{triplet_attention.1} parent=39 // pred_check_branch
          %253 = sbr.rel (%p251) target = $region48
        $region47: #{triplet_attention.1} parent=39 // pred_region
          %254 = dma.done [#allocation12], 16
        $region48: #{triplet_attention.1} parent=39 // pred_fallthru
          _
        %255 = sfence
        %p256 = pneg %p44
        %p257 = pneg %p41
        %p258 = pneg %p65
        %p259 = pneg %p62
        %p260 = pneg %p86
        %p261 = pneg %p83
        %p262 = pneg %p107
        %p263 = pneg %p104
        %p264 = scmp.lt.s32.totalorder %s28, 1
        %s265 = scalar_select %p264, %s28, 1
        %s266 = smul.addr %s265, 8
        %s267 = smul.addr %s266, 8
        %s268 = scalar_lea.vmem %s4, %s267
        %p269 = pneg %p133
        %p270 = pneg %p130
        %p271 = pneg %p159
        %p272 = pneg %p156
        %s273 = sand.u32 %s146, 1
        %s274 = scalar_lea.sflag [#allocation9], %s273
        %s275 = sand.u32 %s146, 1
        %s276 = smul.addr %s275, 64
        %s277 = scalar_lea.vmem [#allocation13], %s276
        %p278 = pneg %p185
        %p279 = pneg %p182
        %s280 = sand.u32 %s172, 1
        %s281 = scalar_lea.sflag [#allocation15], %s280
        %s282 = sand.u32 %s172, 1
        %s283 = smul.addr %s282, 64
        %s284 = scalar_lea.vmem [#allocation14], %s283
        %p285 = scmp.lt.s32.totalorder %s28, 1
        %s286 = scalar_select %p285, %s28, 1
        %s287 = smul.addr %s286, 8
        %s288 = smul.addr %s287, 8
        %s289 = scalar_lea.vmem %s4, %s288
        %v290 = vld [vmem:[%s289] sm:$0xff]
        %v291 = vld [vmem:[%s289 + $0x8] sm:$0xff]
        %v292 = vld [vmem:[%s289 + $0x10] sm:$0xff]
        %v293 = vld [vmem:[%s289 + $0x18] sm:$0xff]
        %v294 = vld [vmem:[%s289 + $0x20] sm:$0xff]
        %v295 = vld [vmem:[%s289 + $0x28] sm:$0xff]
        %v296 = vld [vmem:[%s289 + $0x30] sm:$0xff]
        %v297 = vld [vmem:[%s289 + $0x38] sm:$0xff]
        %vm298 = vcmask 130048
        %v299 = vsel %vm298, %v290, -inf
        %v300 = vsel %vm298, %v291, -inf
        %v301 = vmax.f32 %v299, %v300
        %v302 = vrot.slane %v301, 4
        %v303 = vmax.f32 %v301, %v302
        %v304 = vrot.slane %v303, 2
        %v305 = vmax.f32 %v303, %v304
        %v306 = vrot.slane %v305, 1
        %v307 = vmax.f32 %v305, %v306
        %v308 = vsel %vm298, %v292, -inf
        %v309 = vsel %vm298, %v293, -inf
        %v310 = vmax.f32 %v308, %v309
        %v311 = vrot.slane %v310, 4
        %v312 = vmax.f32 %v310, %v311
        %v313 = vrot.slane %v312, 2
        %v314 = vmax.f32 %v312, %v313
        %v315 = vrot.slane %v314, 1
        %v316 = vmax.f32 %v314, %v315
        %v317 = vsel %vm298, %v294, -inf
        %v318 = vsel %vm298, %v295, -inf
        %v319 = vmax.f32 %v317, %v318
        %v320 = vrot.slane %v319, 4
        %v321 = vmax.f32 %v319, %v320
        %v322 = vrot.slane %v321, 2
        %v323 = vmax.f32 %v321, %v322
        %v324 = vrot.slane %v323, 1
        %v325 = vmax.f32 %v323, %v324
        %v326 = vsel %vm298, %v296, -inf
        %v327 = vsel %vm298, %v297, -inf
        %v328 = vmax.f32 %v326, %v327
        %v329 = vrot.slane %v328, 4
        %v330 = vmax.f32 %v328, %v329
        %v331 = vrot.slane %v330, 2
        %v332 = vmax.f32 %v330, %v331
        %v333 = vrot.slane %v332, 1
        %v334 = vmax.f32 %v332, %v333
        %vm335 = vcmask 174080
        %336 = vst.msk [vmem:[#allocation2] sm:$0x7] %vm335, 0.0
        %337 = vst.msk [vmem:[#allocation2 + $0x7] sm:$0x7] %vm335, 0.0
        %vm338 = vcmask 19456
        %339 = vst.msk [vmem:[#allocation2 + $0x3] sm:$0xf] %vm338, 0.0
        %vm340 = vcmask 175256
        %341 = vst.msk [vmem:[#allocation2 + $0x3] sm:$0xf] %vm340, 0.0
        %vm346 = vcmask 1041409
        %v347 = vsel %vm346, %v316, %v307
        %vm348 = vcmask 1042434
        %v349 = vsel %vm348, %v325, %v347
        %vm350 = vcmask 1043459
        %v351 = vsel %vm350, %v334, %v349
        %352 = vrot.lane.b32.xlu0 %v351, 3
        %v353 = vpop.permute.xlu0 %352
        %vm355 = vcmask 150552
        %356 = vst.msk [vmem:[#allocation2 + $0x3] sm:$0xf] %vm355, %v353
        %v357 = vld [vmem:[%s289] sm:$0xff]
        %v358 = vld [vmem:[%s289 + $0x8] sm:$0xff]
        %v359 = vld [vmem:[%s289 + $0x10] sm:$0xff]
        %v360 = vld [vmem:[%s289 + $0x18] sm:$0xff]
        %v361 = vld [vmem:[%s289 + $0x20] sm:$0xff]
        %v362 = vld [vmem:[%s289 + $0x28] sm:$0xff]
        %v363 = vld [vmem:[%s289 + $0x30] sm:$0xff]
        %v364 = vld [vmem:[%s289 + $0x38] sm:$0xff]
        %v365 = vsel %vm298, %v357, 0.0
        %v366 = vsel %vm298, %v358, 0.0
        %v367 = vadd.f32 %v365, %v366
        %v368 = vrot.slane %v367, 4
        %v369 = vadd.f32 %v367, %v368
        %v370 = vrot.slane %v369, 2
        %v371 = vadd.f32 %v369, %v370
        %v372 = vrot.slane %v371, 1
        %v373 = vadd.f32 %v371, %v372
        %v374 = vsel %vm298, %v359, 0.0
        %v375 = vsel %vm298, %v360, 0.0
        %v376 = vadd.f32 %v374, %v375
        %v377 = vrot.slane %v376, 4
        %v378 = vadd.f32 %v376, %v377
        %v379 = vrot.slane %v378, 2
        %v380 = vadd.f32 %v378, %v379
        %v381 = vrot.slane %v380, 1
        %v382 = vadd.f32 %v380, %v381
        %v383 = vsel %vm298, %v361, 0.0
        %v384 = vsel %vm298, %v362, 0.0
        %v385 = vadd.f32 %v383, %v384
        %v386 = vrot.slane %v385, 4
        %v387 = vadd.f32 %v385, %v386
        %v388 = vrot.slane %v387, 2
        %v389 = vadd.f32 %v387, %v388
        %v390 = vrot.slane %v389, 1
        %v391 = vadd.f32 %v389, %v390
        %v392 = vsel %vm298, %v363, 0.0
        %v393 = vsel %vm298, %v364, 0.0
        %v394 = vadd.f32 %v392, %v393
        %v395 = vrot.slane %v394, 4
        %v396 = vadd.f32 %v394, %v395
        %v397 = vrot.slane %v396, 2
        %v398 = vadd.f32 %v396, %v397
        %v399 = vrot.slane %v398, 1
        %v400 = vadd.f32 %v398, %v399
        %v401 = vmul.f32 %v373, 0.0625
        %v402 = vmul.f32 %v382, 0.0625
        %v403 = vmul.f32 %v391, 0.0625
        %v404 = vmul.f32 %v400, 0.0625
        %405 = vst.msk [vmem:[#allocation3] sm:$0x7] %vm335, 0.0
        %406 = vst.msk [vmem:[#allocation3 + $0x7] sm:$0x7] %vm335, 0.0
        %407 = vst.msk [vmem:[#allocation3 + $0x3] sm:$0xf] %vm338, 0.0
        %408 = vst.msk [vmem:[#allocation3 + $0x3] sm:$0xf] %vm340, 0.0
        %v413 = vsel %vm346, %v402, %v401
        %v414 = vsel %vm348, %v403, %v413
        %v415 = vsel %vm350, %v404, %v414
        %416 = vrot.lane.b32.xlu0 %v415, 3
        %v417 = vpop.permute.xlu0 %416
        %419 = vst.msk [vmem:[#allocation3 + $0x3] sm:$0xf] %vm355, %v417
        %v420 = vld [vmem:[%s289] sm:$0xff]
        %v421 = vld [vmem:[%s289 + $0x8] sm:$0xff]
        %v422 = vld [vmem:[%s289 + $0x10] sm:$0xff]
        %v423 = vld [vmem:[%s289 + $0x18] sm:$0xff]
        %v424 = vld [vmem:[%s289 + $0x20] sm:$0xff]
        %v425 = vld [vmem:[%s289 + $0x28] sm:$0xff]
        %v426 = vld [vmem:[%s289 + $0x30] sm:$0xff]
        %v427 = vld [vmem:[%s289 + $0x38] sm:$0xff]
        %v428 = vsel %vm298, %v420, -inf
        %429 = vmax.xlane.f32.xlu0 %v428
        %v430 = vpop.xlane.xlu0 %429
        %v431 = vsel %vm298, %v421, -inf
        %432 = vmax.xlane.f32.xlu0 %v431
        %v433 = vpop.xlane.xlu0 %432
        %v434 = vsel %vm298, %v422, -inf
        %435 = vmax.xlane.f32.xlu0 %v434
        %v436 = vpop.xlane.xlu0 %435
        %v437 = vsel %vm298, %v423, -inf
        %438 = vmax.xlane.f32.xlu0 %v437
        %v439 = vpop.xlane.xlu0 %438
        %v440 = vsel %vm298, %v424, -inf
        %441 = vmax.xlane.f32.xlu0 %v440
        %v442 = vpop.xlane.xlu0 %441
        %v443 = vsel %vm298, %v425, -inf
        %444 = vmax.xlane.f32.xlu0 %v443
        %v445 = vpop.xlane.xlu0 %444
        %v446 = vsel %vm298, %v426, -inf
        %447 = vmax.xlane.f32.xlu0 %v446
        %v448 = vpop.xlane.xlu0 %447
        %v449 = vsel %vm298, %v427, -inf
        %450 = vmax.xlane.f32.xlu0 %v449
        %v451 = vpop.xlane.xlu0 %450
        %452 = vst.msk [vmem:[#allocation4] sm:$0x7] %vm335, 0.0
        %453 = vst.msk [vmem:[#allocation4 + $0x7] sm:$0x7] %vm335, 0.0
        %454 = vst.msk [vmem:[#allocation4 + $0x3] sm:$0xf] %vm338, 0.0
        %455 = vst.msk [vmem:[#allocation4 + $0x3] sm:$0xf] %vm340, 0.0
        %v464 = vlaneseq
        %v465 = vand.u32 %v464, 127
        %v466 = vadd.s32 %v465, 4294967293
        %v467 = vlaneseq
        %v468 = vshrl.u32 %v467, 7
        %v469 = vsub.s32 %v466, %v468
        %v470 = vrot.slane %v430, %v469
        %v471 = vadd.s32 %v465, 4294967285
        %v472 = vlaneseq
        %v473 = vshrl.u32 %v472, 7
        %v474 = vsub.s32 %v471, %v473
        %v475 = vrot.slane %v433, %v474
        %vm476 = vcmask 154712
        %v477 = vsel %vm476, %v475, %v470
        %v478 = vlaneseq
        %v479 = vshrl.u32 %v478, 7
        %v480 = vsub.s32 %v466, %v479
        %v481 = vrot.slane %v436, %v480
        %v482 = vlaneseq
        %v483 = vshrl.u32 %v482, 7
        %v484 = vsub.s32 %v471, %v483
        %v485 = vrot.slane %v439, %v484
        %v486 = vsel %vm476, %v485, %v481
        %v487 = vlaneseq
        %v488 = vshrl.u32 %v487, 7
        %v489 = vsub.s32 %v466, %v488
        %v490 = vrot.slane %v442, %v489
        %v491 = vlaneseq
        %v492 = vshrl.u32 %v491, 7
        %v493 = vsub.s32 %v471, %v492
        %v494 = vrot.slane %v445, %v493
        %v495 = vsel %vm476, %v494, %v490
        %v496 = vlaneseq
        %v497 = vshrl.u32 %v496, 7
        %v498 = vsub.s32 %v466, %v497
        %v499 = vrot.slane %v448, %v498
        %v500 = vlaneseq
        %v501 = vshrl.u32 %v500, 7
        %v502 = vsub.s32 %v471, %v501
        %v503 = vrot.slane %v451, %v502
        %v504 = vsel %vm476, %v503, %v499
        %v505 = vsel %vm346, %v486, %v477
        %v506 = vsel %vm348, %v495, %v505
        %v507 = vsel %vm350, %v504, %v506
        %509 = vst.msk [vmem:[#allocation4 + $0x3] sm:$0xf] %vm355, %v507
        %v510 = vld [vmem:[%s289] sm:$0xff]
        %v511 = vld [vmem:[%s289 + $0x8] sm:$0xff]
        %v512 = vld [vmem:[%s289 + $0x10] sm:$0xff]
        %v513 = vld [vmem:[%s289 + $0x18] sm:$0xff]
        %v514 = vld [vmem:[%s289 + $0x20] sm:$0xff]
        %v515 = vld [vmem:[%s289 + $0x28] sm:$0xff]
        %v516 = vld [vmem:[%s289 + $0x30] sm:$0xff]
        %v517 = vld [vmem:[%s289 + $0x38] sm:$0xff]
        %v518 = vsel %vm298, %v510, 0.0
        %519 = vadd.xlane.f32.xlu0 %v518
        %v520 = vpop.xlane.xlu0 %519
        %v521 = vsel %vm298, %v511, 0.0
        %522 = vadd.xlane.f32.xlu0 %v521
        %v523 = vpop.xlane.xlu0 %522
        %v524 = vsel %vm298, %v512, 0.0
        %525 = vadd.xlane.f32.xlu0 %v524
        %v526 = vpop.xlane.xlu0 %525
        %v527 = vsel %vm298, %v513, 0.0
        %528 = vadd.xlane.f32.xlu0 %v527
        %v529 = vpop.xlane.xlu0 %528
        %v530 = vsel %vm298, %v514, 0.0
        %531 = vadd.xlane.f32.xlu0 %v530
        %v532 = vpop.xlane.xlu0 %531
        %v533 = vsel %vm298, %v515, 0.0
        %534 = vadd.xlane.f32.xlu0 %v533
        %v535 = vpop.xlane.xlu0 %534
        %v536 = vsel %vm298, %v516, 0.0
        %537 = vadd.xlane.f32.xlu0 %v536
        %v538 = vpop.xlane.xlu0 %537
        %v539 = vsel %vm298, %v517, 0.0
        %540 = vadd.xlane.f32.xlu0 %v539
        %v541 = vpop.xlane.xlu0 %540
        %v542 = vmul.f32 %v520, 0.0625
        %v543 = vmul.f32 %v523, 0.0625
        %v544 = vmul.f32 %v526, 0.0625
        %v545 = vmul.f32 %v529, 0.0625
        %v546 = vmul.f32 %v532, 0.0625
        %v547 = vmul.f32 %v535, 0.0625
        %v548 = vmul.f32 %v538, 0.0625
        %v549 = vmul.f32 %v541, 0.0625
        %550 = vst.msk [vmem:[#allocation5] sm:$0x7] %vm335, 0.0
        %551 = vst.msk [vmem:[#allocation5 + $0x7] sm:$0x7] %vm335, 0.0
        %552 = vst.msk [vmem:[#allocation5 + $0x3] sm:$0xf] %vm338, 0.0
        %553 = vst.msk [vmem:[#allocation5 + $0x3] sm:$0xf] %vm340, 0.0
        %v562 = vlaneseq
        %v563 = vshrl.u32 %v562, 7
        %v564 = vsub.s32 %v466, %v563
        %v565 = vrot.slane %v542, %v564
        %v566 = vlaneseq
        %v567 = vshrl.u32 %v566, 7
        %v568 = vsub.s32 %v471, %v567
        %v569 = vrot.slane %v543, %v568
        %v570 = vsel %vm476, %v569, %v565
        %v571 = vlaneseq
        %v572 = vshrl.u32 %v571, 7
        %v573 = vsub.s32 %v466, %v572
        %v574 = vrot.slane %v544, %v573
        %v575 = vlaneseq
        %v576 = vshrl.u32 %v575, 7
        %v577 = vsub.s32 %v471, %v576
        %v578 = vrot.slane %v545, %v577
        %v579 = vsel %vm476, %v578, %v574
        %v580 = vlaneseq
        %v581 = vshrl.u32 %v580, 7
        %v582 = vsub.s32 %v466, %v581
        %v583 = vrot.slane %v546, %v582
        %v584 = vlaneseq
        %v585 = vshrl.u32 %v584, 7
        %v586 = vsub.s32 %v471, %v585
        %v587 = vrot.slane %v547, %v586
        %v588 = vsel %vm476, %v587, %v583
        %v589 = vlaneseq
        %v590 = vshrl.u32 %v589, 7
        %v591 = vsub.s32 %v466, %v590
        %v592 = vrot.slane %v548, %v591
        %v593 = vlaneseq
        %v594 = vshrl.u32 %v593, 7
        %v595 = vsub.s32 %v471, %v594
        %v596 = vrot.slane %v549, %v595
        %v597 = vsel %vm476, %v596, %v592
        %v598 = vsel %vm346, %v579, %v570
        %v599 = vsel %vm348, %v588, %v598
        %v600 = vsel %vm350, %v597, %v599
        %602 = vst.msk [vmem:[#allocation5 + $0x3] sm:$0xf] %vm355, %v600
        %v603 = vld [vmem:[#allocation2] sm:$0xff]
        %v604 = vld [vmem:[#allocation2 + $0x8] sm:$0x3]
        %v605 = vld [vmem:[#allocation3] sm:$0xff]
        %v606 = vld [vmem:[#allocation3 + $0x8] sm:$0x3]
        %s607 = sld [smem:[#allocation8]]
        %v608 = vstv %s607
        %v609 = vmul.f32 %v608, %v603
        %v610 = vadd.f32 %v609, 0.0
        %s611 = sld [smem:[#allocation8 + $0x31]]
        %v612 = vstv %s611
        %v613 = vmul.f32 %v612, %v605
        %v614 = vadd.f32 %v610, %v613
        %s615 = sld [smem:[#allocation8 + $0x7]]
        %v616 = vstv %s615
        %v617 = vmul.f32 %v616, %v603
        %v619 = vrot.slane %v617, 1
        %v621 = vadd.f32 %v614, %v619
        %s622 = sld [smem:[#allocation8 + $0x38]]
        %v623 = vstv %s622
        %v624 = vmul.f32 %v623, %v605
        %v626 = vrot.slane %v624, 1
        %v628 = vadd.f32 %v621, %v626
        %s629 = sld [smem:[#allocation8 + $0xe]]
        %v630 = vstv %s629
        %v631 = vmul.f32 %v630, %v603
        %v633 = vrot.slane %v631, 2
        %v635 = vadd.f32 %v628, %v633
        %s636 = sld [smem:[#allocation8 + $0x3f]]
        %v637 = vstv %s636
        %v638 = vmul.f32 %v637, %v605
        %v640 = vrot.slane %v638, 2
        %v642 = vadd.f32 %v635, %v640
        %s643 = sld [smem:[#allocation8 + $0x15]]
        %v644 = vstv %s643
        %v645 = vmul.f32 %v644, %v603
        %v647 = vrot.slane %v645, 3
        %v649 = vadd.f32 %v642, %v647
        %s650 = sld [smem:[#allocation8 + $0x46]]
        %v651 = vstv %s650
        %v652 = vmul.f32 %v651, %v605
        %v654 = vrot.slane %v652, 3
        %v656 = vadd.f32 %v649, %v654
        %s657 = sld [smem:[#allocation8 + $0x1c]]
        %v658 = vstv %s657
        %v659 = vmul.f32 %v658, %v603
        %v661 = vrot.slane %v659, 4
        %v663 = vadd.f32 %v656, %v661
        %s664 = sld [smem:[#allocation8 + $0x4d]]
        %v665 = vstv %s664
        %v666 = vmul.f32 %v665, %v605
        %v668 = vrot.slane %v666, 4
        %v670 = vadd.f32 %v663, %v668
        %s671 = sld [smem:[#allocation8 + $0x23]]
        %v672 = vstv %s671
        %v673 = vmul.f32 %v672, %v603
        %v674 = vmul.f32 %v672, %v604
        %vm677 = vcmask 1042432
        %v678 = vrot.slane %v673, 5
        %v679 = vrot.slane %v674, 5
        %v680 = vsel %vm677, %v678, %v679
        %v682 = vadd.f32 %v670, %v680
        %s683 = sld [smem:[#allocation8 + $0x54]]
        %v684 = vstv %s683
        %v685 = vmul.f32 %v684, %v605
        %v686 = vmul.f32 %v684, %v606
        %v689 = vrot.slane %v685, 5
        %v690 = vrot.slane %v686, 5
        %v691 = vsel %vm677, %v689, %v690
        %v693 = vadd.f32 %v682, %v691
        %s694 = sld [smem:[#allocation8 + $0x2a]]
        %v695 = vstv %s694
        %v696 = vmul.f32 %v695, %v603
        %v697 = vmul.f32 %v695, %v604
        %vm700 = vcmask 1041408
        %v701 = vrot.slane %v696, 6
        %v702 = vrot.slane %v697, 6
        %v703 = vsel %vm700, %v701, %v702
        %v705 = vadd.f32 %v693, %v703
        %s706 = sld [smem:[#allocation8 + $0x5b]]
        %v707 = vstv %s706
        %v708 = vmul.f32 %v707, %v605
        %v709 = vmul.f32 %v707, %v606
        %v712 = vrot.slane %v708, 6
        %v713 = vrot.slane %v709, 6
        %v714 = vsel %vm700, %v712, %v713
        %v716 = vadd.f32 %v705, %v714
        %s717 = sld [smem:[#allocation8 + $0x1]]
        %v718 = vstv %s717
        %v719 = vmul.f32 %v718, %v603
        %721 = vrot.lane.b32.xlu0 %v719, 127
        %v722 = vpop.permute.xlu0 %721
        %v724 = vadd.f32 %v716, %v722
        %s725 = sld [smem:[#allocation8 + $0x32]]
        %v726 = vstv %s725
        %v727 = vmul.f32 %v726, %v605
        %729 = vrot.lane.b32.xlu0 %v727, 127
        %v730 = vpop.permute.xlu0 %729
        %v732 = vadd.f32 %v724, %v730
        %s733 = sld [smem:[#allocation8 + $0x8]]
        %v734 = vstv %s733
        %v735 = vmul.f32 %v734, %v603
        %v737 = vrot.slane %v735, 1
        %738 = vrot.lane.b32.xlu0 %v737, 127
        %v739 = vpop.permute.xlu0 %738
        %v741 = vadd.f32 %v732, %v739
        %s742 = sld [smem:[#allocation8 + $0x39]]
        %v743 = vstv %s742
        %v744 = vmul.f32 %v743, %v605
        %v746 = vrot.slane %v744, 1
        %747 = vrot.lane.b32.xlu0 %v746, 127
        %v748 = vpop.permute.xlu0 %747
        %v750 = vadd.f32 %v741, %v748
        %s751 = sld [smem:[#allocation8 + $0xf]]
        %v752 = vstv %s751
        %v753 = vmul.f32 %v752, %v603
        %v755 = vrot.slane %v753, 2
        %756 = vrot.lane.b32.xlu0 %v755, 127
        %v757 = vpop.permute.xlu0 %756
        %v759 = vadd.f32 %v750, %v757
        %s760 = sld [smem:[#allocation8 + $0x40]]
        %v761 = vstv %s760
        %v762 = vmul.f32 %v761, %v605
        %v764 = vrot.slane %v762, 2
        %765 = vrot.lane.b32.xlu0 %v764, 127
        %v766 = vpop.permute.xlu0 %765
        %v768 = vadd.f32 %v759, %v766
        %s769 = sld [smem:[#allocation8 + $0x16]]
        %v770 = vstv %s769
        %v771 = vmul.f32 %v770, %v603
        %v773 = vrot.slane %v771, 3
        %774 = vrot.lane.b32.xlu0 %v773, 127
        %v775 = vpop.permute.xlu0 %774
        %v777 = vadd.f32 %v768, %v775
        %s778 = sld [smem:[#allocation8 + $0x47]]
        %v779 = vstv %s778
        %v780 = vmul.f32 %v779, %v605
        %v782 = vrot.slane %v780, 3
        %783 = vrot.lane.b32.xlu0 %v782, 127
        %v784 = vpop.permute.xlu0 %783
        %v786 = vadd.f32 %v777, %v784
        %s787 = sld [smem:[#allocation8 + $0x1d]]
        %v788 = vstv %s787
        %v789 = vmul.f32 %v788, %v603
        %v791 = vrot.slane %v789, 4
        %792 = vrot.lane.b32.xlu0 %v791, 127
        %v793 = vpop.permute.xlu0 %792
        %v795 = vadd.f32 %v786, %v793
        %s796 = sld [smem:[#allocation8 + $0x4e]]
        %v797 = vstv %s796
        %v798 = vmul.f32 %v797, %v605
        %v800 = vrot.slane %v798, 4
        %801 = vrot.lane.b32.xlu0 %v800, 127
        %v802 = vpop.permute.xlu0 %801
        %v804 = vadd.f32 %v795, %v802
        %s805 = sld [smem:[#allocation8 + $0x24]]
        %v806 = vstv %s805
        %v807 = vmul.f32 %v806, %v603
        %v808 = vmul.f32 %v806, %v604
        %v811 = vrot.slane %v807, 5
        %v812 = vrot.slane %v808, 5
        %v813 = vsel %vm677, %v811, %v812
        %814 = vrot.lane.b32.xlu0 %v813, 127
        %v815 = vpop.permute.xlu0 %814
        %v817 = vadd.f32 %v804, %v815
        %s818 = sld [smem:[#allocation8 + $0x55]]
        %v819 = vstv %s818
        %v820 = vmul.f32 %v819, %v605
        %v821 = vmul.f32 %v819, %v606
        %v824 = vrot.slane %v820, 5
        %v825 = vrot.slane %v821, 5
        %v826 = vsel %vm677, %v824, %v825
        %827 = vrot.lane.b32.xlu0 %v826, 127
        %v828 = vpop.permute.xlu0 %827
        %v830 = vadd.f32 %v817, %v828
        %s831 = sld [smem:[#allocation8 + $0x2b]]
        %v832 = vstv %s831
        %v833 = vmul.f32 %v832, %v603
        %v834 = vmul.f32 %v832, %v604
        %v837 = vrot.slane %v833, 6
        %v838 = vrot.slane %v834, 6
        %v839 = vsel %vm700, %v837, %v838
        %840 = vrot.lane.b32.xlu0 %v839, 127
        %v841 = vpop.permute.xlu0 %840
        %v843 = vadd.f32 %v830, %v841
        %s844 = sld [smem:[#allocation8 + $0x5c]]
        %v845 = vstv %s844
        %v846 = vmul.f32 %v845, %v605
        %v847 = vmul.f32 %v845, %v606
        %v850 = vrot.slane %v846, 6
        %v851 = vrot.slane %v847, 6
        %v852 = vsel %vm700, %v850, %v851
        %853 = vrot.lane.b32.xlu0 %v852, 127
        %v854 = vpop.permute.xlu0 %853
        %v856 = vadd.f32 %v843, %v854
        %s857 = sld [smem:[#allocation8 + $0x2]]
        %v858 = vstv %s857
        %v859 = vmul.f32 %v858, %v603
        %861 = vrot.lane.b32.xlu0 %v859, 126
        %v862 = vpop.permute.xlu0 %861
        %v864 = vadd.f32 %v856, %v862
        %s865 = sld [smem:[#allocation8 + $0x33]]
        %v866 = vstv %s865
        %v867 = vmul.f32 %v866, %v605
        %869 = vrot.lane.b32.xlu0 %v867, 126
        %v870 = vpop.permute.xlu0 %869
        %v872 = vadd.f32 %v864, %v870
        %s873 = sld [smem:[#allocation8 + $0x9]]
        %v874 = vstv %s873
        %v875 = vmul.f32 %v874, %v603
        %v877 = vrot.slane %v875, 1
        %878 = vrot.lane.b32.xlu0 %v877, 126
        %v879 = vpop.permute.xlu0 %878
        %v881 = vadd.f32 %v872, %v879
        %s882 = sld [smem:[#allocation8 + $0x3a]]
        %v883 = vstv %s882
        %v884 = vmul.f32 %v883, %v605
        %v886 = vrot.slane %v884, 1
        %887 = vrot.lane.b32.xlu0 %v886, 126
        %v888 = vpop.permute.xlu0 %887
        %v890 = vadd.f32 %v881, %v888
        %s891 = sld [smem:[#allocation8 + $0x10]]
        %v892 = vstv %s891
        %v893 = vmul.f32 %v892, %v603
        %v895 = vrot.slane %v893, 2
        %896 = vrot.lane.b32.xlu0 %v895, 126
        %v897 = vpop.permute.xlu0 %896
        %v899 = vadd.f32 %v890, %v897
        %s900 = sld [smem:[#allocation8 + $0x41]]
        %v901 = vstv %s900
        %v902 = vmul.f32 %v901, %v605
        %v904 = vrot.slane %v902, 2
        %905 = vrot.lane.b32.xlu0 %v904, 126
        %v906 = vpop.permute.xlu0 %905
        %v908 = vadd.f32 %v899, %v906
        %s909 = sld [smem:[#allocation8 + $0x17]]
        %v910 = vstv %s909
        %v911 = vmul.f32 %v910, %v603
        %v913 = vrot.slane %v911, 3
        %914 = vrot.lane.b32.xlu0 %v913, 126
        %v915 = vpop.permute.xlu0 %914
        %v917 = vadd.f32 %v908, %v915
        %s918 = sld [smem:[#allocation8 + $0x48]]
        %v919 = vstv %s918
        %v920 = vmul.f32 %v919, %v605
        %v922 = vrot.slane %v920, 3
        %923 = vrot.lane.b32.xlu0 %v922, 126
        %v924 = vpop.permute.xlu0 %923
        %v926 = vadd.f32 %v917, %v924
        %s927 = sld [smem:[#allocation8 + $0x1e]]
        %v928 = vstv %s927
        %v929 = vmul.f32 %v928, %v603
        %v931 = vrot.slane %v929, 4
        %932 = vrot.lane.b32.xlu0 %v931, 126
        %v933 = vpop.permute.xlu0 %932
        %v935 = vadd.f32 %v926, %v933
        %s936 = sld [smem:[#allocation8 + $0x4f]]
        %v937 = vstv %s936
        %v938 = vmul.f32 %v937, %v605
        %v940 = vrot.slane %v938, 4
        %941 = vrot.lane.b32.xlu0 %v940, 126
        %v942 = vpop.permute.xlu0 %941
        %v944 = vadd.f32 %v935, %v942
        %s945 = sld [smem:[#allocation8 + $0x25]]
        %v946 = vstv %s945
        %v947 = vmul.f32 %v946, %v603
        %v948 = vmul.f32 %v946, %v604
        %v951 = vrot.slane %v947, 5
        %v952 = vrot.slane %v948, 5
        %v953 = vsel %vm677, %v951, %v952
        %954 = vrot.lane.b32.xlu0 %v953, 126
        %v955 = vpop.permute.xlu0 %954
        %v957 = vadd.f32 %v944, %v955
        %s958 = sld [smem:[#allocation8 + $0x56]]
        %v959 = vstv %s958
        %v960 = vmul.f32 %v959, %v605
        %v961 = vmul.f32 %v959, %v606
        %v964 = vrot.slane %v960, 5
        %v965 = vrot.slane %v961, 5
        %v966 = vsel %vm677, %v964, %v965
        %967 = vrot.lane.b32.xlu0 %v966, 126
        %v968 = vpop.permute.xlu0 %967
        %v970 = vadd.f32 %v957, %v968
        %s971 = sld [smem:[#allocation8 + $0x2c]]
        %v972 = vstv %s971
        %v973 = vmul.f32 %v972, %v603
        %v974 = vmul.f32 %v972, %v604
        %v977 = vrot.slane %v973, 6
        %v978 = vrot.slane %v974, 6
        %v979 = vsel %vm700, %v977, %v978
        %980 = vrot.lane.b32.xlu0 %v979, 126
        %v981 = vpop.permute.xlu0 %980
        %v983 = vadd.f32 %v970, %v981
        %s984 = sld [smem:[#allocation8 + $0x5d]]
        %v985 = vstv %s984
        %v986 = vmul.f32 %v985, %v605
        %v987 = vmul.f32 %v985, %v606
        %v990 = vrot.slane %v986, 6
        %v991 = vrot.slane %v987, 6
        %v992 = vsel %vm700, %v990, %v991
        %993 = vrot.lane.b32.xlu0 %v992, 126
        %v994 = vpop.permute.xlu0 %993
        %v996 = vadd.f32 %v983, %v994
        %s997 = sld [smem:[#allocation8 + $0x3]]
        %v998 = vstv %s997
        %v999 = vmul.f32 %v998, %v603
        %1001 = vrot.lane.b32.xlu0 %v999, 125
        %v1002 = vpop.permute.xlu0 %1001
        %v1004 = vadd.f32 %v996, %v1002
        %s1005 = sld [smem:[#allocation8 + $0x34]]
        %v1006 = vstv %s1005
        %v1007 = vmul.f32 %v1006, %v605
        %1009 = vrot.lane.b32.xlu0 %v1007, 125
        %v1010 = vpop.permute.xlu0 %1009
        %v1012 = vadd.f32 %v1004, %v1010
        %s1013 = sld [smem:[#allocation8 + $0xa]]
        %v1014 = vstv %s1013
        %v1015 = vmul.f32 %v1014, %v603
        %v1017 = vrot.slane %v1015, 1
        %1018 = vrot.lane.b32.xlu0 %v1017, 125
        %v1019 = vpop.permute.xlu0 %1018
        %v1021 = vadd.f32 %v1012, %v1019
        %s1022 = sld [smem:[#allocation8 + $0x3b]]
        %v1023 = vstv %s1022
        %v1024 = vmul.f32 %v1023, %v605
        %v1026 = vrot.slane %v1024, 1
        %1027 = vrot.lane.b32.xlu0 %v1026, 125
        %v1028 = vpop.permute.xlu0 %1027
        %v1030 = vadd.f32 %v1021, %v1028
        %s1031 = sld [smem:[#allocation8 + $0x11]]
        %v1032 = vstv %s1031
        %v1033 = vmul.f32 %v1032, %v603
        %v1035 = vrot.slane %v1033, 2
        %1036 = vrot.lane.b32.xlu0 %v1035, 125
        %v1037 = vpop.permute.xlu0 %1036
        %v1039 = vadd.f32 %v1030, %v1037
        %s1040 = sld [smem:[#allocation8 + $0x42]]
        %v1041 = vstv %s1040
        %v1042 = vmul.f32 %v1041, %v605
        %v1044 = vrot.slane %v1042, 2
        %1045 = vrot.lane.b32.xlu0 %v1044, 125
        %v1046 = vpop.permute.xlu0 %1045
        %v1048 = vadd.f32 %v1039, %v1046
        %s1049 = sld [smem:[#allocation8 + $0x18]]
        %v1050 = vstv %s1049
        %v1051 = vmul.f32 %v1050, %v603
        %v1053 = vrot.slane %v1051, 3
        %1054 = vrot.lane.b32.xlu0 %v1053, 125
        %v1055 = vpop.permute.xlu0 %1054
        %v1057 = vadd.f32 %v1048, %v1055
        %s1058 = sld [smem:[#allocation8 + $0x49]]
        %v1059 = vstv %s1058
        %v1060 = vmul.f32 %v1059, %v605
        %v1062 = vrot.slane %v1060, 3
        %1063 = vrot.lane.b32.xlu0 %v1062, 125
        %v1064 = vpop.permute.xlu0 %1063
        %v1066 = vadd.f32 %v1057, %v1064
        %s1067 = sld [smem:[#allocation8 + $0x1f]]
        %v1068 = vstv %s1067
        %v1069 = vmul.f32 %v1068, %v603
        %v1071 = vrot.slane %v1069, 4
        %1072 = vrot.lane.b32.xlu0 %v1071, 125
        %v1073 = vpop.permute.xlu0 %1072
        %v1075 = vadd.f32 %v1066, %v1073
        %s1076 = sld [smem:[#allocation8 + $0x50]]
        %v1077 = vstv %s1076
        %v1078 = vmul.f32 %v1077, %v605
        %v1080 = vrot.slane %v1078, 4
        %1081 = vrot.lane.b32.xlu0 %v1080, 125
        %v1082 = vpop.permute.xlu0 %1081
        %v1084 = vadd.f32 %v1075, %v1082
        %s1085 = sld [smem:[#allocation8 + $0x26]]
        %v1086 = vstv %s1085
        %v1087 = vmul.f32 %v1086, %v603
        %v1088 = vmul.f32 %v1086, %v604
        %v1091 = vrot.slane %v1087, 5
        %v1092 = vrot.slane %v1088, 5
        %v1093 = vsel %vm677, %v1091, %v1092
        %1094 = vrot.lane.b32.xlu0 %v1093, 125
        %v1095 = vpop.permute.xlu0 %1094
        %v1097 = vadd.f32 %v1084, %v1095
        %s1098 = sld [smem:[#allocation8 + $0x57]]
        %v1099 = vstv %s1098
        %v1100 = vmul.f32 %v1099, %v605
        %v1101 = vmul.f32 %v1099, %v606
        %v1104 = vrot.slane %v1100, 5
        %v1105 = vrot.slane %v1101, 5
        %v1106 = vsel %vm677, %v1104, %v1105
        %1107 = vrot.lane.b32.xlu0 %v1106, 125
        %v1108 = vpop.permute.xlu0 %1107
        %v1110 = vadd.f32 %v1097, %v1108
        %s1111 = sld [smem:[#allocation8 + $0x2d]]
        %v1112 = vstv %s1111
        %v1113 = vmul.f32 %v1112, %v603
        %v1114 = vmul.f32 %v1112, %v604
        %v1117 = vrot.slane %v1113, 6
        %v1118 = vrot.slane %v1114, 6
        %v1119 = vsel %vm700, %v1117, %v1118
        %1120 = vrot.lane.b32.xlu0 %v1119, 125
        %v1121 = vpop.permute.xlu0 %1120
        %v1123 = vadd.f32 %v1110, %v1121
        %s1124 = sld [smem:[#allocation8 + $0x5e]]
        %v1125 = vstv %s1124
        %v1126 = vmul.f32 %v1125, %v605
        %v1127 = vmul.f32 %v1125, %v606
        %v1130 = vrot.slane %v1126, 6
        %v1131 = vrot.slane %v1127, 6
        %v1132 = vsel %vm700, %v1130, %v1131
        %1133 = vrot.lane.b32.xlu0 %v1132, 125
        %v1134 = vpop.permute.xlu0 %1133
        %v1136 = vadd.f32 %v1123, %v1134
        %s1137 = sld [smem:[#allocation8 + $0x4]]
        %v1138 = vstv %s1137
        %v1139 = vmul.f32 %v1138, %v603
        %1141 = vrot.lane.b32.xlu0 %v1139, 124
        %v1142 = vpop.permute.xlu0 %1141
        %v1144 = vadd.f32 %v1136, %v1142
        %s1145 = sld [smem:[#allocation8 + $0x35]]
        %v1146 = vstv %s1145
        %v1147 = vmul.f32 %v1146, %v605
        %1149 = vrot.lane.b32.xlu0 %v1147, 124
        %v1150 = vpop.permute.xlu0 %1149
        %v1152 = vadd.f32 %v1144, %v1150
        %s1153 = sld [smem:[#allocation8 + $0xb]]
        %v1154 = vstv %s1153
        %v1155 = vmul.f32 %v1154, %v603
        %v1157 = vrot.slane %v1155, 1
        %1158 = vrot.lane.b32.xlu0 %v1157, 124
        %v1159 = vpop.permute.xlu0 %1158
        %v1161 = vadd.f32 %v1152, %v1159
        %s1162 = sld [smem:[#allocation8 + $0x3c]]
        %v1163 = vstv %s1162
        %v1164 = vmul.f32 %v1163, %v605
        %v1166 = vrot.slane %v1164, 1
        %1167 = vrot.lane.b32.xlu0 %v1166, 124
        %v1168 = vpop.permute.xlu0 %1167
        %v1170 = vadd.f32 %v1161, %v1168
        %s1171 = sld [smem:[#allocation8 + $0x12]]
        %v1172 = vstv %s1171
        %v1173 = vmul.f32 %v1172, %v603
        %v1175 = vrot.slane %v1173, 2
        %1176 = vrot.lane.b32.xlu0 %v1175, 124
        %v1177 = vpop.permute.xlu0 %1176
        %v1179 = vadd.f32 %v1170, %v1177
        %s1180 = sld [smem:[#allocation8 + $0x43]]
        %v1181 = vstv %s1180
        %v1182 = vmul.f32 %v1181, %v605
        %v1184 = vrot.slane %v1182, 2
        %1185 = vrot.lane.b32.xlu0 %v1184, 124
        %v1186 = vpop.permute.xlu0 %1185
        %v1188 = vadd.f32 %v1179, %v1186
        %s1189 = sld [smem:[#allocation8 + $0x19]]
        %v1190 = vstv %s1189
        %v1191 = vmul.f32 %v1190, %v603
        %v1193 = vrot.slane %v1191, 3
        %1194 = vrot.lane.b32.xlu0 %v1193, 124
        %v1195 = vpop.permute.xlu0 %1194
        %v1197 = vadd.f32 %v1188, %v1195
        %s1198 = sld [smem:[#allocation8 + $0x4a]]
        %v1199 = vstv %s1198
        %v1200 = vmul.f32 %v1199, %v605
        %v1202 = vrot.slane %v1200, 3
        %1203 = vrot.lane.b32.xlu0 %v1202, 124
        %v1204 = vpop.permute.xlu0 %1203
        %v1206 = vadd.f32 %v1197, %v1204
        %s1207 = sld [smem:[#allocation8 + $0x20]]
        %v1208 = vstv %s1207
        %v1209 = vmul.f32 %v1208, %v603
        %v1211 = vrot.slane %v1209, 4
        %1212 = vrot.lane.b32.xlu0 %v1211, 124
        %v1213 = vpop.permute.xlu0 %1212
        %v1215 = vadd.f32 %v1206, %v1213
        %s1216 = sld [smem:[#allocation8 + $0x51]]
        %v1217 = vstv %s1216
        %v1218 = vmul.f32 %v1217, %v605
        %v1220 = vrot.slane %v1218, 4
        %1221 = vrot.lane.b32.xlu0 %v1220, 124
        %v1222 = vpop.permute.xlu0 %1221
        %v1224 = vadd.f32 %v1215, %v1222
        %s1225 = sld [smem:[#allocation8 + $0x27]]
        %v1226 = vstv %s1225
        %v1227 = vmul.f32 %v1226, %v603
        %v1228 = vmul.f32 %v1226, %v604
        %v1231 = vrot.slane %v1227, 5
        %v1232 = vrot.slane %v1228, 5
        %v1233 = vsel %vm677, %v1231, %v1232
        %1234 = vrot.lane.b32.xlu0 %v1233, 124
        %v1235 = vpop.permute.xlu0 %1234
        %v1237 = vadd.f32 %v1224, %v1235
        %s1238 = sld [smem:[#allocation8 + $0x58]]
        %v1239 = vstv %s1238
        %v1240 = vmul.f32 %v1239, %v605
        %v1241 = vmul.f32 %v1239, %v606
        %v1244 = vrot.slane %v1240, 5
        %v1245 = vrot.slane %v1241, 5
        %v1246 = vsel %vm677, %v1244, %v1245
        %1247 = vrot.lane.b32.xlu0 %v1246, 124
        %v1248 = vpop.permute.xlu0 %1247
        %v1250 = vadd.f32 %v1237, %v1248
        %s1251 = sld [smem:[#allocation8 + $0x2e]]
        %v1252 = vstv %s1251
        %v1253 = vmul.f32 %v1252, %v603
        %v1254 = vmul.f32 %v1252, %v604
        %v1257 = vrot.slane %v1253, 6
        %v1258 = vrot.slane %v1254, 6
        %v1259 = vsel %vm700, %v1257, %v1258
        %1260 = vrot.lane.b32.xlu0 %v1259, 124
        %v1261 = vpop.permute.xlu0 %1260
        %v1263 = vadd.f32 %v1250, %v1261
        %s1264 = sld [smem:[#allocation8 + $0x5f]]
        %v1265 = vstv %s1264
        %v1266 = vmul.f32 %v1265, %v605
        %v1267 = vmul.f32 %v1265, %v606
        %v1270 = vrot.slane %v1266, 6
        %v1271 = vrot.slane %v1267, 6
        %v1272 = vsel %vm700, %v1270, %v1271
        %1273 = vrot.lane.b32.xlu0 %v1272, 124
        %v1274 = vpop.permute.xlu0 %1273
        %v1276 = vadd.f32 %v1263, %v1274
        %s1277 = sld [smem:[#allocation8 + $0x5]]
        %v1278 = vstv %s1277
        %v1279 = vmul.f32 %v1278, %v603
        %1281 = vrot.lane.b32.xlu0 %v1279, 123
        %v1282 = vpop.permute.xlu0 %1281
        %v1284 = vadd.f32 %v1276, %v1282
        %s1285 = sld [smem:[#allocation8 + $0x36]]
        %v1286 = vstv %s1285
        %v1287 = vmul.f32 %v1286, %v605
        %1289 = vrot.lane.b32.xlu0 %v1287, 123
        %v1290 = vpop.permute.xlu0 %1289
        %v1292 = vadd.f32 %v1284, %v1290
        %s1293 = sld [smem:[#allocation8 + $0xc]]
        %v1294 = vstv %s1293
        %v1295 = vmul.f32 %v1294, %v603
        %v1297 = vrot.slane %v1295, 1
        %1298 = vrot.lane.b32.xlu0 %v1297, 123
        %v1299 = vpop.permute.xlu0 %1298
        %v1301 = vadd.f32 %v1292, %v1299
        %s1302 = sld [smem:[#allocation8 + $0x3d]]
        %v1303 = vstv %s1302
        %v1304 = vmul.f32 %v1303, %v605
        %v1306 = vrot.slane %v1304, 1
        %1307 = vrot.lane.b32.xlu0 %v1306, 123
        %v1308 = vpop.permute.xlu0 %1307
        %v1310 = vadd.f32 %v1301, %v1308
        %s1311 = sld [smem:[#allocation8 + $0x13]]
        %v1312 = vstv %s1311
        %v1313 = vmul.f32 %v1312, %v603
        %v1315 = vrot.slane %v1313, 2
        %1316 = vrot.lane.b32.xlu0 %v1315, 123
        %v1317 = vpop.permute.xlu0 %1316
        %v1319 = vadd.f32 %v1310, %v1317
        %s1320 = sld [smem:[#allocation8 + $0x44]]
        %v1321 = vstv %s1320
        %v1322 = vmul.f32 %v1321, %v605
        %v1324 = vrot.slane %v1322, 2
        %1325 = vrot.lane.b32.xlu0 %v1324, 123
        %v1326 = vpop.permute.xlu0 %1325
        %v1328 = vadd.f32 %v1319, %v1326
        %s1329 = sld [smem:[#allocation8 + $0x1a]]
        %v1330 = vstv %s1329
        %v1331 = vmul.f32 %v1330, %v603
        %v1333 = vrot.slane %v1331, 3
        %1334 = vrot.lane.b32.xlu0 %v1333, 123
        %v1335 = vpop.permute.xlu0 %1334
        %v1337 = vadd.f32 %v1328, %v1335
        %s1338 = sld [smem:[#allocation8 + $0x4b]]
        %v1339 = vstv %s1338
        %v1340 = vmul.f32 %v1339, %v605
        %v1342 = vrot.slane %v1340, 3
        %1343 = vrot.lane.b32.xlu0 %v1342, 123
        %v1344 = vpop.permute.xlu0 %1343
        %v1346 = vadd.f32 %v1337, %v1344
        %s1347 = sld [smem:[#allocation8 + $0x21]]
        %v1348 = vstv %s1347
        %v1349 = vmul.f32 %v1348, %v603
        %v1351 = vrot.slane %v1349, 4
        %1352 = vrot.lane.b32.xlu0 %v1351, 123
        %v1353 = vpop.permute.xlu0 %1352
        %v1355 = vadd.f32 %v1346, %v1353
        %s1356 = sld [smem:[#allocation8 + $0x52]]
        %v1357 = vstv %s1356
        %v1358 = vmul.f32 %v1357, %v605
        %v1360 = vrot.slane %v1358, 4
        %1361 = vrot.lane.b32.xlu0 %v1360, 123
        %v1362 = vpop.permute.xlu0 %1361
        %v1364 = vadd.f32 %v1355, %v1362
        %s1365 = sld [smem:[#allocation8 + $0x28]]
        %v1366 = vstv %s1365
        %v1367 = vmul.f32 %v1366, %v603
        %v1368 = vmul.f32 %v1366, %v604
        %v1371 = vrot.slane %v1367, 5
        %v1372 = vrot.slane %v1368, 5
        %v1373 = vsel %vm677, %v1371, %v1372
        %1374 = vrot.lane.b32.xlu0 %v1373, 123
        %v1375 = vpop.permute.xlu0 %1374
        %v1377 = vadd.f32 %v1364, %v1375
        %s1378 = sld [smem:[#allocation8 + $0x59]]
        %v1379 = vstv %s1378
        %v1380 = vmul.f32 %v1379, %v605
        %v1381 = vmul.f32 %v1379, %v606
        %v1384 = vrot.slane %v1380, 5
        %v1385 = vrot.slane %v1381, 5
        %v1386 = vsel %vm677, %v1384, %v1385
        %1387 = vrot.lane.b32.xlu0 %v1386, 123
        %v1388 = vpop.permute.xlu0 %1387
        %v1390 = vadd.f32 %v1377, %v1388
        %s1391 = sld [smem:[#allocation8 + $0x2f]]
        %v1392 = vstv %s1391
        %v1393 = vmul.f32 %v1392, %v603
        %v1394 = vmul.f32 %v1392, %v604
        %v1397 = vrot.slane %v1393, 6
        %v1398 = vrot.slane %v1394, 6
        %v1399 = vsel %vm700, %v1397, %v1398
        %1400 = vrot.lane.b32.xlu0 %v1399, 123
        %v1401 = vpop.permute.xlu0 %1400
        %v1403 = vadd.f32 %v1390, %v1401
        %s1404 = sld [smem:[#allocation8 + $0x60]]
        %v1405 = vstv %s1404
        %v1406 = vmul.f32 %v1405, %v605
        %v1407 = vmul.f32 %v1405, %v606
        %v1410 = vrot.slane %v1406, 6
        %v1411 = vrot.slane %v1407, 6
        %v1412 = vsel %vm700, %v1410, %v1411
        %1413 = vrot.lane.b32.xlu0 %v1412, 123
        %v1414 = vpop.permute.xlu0 %1413
        %v1416 = vadd.f32 %v1403, %v1414
        %s1417 = sld [smem:[#allocation8 + $0x6]]
        %v1418 = vstv %s1417
        %v1419 = vmul.f32 %v1418, %v603
        %1421 = vrot.lane.b32.xlu0 %v1419, 122
        %v1422 = vpop.permute.xlu0 %1421
        %v1424 = vadd.f32 %v1416, %v1422
        %s1425 = sld [smem:[#allocation8 + $0x37]]
        %v1426 = vstv %s1425
        %v1427 = vmul.f32 %v1426, %v605
        %1429 = vrot.lane.b32.xlu0 %v1427, 122
        %v1430 = vpop.permute.xlu0 %1429
        %v1432 = vadd.f32 %v1424, %v1430
        %s1433 = sld [smem:[#allocation8 + $0xd]]
        %v1434 = vstv %s1433
        %v1435 = vmul.f32 %v1434, %v603
        %v1437 = vrot.slane %v1435, 1
        %1438 = vrot.lane.b32.xlu0 %v1437, 122
        %v1439 = vpop.permute.xlu0 %1438
        %v1441 = vadd.f32 %v1432, %v1439
        %s1442 = sld [smem:[#allocation8 + $0x3e]]
        %v1443 = vstv %s1442
        %v1444 = vmul.f32 %v1443, %v605
        %v1446 = vrot.slane %v1444, 1
        %1447 = vrot.lane.b32.xlu0 %v1446, 122
        %v1448 = vpop.permute.xlu0 %1447
        %v1450 = vadd.f32 %v1441, %v1448
        %s1451 = sld [smem:[#allocation8 + $0x14]]
        %v1452 = vstv %s1451
        %v1453 = vmul.f32 %v1452, %v603
        %v1455 = vrot.slane %v1453, 2
        %1456 = vrot.lane.b32.xlu0 %v1455, 122
        %v1457 = vpop.permute.xlu0 %1456
        %v1459 = vadd.f32 %v1450, %v1457
        %s1460 = sld [smem:[#allocation8 + $0x45]]
        %v1461 = vstv %s1460
        %v1462 = vmul.f32 %v1461, %v605
        %v1464 = vrot.slane %v1462, 2
        %1465 = vrot.lane.b32.xlu0 %v1464, 122
        %v1466 = vpop.permute.xlu0 %1465
        %v1468 = vadd.f32 %v1459, %v1466
        %s1469 = sld [smem:[#allocation8 + $0x1b]]
        %v1470 = vstv %s1469
        %v1471 = vmul.f32 %v1470, %v603
        %v1473 = vrot.slane %v1471, 3
        %1474 = vrot.lane.b32.xlu0 %v1473, 122
        %v1475 = vpop.permute.xlu0 %1474
        %v1477 = vadd.f32 %v1468, %v1475
        %s1478 = sld [smem:[#allocation8 + $0x4c]]
        %v1479 = vstv %s1478
        %v1480 = vmul.f32 %v1479, %v605
        %v1482 = vrot.slane %v1480, 3
        %1483 = vrot.lane.b32.xlu0 %v1482, 122
        %v1484 = vpop.permute.xlu0 %1483
        %v1486 = vadd.f32 %v1477, %v1484
        %s1487 = sld [smem:[#allocation8 + $0x22]]
        %v1488 = vstv %s1487
        %v1489 = vmul.f32 %v1488, %v603
        %v1491 = vrot.slane %v1489, 4
        %1492 = vrot.lane.b32.xlu0 %v1491, 122
        %v1493 = vpop.permute.xlu0 %1492
        %v1495 = vadd.f32 %v1486, %v1493
        %s1496 = sld [smem:[#allocation8 + $0x53]]
        %v1497 = vstv %s1496
        %v1498 = vmul.f32 %v1497, %v605
        %v1500 = vrot.slane %v1498, 4
        %1501 = vrot.lane.b32.xlu0 %v1500, 122
        %v1502 = vpop.permute.xlu0 %1501
        %v1504 = vadd.f32 %v1495, %v1502
        %s1505 = sld [smem:[#allocation8 + $0x29]]
        %v1506 = vstv %s1505
        %v1507 = vmul.f32 %v1506, %v603
        %v1508 = vmul.f32 %v1506, %v604
        %v1511 = vrot.slane %v1507, 5
        %v1512 = vrot.slane %v1508, 5
        %v1513 = vsel %vm677, %v1511, %v1512
        %1514 = vrot.lane.b32.xlu0 %v1513, 122
        %v1515 = vpop.permute.xlu0 %1514
        %v1517 = vadd.f32 %v1504, %v1515
        %s1518 = sld [smem:[#allocation8 + $0x5a]]
        %v1519 = vstv %s1518
        %v1520 = vmul.f32 %v1519, %v605
        %v1521 = vmul.f32 %v1519, %v606
        %v1524 = vrot.slane %v1520, 5
        %v1525 = vrot.slane %v1521, 5
        %v1526 = vsel %vm677, %v1524, %v1525
        %1527 = vrot.lane.b32.xlu0 %v1526, 122
        %v1528 = vpop.permute.xlu0 %1527
        %v1530 = vadd.f32 %v1517, %v1528
        %s1531 = sld [smem:[#allocation8 + $0x30]]
        %v1532 = vstv %s1531
        %v1533 = vmul.f32 %v1532, %v603
        %v1534 = vmul.f32 %v1532, %v604
        %v1537 = vrot.slane %v1533, 6
        %v1538 = vrot.slane %v1534, 6
        %v1539 = vsel %vm700, %v1537, %v1538
        %1540 = vrot.lane.b32.xlu0 %v1539, 122
        %v1541 = vpop.permute.xlu0 %1540
        %v1543 = vadd.f32 %v1530, %v1541
        %s1544 = sld [smem:[#allocation8 + $0x61]]
        %v1545 = vstv %s1544
        %v1546 = vmul.f32 %v1545, %v605
        %v1547 = vmul.f32 %v1545, %v606
        %v1550 = vrot.slane %v1546, 6
        %v1551 = vrot.slane %v1547, 6
        %v1552 = vsel %vm700, %v1550, %v1551
        %1553 = vrot.lane.b32.xlu0 %v1552, 122
        %v1554 = vpop.permute.xlu0 %1553
        %v1556 = vadd.f32 %v1543, %v1554
        %s1557 = sld [smem:[#allocation6]]
        %v1558 = vstv %s1557
        %v1559 = vadd.f32 %v1556, %v1558
        %v1560 = vxor.u32 %v1559, 2147483648
        %v1561 = vmul.f32 %v1560, 1.442695
        %v1562 = vpow.pop %v1561
        %v1563 = vadd.f32 %v1562, 1.0
        %v1564 = vrcp.pop %v1563
        %v1565 = vmul.f32 1.0, %v1564
        %v1566 = vld [vmem:[#allocation4] sm:$0xff]
        %v1567 = vld [vmem:[#allocation4 + $0x8] sm:$0x3]
        %v1568 = vld [vmem:[#allocation5] sm:$0xff]
        %v1569 = vld [vmem:[#allocation5 + $0x8] sm:$0x3]
        %s1570 = sld [smem:[#allocation11]]
        %v1571 = vstv %s1570
        %v1572 = vmul.f32 %v1571, %v1566
        %v1573 = vadd.f32 %v1572, 0.0
        %s1574 = sld [smem:[#allocation11 + $0x31]]
        %v1575 = vstv %s1574
        %v1576 = vmul.f32 %v1575, %v1568
        %v1577 = vadd.f32 %v1573, %v1576
        %s1578 = sld [smem:[#allocation11 + $0x1]]
        %v1579 = vstv %s1578
        %v1580 = vmul.f32 %v1579, %v1566
        %v1582 = vrot.slane %v1580, 1
        %v1584 = vadd.f32 %v1577, %v1582
        %s1585 = sld [smem:[#allocation11 + $0x32]]
        %v1586 = vstv %s1585
        %v1587 = vmul.f32 %v1586, %v1568
        %v1589 = vrot.slane %v1587, 1
        %v1591 = vadd.f32 %v1584, %v1589
        %s1592 = sld [smem:[#allocation11 + $0x2]]
        %v1593 = vstv %s1592
        %v1594 = vmul.f32 %v1593, %v1566
        %v1596 = vrot.slane %v1594, 2
        %v1598 = vadd.f32 %v1591, %v1596
        %s1599 = sld [smem:[#allocation11 + $0x33]]
        %v1600 = vstv %s1599
        %v1601 = vmul.f32 %v1600, %v1568
        %v1603 = vrot.slane %v1601, 2
        %v1605 = vadd.f32 %v1598, %v1603
        %s1606 = sld [smem:[#allocation11 + $0x3]]
        %v1607 = vstv %s1606
        %v1608 = vmul.f32 %v1607, %v1566
        %v1610 = vrot.slane %v1608, 3
        %v1612 = vadd.f32 %v1605, %v1610
        %s1613 = sld [smem:[#allocation11 + $0x34]]
        %v1614 = vstv %s1613
        %v1615 = vmul.f32 %v1614, %v1568
        %v1617 = vrot.slane %v1615, 3
        %v1619 = vadd.f32 %v1612, %v1617
        %s1620 = sld [smem:[#allocation11 + $0x4]]
        %v1621 = vstv %s1620
        %v1622 = vmul.f32 %v1621, %v1566
        %v1624 = vrot.slane %v1622, 4
        %v1626 = vadd.f32 %v1619, %v1624
        %s1627 = sld [smem:[#allocation11 + $0x35]]
        %v1628 = vstv %s1627
        %v1629 = vmul.f32 %v1628, %v1568
        %v1631 = vrot.slane %v1629, 4
        %v1633 = vadd.f32 %v1626, %v1631
        %s1634 = sld [smem:[#allocation11 + $0x5]]
        %v1635 = vstv %s1634
        %v1636 = vmul.f32 %v1635, %v1566
        %v1637 = vmul.f32 %v1635, %v1567
        %v1640 = vrot.slane %v1636, 5
        %v1641 = vrot.slane %v1637, 5
        %v1642 = vsel %vm677, %v1640, %v1641
        %v1644 = vadd.f32 %v1633, %v1642
        %s1645 = sld [smem:[#allocation11 + $0x36]]
        %v1646 = vstv %s1645
        %v1647 = vmul.f32 %v1646, %v1568
        %v1648 = vmul.f32 %v1646, %v1569
        %v1651 = vrot.slane %v1647, 5
        %v1652 = vrot.slane %v1648, 5
        %v1653 = vsel %vm677, %v1651, %v1652
        %v1655 = vadd.f32 %v1644, %v1653
        %s1656 = sld [smem:[#allocation11 + $0x6]]
        %v1657 = vstv %s1656
        %v1658 = vmul.f32 %v1657, %v1566
        %v1659 = vmul.f32 %v1657, %v1567
        %v1662 = vrot.slane %v1658, 6
        %v1663 = vrot.slane %v1659, 6
        %v1664 = vsel %vm700, %v1662, %v1663
        %v1666 = vadd.f32 %v1655, %v1664
        %s1667 = sld [smem:[#allocation11 + $0x37]]
        %v1668 = vstv %s1667
        %v1669 = vmul.f32 %v1668, %v1568
        %v1670 = vmul.f32 %v1668, %v1569
        %v1673 = vrot.slane %v1669, 6
        %v1674 = vrot.slane %v1670, 6
        %v1675 = vsel %vm700, %v1673, %v1674
        %v1677 = vadd.f32 %v1666, %v1675
        %s1678 = sld [smem:[#allocation11 + $0x7]]
        %v1679 = vstv %s1678
        %v1680 = vmul.f32 %v1679, %v1566
        %1682 = vrot.lane.b32.xlu0 %v1680, 127
        %v1683 = vpop.permute.xlu0 %1682
        %v1685 = vadd.f32 %v1677, %v1683
        %s1686 = sld [smem:[#allocation11 + $0x38]]
        %v1687 = vstv %s1686
        %v1688 = vmul.f32 %v1687, %v1568
        %1690 = vrot.lane.b32.xlu0 %v1688, 127
        %v1691 = vpop.permute.xlu0 %1690
        %v1693 = vadd.f32 %v1685, %v1691
        %s1694 = sld [smem:[#allocation11 + $0x8]]
        %v1695 = vstv %s1694
        %v1696 = vmul.f32 %v1695, %v1566
        %v1698 = vrot.slane %v1696, 1
        %1699 = vrot.lane.b32.xlu0 %v1698, 127
        %v1700 = vpop.permute.xlu0 %1699
        %v1702 = vadd.f32 %v1693, %v1700
        %s1703 = sld [smem:[#allocation11 + $0x39]]
        %v1704 = vstv %s1703
        %v1705 = vmul.f32 %v1704, %v1568
        %v1707 = vrot.slane %v1705, 1
        %1708 = vrot.lane.b32.xlu0 %v1707, 127
        %v1709 = vpop.permute.xlu0 %1708
        %v1711 = vadd.f32 %v1702, %v1709
        %s1712 = sld [smem:[#allocation11 + $0x9]]
        %v1713 = vstv %s1712
        %v1714 = vmul.f32 %v1713, %v1566
        %v1716 = vrot.slane %v1714, 2
        %1717 = vrot.lane.b32.xlu0 %v1716, 127
        %v1718 = vpop.permute.xlu0 %1717
        %v1720 = vadd.f32 %v1711, %v1718
        %s1721 = sld [smem:[#allocation11 + $0x3a]]
        %v1722 = vstv %s1721
        %v1723 = vmul.f32 %v1722, %v1568
        %v1725 = vrot.slane %v1723, 2
        %1726 = vrot.lane.b32.xlu0 %v1725, 127
        %v1727 = vpop.permute.xlu0 %1726
        %v1729 = vadd.f32 %v1720, %v1727
        %s1730 = sld [smem:[#allocation11 + $0xa]]
        %v1731 = vstv %s1730
        %v1732 = vmul.f32 %v1731, %v1566
        %v1734 = vrot.slane %v1732, 3
        %1735 = vrot.lane.b32.xlu0 %v1734, 127
        %v1736 = vpop.permute.xlu0 %1735
        %v1738 = vadd.f32 %v1729, %v1736
        %s1739 = sld [smem:[#allocation11 + $0x3b]]
        %v1740 = vstv %s1739
        %v1741 = vmul.f32 %v1740, %v1568
        %v1743 = vrot.slane %v1741, 3
        %1744 = vrot.lane.b32.xlu0 %v1743, 127
        %v1745 = vpop.permute.xlu0 %1744
        %v1747 = vadd.f32 %v1738, %v1745
        %s1748 = sld [smem:[#allocation11 + $0xb]]
        %v1749 = vstv %s1748
        %v1750 = vmul.f32 %v1749, %v1566
        %v1752 = vrot.slane %v1750, 4
        %1753 = vrot.lane.b32.xlu0 %v1752, 127
        %v1754 = vpop.permute.xlu0 %1753
        %v1756 = vadd.f32 %v1747, %v1754
        %s1757 = sld [smem:[#allocation11 + $0x3c]]
        %v1758 = vstv %s1757
        %v1759 = vmul.f32 %v1758, %v1568
        %v1761 = vrot.slane %v1759, 4
        %1762 = vrot.lane.b32.xlu0 %v1761, 127
        %v1763 = vpop.permute.xlu0 %1762
        %v1765 = vadd.f32 %v1756, %v1763
        %s1766 = sld [smem:[#allocation11 + $0xc]]
        %v1767 = vstv %s1766
        %v1768 = vmul.f32 %v1767, %v1566
        %v1769 = vmul.f32 %v1767, %v1567
        %v1772 = vrot.slane %v1768, 5
        %v1773 = vrot.slane %v1769, 5
        %v1774 = vsel %vm677, %v1772, %v1773
        %1775 = vrot.lane.b32.xlu0 %v1774, 127
        %v1776 = vpop.permute.xlu0 %1775
        %v1778 = vadd.f32 %v1765, %v1776
        %s1779 = sld [smem:[#allocation11 + $0x3d]]
        %v1780 = vstv %s1779
        %v1781 = vmul.f32 %v1780, %v1568
        %v1782 = vmul.f32 %v1780, %v1569
        %v1785 = vrot.slane %v1781, 5
        %v1786 = vrot.slane %v1782, 5
        %v1787 = vsel %vm677, %v1785, %v1786
        %1788 = vrot.lane.b32.xlu0 %v1787, 127
        %v1789 = vpop.permute.xlu0 %1788
        %v1791 = vadd.f32 %v1778, %v1789
        %s1792 = sld [smem:[#allocation11 + $0xd]]
        %v1793 = vstv %s1792
        %v1794 = vmul.f32 %v1793, %v1566
        %v1795 = vmul.f32 %v1793, %v1567
        %v1798 = vrot.slane %v1794, 6
        %v1799 = vrot.slane %v1795, 6
        %v1800 = vsel %vm700, %v1798, %v1799
        %1801 = vrot.lane.b32.xlu0 %v1800, 127
        %v1802 = vpop.permute.xlu0 %1801
        %v1804 = vadd.f32 %v1791, %v1802
        %s1805 = sld [smem:[#allocation11 + $0x3e]]
        %v1806 = vstv %s1805
        %v1807 = vmul.f32 %v1806, %v1568
        %v1808 = vmul.f32 %v1806, %v1569
        %v1811 = vrot.slane %v1807, 6
        %v1812 = vrot.slane %v1808, 6
        %v1813 = vsel %vm700, %v1811, %v1812
        %1814 = vrot.lane.b32.xlu0 %v1813, 127
        %v1815 = vpop.permute.xlu0 %1814
        %v1817 = vadd.f32 %v1804, %v1815
        %s1818 = sld [smem:[#allocation11 + $0xe]]
        %v1819 = vstv %s1818
        %v1820 = vmul.f32 %v1819, %v1566
        %1822 = vrot.lane.b32.xlu0 %v1820, 126
        %v1823 = vpop.permute.xlu0 %1822
        %v1825 = vadd.f32 %v1817, %v1823
        %s1826 = sld [smem:[#allocation11 + $0x3f]]
        %v1827 = vstv %s1826
        %v1828 = vmul.f32 %v1827, %v1568
        %1830 = vrot.lane.b32.xlu0 %v1828, 126
        %v1831 = vpop.permute.xlu0 %1830
        %v1833 = vadd.f32 %v1825, %v1831
        %s1834 = sld [smem:[#allocation11 + $0xf]]
        %v1835 = vstv %s1834
        %v1836 = vmul.f32 %v1835, %v1566
        %v1838 = vrot.slane %v1836, 1
        %1839 = vrot.lane.b32.xlu0 %v1838, 126
        %v1840 = vpop.permute.xlu0 %1839
        %v1842 = vadd.f32 %v1833, %v1840
        %s1843 = sld [smem:[#allocation11 + $0x40]]
        %v1844 = vstv %s1843
        %v1845 = vmul.f32 %v1844, %v1568
        %v1847 = vrot.slane %v1845, 1
        %1848 = vrot.lane.b32.xlu0 %v1847, 126
        %v1849 = vpop.permute.xlu0 %1848
        %v1851 = vadd.f32 %v1842, %v1849
        %s1852 = sld [smem:[#allocation11 + $0x10]]
        %v1853 = vstv %s1852
        %v1854 = vmul.f32 %v1853, %v1566
        %v1856 = vrot.slane %v1854, 2
        %1857 = vrot.lane.b32.xlu0 %v1856, 126
        %v1858 = vpop.permute.xlu0 %1857
        %v1860 = vadd.f32 %v1851, %v1858
        %s1861 = sld [smem:[#allocation11 + $0x41]]
        %v1862 = vstv %s1861
        %v1863 = vmul.f32 %v1862, %v1568
        %v1865 = vrot.slane %v1863, 2
        %1866 = vrot.lane.b32.xlu0 %v1865, 126
        %v1867 = vpop.permute.xlu0 %1866
        %v1869 = vadd.f32 %v1860, %v1867
        %s1870 = sld [smem:[#allocation11 + $0x11]]
        %v1871 = vstv %s1870
        %v1872 = vmul.f32 %v1871, %v1566
        %v1874 = vrot.slane %v1872, 3
        %1875 = vrot.lane.b32.xlu0 %v1874, 126
        %v1876 = vpop.permute.xlu0 %1875
        %v1878 = vadd.f32 %v1869, %v1876
        %s1879 = sld [smem:[#allocation11 + $0x42]]
        %v1880 = vstv %s1879
        %v1881 = vmul.f32 %v1880, %v1568
        %v1883 = vrot.slane %v1881, 3
        %1884 = vrot.lane.b32.xlu0 %v1883, 126
        %v1885 = vpop.permute.xlu0 %1884
        %v1887 = vadd.f32 %v1878, %v1885
        %s1888 = sld [smem:[#allocation11 + $0x12]]
        %v1889 = vstv %s1888
        %v1890 = vmul.f32 %v1889, %v1566
        %v1892 = vrot.slane %v1890, 4
        %1893 = vrot.lane.b32.xlu0 %v1892, 126
        %v1894 = vpop.permute.xlu0 %1893
        %v1896 = vadd.f32 %v1887, %v1894
        %s1897 = sld [smem:[#allocation11 + $0x43]]
        %v1898 = vstv %s1897
        %v1899 = vmul.f32 %v1898, %v1568
        %v1901 = vrot.slane %v1899, 4
        %1902 = vrot.lane.b32.xlu0 %v1901, 126
        %v1903 = vpop.permute.xlu0 %1902
        %v1905 = vadd.f32 %v1896, %v1903
        %s1906 = sld [smem:[#allocation11 + $0x13]]
        %v1907 = vstv %s1906
        %v1908 = vmul.f32 %v1907, %v1566
        %v1909 = vmul.f32 %v1907, %v1567
        %v1912 = vrot.slane %v1908, 5
        %v1913 = vrot.slane %v1909, 5
        %v1914 = vsel %vm677, %v1912, %v1913
        %1915 = vrot.lane.b32.xlu0 %v1914, 126
        %v1916 = vpop.permute.xlu0 %1915
        %v1918 = vadd.f32 %v1905, %v1916
        %s1919 = sld [smem:[#allocation11 + $0x44]]
        %v1920 = vstv %s1919
        %v1921 = vmul.f32 %v1920, %v1568
        %v1922 = vmul.f32 %v1920, %v1569
        %v1925 = vrot.slane %v1921, 5
        %v1926 = vrot.slane %v1922, 5
        %v1927 = vsel %vm677, %v1925, %v1926
        %1928 = vrot.lane.b32.xlu0 %v1927, 126
        %v1929 = vpop.permute.xlu0 %1928
        %v1931 = vadd.f32 %v1918, %v1929
        %s1932 = sld [smem:[#allocation11 + $0x14]]
        %v1933 = vstv %s1932
        %v1934 = vmul.f32 %v1933, %v1566
        %v1935 = vmul.f32 %v1933, %v1567
        %v1938 = vrot.slane %v1934, 6
        %v1939 = vrot.slane %v1935, 6
        %v1940 = vsel %vm700, %v1938, %v1939
        %1941 = vrot.lane.b32.xlu0 %v1940, 126
        %v1942 = vpop.permute.xlu0 %1941
        %v1944 = vadd.f32 %v1931, %v1942
        %s1945 = sld [smem:[#allocation11 + $0x45]]
        %v1946 = vstv %s1945
        %v1947 = vmul.f32 %v1946, %v1568
        %v1948 = vmul.f32 %v1946, %v1569
        %v1951 = vrot.slane %v1947, 6
        %v1952 = vrot.slane %v1948, 6
        %v1953 = vsel %vm700, %v1951, %v1952
        %1954 = vrot.lane.b32.xlu0 %v1953, 126
        %v1955 = vpop.permute.xlu0 %1954
        %v1957 = vadd.f32 %v1944, %v1955
        %s1958 = sld [smem:[#allocation11 + $0x15]]
        %v1959 = vstv %s1958
        %v1960 = vmul.f32 %v1959, %v1566
        %1962 = vrot.lane.b32.xlu0 %v1960, 125
        %v1963 = vpop.permute.xlu0 %1962
        %v1965 = vadd.f32 %v1957, %v1963
        %s1966 = sld [smem:[#allocation11 + $0x46]]
        %v1967 = vstv %s1966
        %v1968 = vmul.f32 %v1967, %v1568
        %1970 = vrot.lane.b32.xlu0 %v1968, 125
        %v1971 = vpop.permute.xlu0 %1970
        %v1973 = vadd.f32 %v1965, %v1971
        %s1974 = sld [smem:[#allocation11 + $0x16]]
        %v1975 = vstv %s1974
        %v1976 = vmul.f32 %v1975, %v1566
        %v1978 = vrot.slane %v1976, 1
        %1979 = vrot.lane.b32.xlu0 %v1978, 125
        %v1980 = vpop.permute.xlu0 %1979
        %v1982 = vadd.f32 %v1973, %v1980
        %s1983 = sld [smem:[#allocation11 + $0x47]]
        %v1984 = vstv %s1983
        %v1985 = vmul.f32 %v1984, %v1568
        %v1987 = vrot.slane %v1985, 1
        %1988 = vrot.lane.b32.xlu0 %v1987, 125
        %v1989 = vpop.permute.xlu0 %1988
        %v1991 = vadd.f32 %v1982, %v1989
        %s1992 = sld [smem:[#allocation11 + $0x17]]
        %v1993 = vstv %s1992
        %v1994 = vmul.f32 %v1993, %v1566
        %v1996 = vrot.slane %v1994, 2
        %1997 = vrot.lane.b32.xlu0 %v1996, 125
        %v1998 = vpop.permute.xlu0 %1997
        %v2000 = vadd.f32 %v1991, %v1998
        %s2001 = sld [smem:[#allocation11 + $0x48]]
        %v2002 = vstv %s2001
        %v2003 = vmul.f32 %v2002, %v1568
        %v2005 = vrot.slane %v2003, 2
        %2006 = vrot.lane.b32.xlu0 %v2005, 125
        %v2007 = vpop.permute.xlu0 %2006
        %v2009 = vadd.f32 %v2000, %v2007
        %s2010 = sld [smem:[#allocation11 + $0x18]]
        %v2011 = vstv %s2010
        %v2012 = vmul.f32 %v2011, %v1566
        %v2014 = vrot.slane %v2012, 3
        %2015 = vrot.lane.b32.xlu0 %v2014, 125
        %v2016 = vpop.permute.xlu0 %2015
        %v2018 = vadd.f32 %v2009, %v2016
        %s2019 = sld [smem:[#allocation11 + $0x49]]
        %v2020 = vstv %s2019
        %v2021 = vmul.f32 %v2020, %v1568
        %v2023 = vrot.slane %v2021, 3
        %2024 = vrot.lane.b32.xlu0 %v2023, 125
        %v2025 = vpop.permute.xlu0 %2024
        %v2027 = vadd.f32 %v2018, %v2025
        %s2028 = sld [smem:[#allocation11 + $0x19]]
        %v2029 = vstv %s2028
        %v2030 = vmul.f32 %v2029, %v1566
        %v2032 = vrot.slane %v2030, 4
        %2033 = vrot.lane.b32.xlu0 %v2032, 125
        %v2034 = vpop.permute.xlu0 %2033
        %v2036 = vadd.f32 %v2027, %v2034
        %s2037 = sld [smem:[#allocation11 + $0x4a]]
        %v2038 = vstv %s2037
        %v2039 = vmul.f32 %v2038, %v1568
        %v2041 = vrot.slane %v2039, 4
        %2042 = vrot.lane.b32.xlu0 %v2041, 125
        %v2043 = vpop.permute.xlu0 %2042
        %v2045 = vadd.f32 %v2036, %v2043
        %s2046 = sld [smem:[#allocation11 + $0x1a]]
        %v2047 = vstv %s2046
        %v2048 = vmul.f32 %v2047, %v1566
        %v2049 = vmul.f32 %v2047, %v1567
        %v2052 = vrot.slane %v2048, 5
        %v2053 = vrot.slane %v2049, 5
        %v2054 = vsel %vm677, %v2052, %v2053
        %2055 = vrot.lane.b32.xlu0 %v2054, 125
        %v2056 = vpop.permute.xlu0 %2055
        %v2058 = vadd.f32 %v2045, %v2056
        %s2059 = sld [smem:[#allocation11 + $0x4b]]
        %v2060 = vstv %s2059
        %v2061 = vmul.f32 %v2060, %v1568
        %v2062 = vmul.f32 %v2060, %v1569
        %v2065 = vrot.slane %v2061, 5
        %v2066 = vrot.slane %v2062, 5
        %v2067 = vsel %vm677, %v2065, %v2066
        %2068 = vrot.lane.b32.xlu0 %v2067, 125
        %v2069 = vpop.permute.xlu0 %2068
        %v2071 = vadd.f32 %v2058, %v2069
        %s2072 = sld [smem:[#allocation11 + $0x1b]]
        %v2073 = vstv %s2072
        %v2074 = vmul.f32 %v2073, %v1566
        %v2075 = vmul.f32 %v2073, %v1567
        %v2078 = vrot.slane %v2074, 6
        %v2079 = vrot.slane %v2075, 6
        %v2080 = vsel %vm700, %v2078, %v2079
        %2081 = vrot.lane.b32.xlu0 %v2080, 125
        %v2082 = vpop.permute.xlu0 %2081
        %v2084 = vadd.f32 %v2071, %v2082
        %s2085 = sld [smem:[#allocation11 + $0x4c]]
        %v2086 = vstv %s2085
        %v2087 = vmul.f32 %v2086, %v1568
        %v2088 = vmul.f32 %v2086, %v1569
        %v2091 = vrot.slane %v2087, 6
        %v2092 = vrot.slane %v2088, 6
        %v2093 = vsel %vm700, %v2091, %v2092
        %2094 = vrot.lane.b32.xlu0 %v2093, 125
        %v2095 = vpop.permute.xlu0 %2094
        %v2097 = vadd.f32 %v2084, %v2095
        %s2098 = sld [smem:[#allocation11 + $0x1c]]
        %v2099 = vstv %s2098
        %v2100 = vmul.f32 %v2099, %v1566
        %2102 = vrot.lane.b32.xlu0 %v2100, 124
        %v2103 = vpop.permute.xlu0 %2102
        %v2105 = vadd.f32 %v2097, %v2103
        %s2106 = sld [smem:[#allocation11 + $0x4d]]
        %v2107 = vstv %s2106
        %v2108 = vmul.f32 %v2107, %v1568
        %2110 = vrot.lane.b32.xlu0 %v2108, 124
        %v2111 = vpop.permute.xlu0 %2110
        %v2113 = vadd.f32 %v2105, %v2111
        %s2114 = sld [smem:[#allocation11 + $0x1d]]
        %v2115 = vstv %s2114
        %v2116 = vmul.f32 %v2115, %v1566
        %v2118 = vrot.slane %v2116, 1
        %2119 = vrot.lane.b32.xlu0 %v2118, 124
        %v2120 = vpop.permute.xlu0 %2119
        %v2122 = vadd.f32 %v2113, %v2120
        %s2123 = sld [smem:[#allocation11 + $0x4e]]
        %v2124 = vstv %s2123
        %v2125 = vmul.f32 %v2124, %v1568
        %v2127 = vrot.slane %v2125, 1
        %2128 = vrot.lane.b32.xlu0 %v2127, 124
        %v2129 = vpop.permute.xlu0 %2128
        %v2131 = vadd.f32 %v2122, %v2129
        %s2132 = sld [smem:[#allocation11 + $0x1e]]
        %v2133 = vstv %s2132
        %v2134 = vmul.f32 %v2133, %v1566
        %v2136 = vrot.slane %v2134, 2
        %2137 = vrot.lane.b32.xlu0 %v2136, 124
        %v2138 = vpop.permute.xlu0 %2137
        %v2140 = vadd.f32 %v2131, %v2138
        %s2141 = sld [smem:[#allocation11 + $0x4f]]
        %v2142 = vstv %s2141
        %v2143 = vmul.f32 %v2142, %v1568
        %v2145 = vrot.slane %v2143, 2
        %2146 = vrot.lane.b32.xlu0 %v2145, 124
        %v2147 = vpop.permute.xlu0 %2146
        %v2149 = vadd.f32 %v2140, %v2147
        %s2150 = sld [smem:[#allocation11 + $0x1f]]
        %v2151 = vstv %s2150
        %v2152 = vmul.f32 %v2151, %v1566
        %v2154 = vrot.slane %v2152, 3
        %2155 = vrot.lane.b32.xlu0 %v2154, 124
        %v2156 = vpop.permute.xlu0 %2155
        %v2158 = vadd.f32 %v2149, %v2156
        %s2159 = sld [smem:[#allocation11 + $0x50]]
        %v2160 = vstv %s2159
        %v2161 = vmul.f32 %v2160, %v1568
        %v2163 = vrot.slane %v2161, 3
        %2164 = vrot.lane.b32.xlu0 %v2163, 124
        %v2165 = vpop.permute.xlu0 %2164
        %v2167 = vadd.f32 %v2158, %v2165
        %s2168 = sld [smem:[#allocation11 + $0x20]]
        %v2169 = vstv %s2168
        %v2170 = vmul.f32 %v2169, %v1566
        %v2172 = vrot.slane %v2170, 4
        %2173 = vrot.lane.b32.xlu0 %v2172, 124
        %v2174 = vpop.permute.xlu0 %2173
        %v2176 = vadd.f32 %v2167, %v2174
        %s2177 = sld [smem:[#allocation11 + $0x51]]
        %v2178 = vstv %s2177
        %v2179 = vmul.f32 %v2178, %v1568
        %v2181 = vrot.slane %v2179, 4
        %2182 = vrot.lane.b32.xlu0 %v2181, 124
        %v2183 = vpop.permute.xlu0 %2182
        %v2185 = vadd.f32 %v2176, %v2183
        %s2186 = sld [smem:[#allocation11 + $0x21]]
        %v2187 = vstv %s2186
        %v2188 = vmul.f32 %v2187, %v1566
        %v2189 = vmul.f32 %v2187, %v1567
        %v2192 = vrot.slane %v2188, 5
        %v2193 = vrot.slane %v2189, 5
        %v2194 = vsel %vm677, %v2192, %v2193
        %2195 = vrot.lane.b32.xlu0 %v2194, 124
        %v2196 = vpop.permute.xlu0 %2195
        %v2198 = vadd.f32 %v2185, %v2196
        %s2199 = sld [smem:[#allocation11 + $0x52]]
        %v2200 = vstv %s2199
        %v2201 = vmul.f32 %v2200, %v1568
        %v2202 = vmul.f32 %v2200, %v1569
        %v2205 = vrot.slane %v2201, 5
        %v2206 = vrot.slane %v2202, 5
        %v2207 = vsel %vm677, %v2205, %v2206
        %2208 = vrot.lane.b32.xlu0 %v2207, 124
        %v2209 = vpop.permute.xlu0 %2208
        %v2211 = vadd.f32 %v2198, %v2209
        %s2212 = sld [smem:[#allocation11 + $0x22]]
        %v2213 = vstv %s2212
        %v2214 = vmul.f32 %v2213, %v1566
        %v2215 = vmul.f32 %v2213, %v1567
        %v2218 = vrot.slane %v2214, 6
        %v2219 = vrot.slane %v2215, 6
        %v2220 = vsel %vm700, %v2218, %v2219
        %2221 = vrot.lane.b32.xlu0 %v2220, 124
        %v2222 = vpop.permute.xlu0 %2221
        %v2224 = vadd.f32 %v2211, %v2222
        %s2225 = sld [smem:[#allocation11 + $0x53]]
        %v2226 = vstv %s2225
        %v2227 = vmul.f32 %v2226, %v1568
        %v2228 = vmul.f32 %v2226, %v1569
        %v2231 = vrot.slane %v2227, 6
        %v2232 = vrot.slane %v2228, 6
        %v2233 = vsel %vm700, %v2231, %v2232
        %2234 = vrot.lane.b32.xlu0 %v2233, 124
        %v2235 = vpop.permute.xlu0 %2234
        %v2237 = vadd.f32 %v2224, %v2235
        %s2238 = sld [smem:[#allocation11 + $0x23]]
        %v2239 = vstv %s2238
        %v2240 = vmul.f32 %v2239, %v1566
        %2242 = vrot.lane.b32.xlu0 %v2240, 123
        %v2243 = vpop.permute.xlu0 %2242
        %v2245 = vadd.f32 %v2237, %v2243
        %s2246 = sld [smem:[#allocation11 + $0x54]]
        %v2247 = vstv %s2246
        %v2248 = vmul.f32 %v2247, %v1568
        %2250 = vrot.lane.b32.xlu0 %v2248, 123
        %v2251 = vpop.permute.xlu0 %2250
        %v2253 = vadd.f32 %v2245, %v2251
        %s2254 = sld [smem:[#allocation11 + $0x24]]
        %v2255 = vstv %s2254
        %v2256 = vmul.f32 %v2255, %v1566
        %v2258 = vrot.slane %v2256, 1
        %2259 = vrot.lane.b32.xlu0 %v2258, 123
        %v2260 = vpop.permute.xlu0 %2259
        %v2262 = vadd.f32 %v2253, %v2260
        %s2263 = sld [smem:[#allocation11 + $0x55]]
        %v2264 = vstv %s2263
        %v2265 = vmul.f32 %v2264, %v1568
        %v2267 = vrot.slane %v2265, 1
        %2268 = vrot.lane.b32.xlu0 %v2267, 123
        %v2269 = vpop.permute.xlu0 %2268
        %v2271 = vadd.f32 %v2262, %v2269
        %s2272 = sld [smem:[#allocation11 + $0x25]]
        %v2273 = vstv %s2272
        %v2274 = vmul.f32 %v2273, %v1566
        %v2276 = vrot.slane %v2274, 2
        %2277 = vrot.lane.b32.xlu0 %v2276, 123
        %v2278 = vpop.permute.xlu0 %2277
        %v2280 = vadd.f32 %v2271, %v2278
        %s2281 = sld [smem:[#allocation11 + $0x56]]
        %v2282 = vstv %s2281
        %v2283 = vmul.f32 %v2282, %v1568
        %v2285 = vrot.slane %v2283, 2
        %2286 = vrot.lane.b32.xlu0 %v2285, 123
        %v2287 = vpop.permute.xlu0 %2286
        %v2289 = vadd.f32 %v2280, %v2287
        %s2290 = sld [smem:[#allocation11 + $0x26]]
        %v2291 = vstv %s2290
        %v2292 = vmul.f32 %v2291, %v1566
        %v2294 = vrot.slane %v2292, 3
        %2295 = vrot.lane.b32.xlu0 %v2294, 123
        %v2296 = vpop.permute.xlu0 %2295
        %v2298 = vadd.f32 %v2289, %v2296
        %s2299 = sld [smem:[#allocation11 + $0x57]]
        %v2300 = vstv %s2299
        %v2301 = vmul.f32 %v2300, %v1568
        %v2303 = vrot.slane %v2301, 3
        %2304 = vrot.lane.b32.xlu0 %v2303, 123
        %v2305 = vpop.permute.xlu0 %2304
        %v2307 = vadd.f32 %v2298, %v2305
        %s2308 = sld [smem:[#allocation11 + $0x27]]
        %v2309 = vstv %s2308
        %v2310 = vmul.f32 %v2309, %v1566
        %v2312 = vrot.slane %v2310, 4
        %2313 = vrot.lane.b32.xlu0 %v2312, 123
        %v2314 = vpop.permute.xlu0 %2313
        %v2316 = vadd.f32 %v2307, %v2314
        %s2317 = sld [smem:[#allocation11 + $0x58]]
        %v2318 = vstv %s2317
        %v2319 = vmul.f32 %v2318, %v1568
        %v2321 = vrot.slane %v2319, 4
        %2322 = vrot.lane.b32.xlu0 %v2321, 123
        %v2323 = vpop.permute.xlu0 %2322
        %v2325 = vadd.f32 %v2316, %v2323
        %s2326 = sld [smem:[#allocation11 + $0x28]]
        %v2327 = vstv %s2326
        %v2328 = vmul.f32 %v2327, %v1566
        %v2329 = vmul.f32 %v2327, %v1567
        %v2332 = vrot.slane %v2328, 5
        %v2333 = vrot.slane %v2329, 5
        %v2334 = vsel %vm677, %v2332, %v2333
        %2335 = vrot.lane.b32.xlu0 %v2334, 123
        %v2336 = vpop.permute.xlu0 %2335
        %v2338 = vadd.f32 %v2325, %v2336
        %s2339 = sld [smem:[#allocation11 + $0x59]]
        %v2340 = vstv %s2339
        %v2341 = vmul.f32 %v2340, %v1568
        %v2342 = vmul.f32 %v2340, %v1569
        %v2345 = vrot.slane %v2341, 5
        %v2346 = vrot.slane %v2342, 5
        %v2347 = vsel %vm677, %v2345, %v2346
        %2348 = vrot.lane.b32.xlu0 %v2347, 123
        %v2349 = vpop.permute.xlu0 %2348
        %v2351 = vadd.f32 %v2338, %v2349
        %s2352 = sld [smem:[#allocation11 + $0x29]]
        %v2353 = vstv %s2352
        %v2354 = vmul.f32 %v2353, %v1566
        %v2355 = vmul.f32 %v2353, %v1567
        %v2358 = vrot.slane %v2354, 6
        %v2359 = vrot.slane %v2355, 6
        %v2360 = vsel %vm700, %v2358, %v2359
        %2361 = vrot.lane.b32.xlu0 %v2360, 123
        %v2362 = vpop.permute.xlu0 %2361
        %v2364 = vadd.f32 %v2351, %v2362
        %s2365 = sld [smem:[#allocation11 + $0x5a]]
        %v2366 = vstv %s2365
        %v2367 = vmul.f32 %v2366, %v1568
        %v2368 = vmul.f32 %v2366, %v1569
        %v2371 = vrot.slane %v2367, 6
        %v2372 = vrot.slane %v2368, 6
        %v2373 = vsel %vm700, %v2371, %v2372
        %2374 = vrot.lane.b32.xlu0 %v2373, 123
        %v2375 = vpop.permute.xlu0 %2374
        %v2377 = vadd.f32 %v2364, %v2375
        %s2378 = sld [smem:[#allocation11 + $0x2a]]
        %v2379 = vstv %s2378
        %v2380 = vmul.f32 %v2379, %v1566
        %2382 = vrot.lane.b32.xlu0 %v2380, 122
        %v2383 = vpop.permute.xlu0 %2382
        %v2385 = vadd.f32 %v2377, %v2383
        %s2386 = sld [smem:[#allocation11 + $0x5b]]
        %v2387 = vstv %s2386
        %v2388 = vmul.f32 %v2387, %v1568
        %2390 = vrot.lane.b32.xlu0 %v2388, 122
        %v2391 = vpop.permute.xlu0 %2390
        %v2393 = vadd.f32 %v2385, %v2391
        %s2394 = sld [smem:[#allocation11 + $0x2b]]
        %v2395 = vstv %s2394
        %v2396 = vmul.f32 %v2395, %v1566
        %v2398 = vrot.slane %v2396, 1
        %2399 = vrot.lane.b32.xlu0 %v2398, 122
        %v2400 = vpop.permute.xlu0 %2399
        %v2402 = vadd.f32 %v2393, %v2400
        %s2403 = sld [smem:[#allocation11 + $0x5c]]
        %v2404 = vstv %s2403
        %v2405 = vmul.f32 %v2404, %v1568
        %v2407 = vrot.slane %v2405, 1
        %2408 = vrot.lane.b32.xlu0 %v2407, 122
        %v2409 = vpop.permute.xlu0 %2408
        %v2411 = vadd.f32 %v2402, %v2409
        %s2412 = sld [smem:[#allocation11 + $0x2c]]
        %v2413 = vstv %s2412
        %v2414 = vmul.f32 %v2413, %v1566
        %v2416 = vrot.slane %v2414, 2
        %2417 = vrot.lane.b32.xlu0 %v2416, 122
        %v2418 = vpop.permute.xlu0 %2417
        %v2420 = vadd.f32 %v2411, %v2418
        %s2421 = sld [smem:[#allocation11 + $0x5d]]
        %v2422 = vstv %s2421
        %v2423 = vmul.f32 %v2422, %v1568
        %v2425 = vrot.slane %v2423, 2
        %2426 = vrot.lane.b32.xlu0 %v2425, 122
        %v2427 = vpop.permute.xlu0 %2426
        %v2429 = vadd.f32 %v2420, %v2427
        %s2430 = sld [smem:[#allocation11 + $0x2d]]
        %v2431 = vstv %s2430
        %v2432 = vmul.f32 %v2431, %v1566
        %v2434 = vrot.slane %v2432, 3
        %2435 = vrot.lane.b32.xlu0 %v2434, 122
        %v2436 = vpop.permute.xlu0 %2435
        %v2438 = vadd.f32 %v2429, %v2436
        %s2439 = sld [smem:[#allocation11 + $0x5e]]
        %v2440 = vstv %s2439
        %v2441 = vmul.f32 %v2440, %v1568
        %v2443 = vrot.slane %v2441, 3
        %2444 = vrot.lane.b32.xlu0 %v2443, 122
        %v2445 = vpop.permute.xlu0 %2444
        %v2447 = vadd.f32 %v2438, %v2445
        %s2448 = sld [smem:[#allocation11 + $0x2e]]
        %v2449 = vstv %s2448
        %v2450 = vmul.f32 %v2449, %v1566
        %v2452 = vrot.slane %v2450, 4
        %2453 = vrot.lane.b32.xlu0 %v2452, 122
        %v2454 = vpop.permute.xlu0 %2453
        %v2456 = vadd.f32 %v2447, %v2454
        %s2457 = sld [smem:[#allocation11 + $0x5f]]
        %v2458 = vstv %s2457
        %v2459 = vmul.f32 %v2458, %v1568
        %v2461 = vrot.slane %v2459, 4
        %2462 = vrot.lane.b32.xlu0 %v2461, 122
        %v2463 = vpop.permute.xlu0 %2462
        %v2465 = vadd.f32 %v2456, %v2463
        %s2466 = sld [smem:[#allocation11 + $0x2f]]
        %v2467 = vstv %s2466
        %v2468 = vmul.f32 %v2467, %v1566
        %v2469 = vmul.f32 %v2467, %v1567
        %v2472 = vrot.slane %v2468, 5
        %v2473 = vrot.slane %v2469, 5
        %v2474 = vsel %vm677, %v2472, %v2473
        %2475 = vrot.lane.b32.xlu0 %v2474, 122
        %v2476 = vpop.permute.xlu0 %2475
        %v2478 = vadd.f32 %v2465, %v2476
        %s2479 = sld [smem:[#allocation11 + $0x60]]
        %v2480 = vstv %s2479
        %v2481 = vmul.f32 %v2480, %v1568
        %v2482 = vmul.f32 %v2480, %v1569
        %v2485 = vrot.slane %v2481, 5
        %v2486 = vrot.slane %v2482, 5
        %v2487 = vsel %vm677, %v2485, %v2486
        %2488 = vrot.lane.b32.xlu0 %v2487, 122
        %v2489 = vpop.permute.xlu0 %2488
        %v2491 = vadd.f32 %v2478, %v2489
        %s2492 = sld [smem:[#allocation11 + $0x30]]
        %v2493 = vstv %s2492
        %v2494 = vmul.f32 %v2493, %v1566
        %v2495 = vmul.f32 %v2493, %v1567
        %v2498 = vrot.slane %v2494, 6
        %v2499 = vrot.slane %v2495, 6
        %v2500 = vsel %vm700, %v2498, %v2499
        %2501 = vrot.lane.b32.xlu0 %v2500, 122
        %v2502 = vpop.permute.xlu0 %2501
        %v2504 = vadd.f32 %v2491, %v2502
        %s2505 = sld [smem:[#allocation11 + $0x61]]
        %v2506 = vstv %s2505
        %v2507 = vmul.f32 %v2506, %v1568
        %v2508 = vmul.f32 %v2506, %v1569
        %v2511 = vrot.slane %v2507, 6
        %v2512 = vrot.slane %v2508, 6
        %v2513 = vsel %vm700, %v2511, %v2512
        %2514 = vrot.lane.b32.xlu0 %v2513, 122
        %v2515 = vpop.permute.xlu0 %2514
        %v2517 = vadd.f32 %v2504, %v2515
        %s2518 = sld [smem:[#allocation7]]
        %v2519 = vstv %s2518
        %v2520 = vadd.f32 %v2517, %v2519
        %v2521 = vxor.u32 %v2520, 2147483648
        %v2522 = vmul.f32 %v2521, 1.442695
        %v2523 = vpow.pop %v2522
        %v2524 = vadd.f32 %v2523, 1.0
        %v2525 = vrcp.pop %v2524
        %v2526 = vmul.f32 1.0, %v2525
        %v2527 = vld [vmem:[%s289] sm:$0xff]
        %v2528 = vld [vmem:[%s289 + $0x8] sm:$0xff]
        %v2529 = vld [vmem:[%s289 + $0x10] sm:$0xff]
        %v2530 = vld [vmem:[%s289 + $0x18] sm:$0xff]
        %v2531 = vld [vmem:[%s289 + $0x20] sm:$0xff]
        %v2532 = vld [vmem:[%s289 + $0x28] sm:$0xff]
        %v2533 = vld [vmem:[%s289 + $0x30] sm:$0xff]
        %v2534 = vld [vmem:[%s289 + $0x38] sm:$0xff]
        %v2537 = vunpack.c.l.s4 1966171168
        %v2538 = vunpack.c.0.s8 %v2537
        %v2539 = vlaneseq
        %v2540 = vshrl.u32 %v2539, 7
        %v2541 = vsub.s32 %v2538, %v2540
        %v2542 = vrot.slane %v1565, %v2541
        %v2543 = vcombine.high %v2542, %v2542
        %v2545 = vunpack.c.l.s4 1966171168
        %v2546 = vunpack.c.0.s8 %v2545
        %v2547 = vlaneseq
        %v2548 = vshrl.u32 %v2547, 7
        %v2549 = vsub.s32 %v2546, %v2548
        %v2550 = vrot.slane %v2542, %v2549
        %v2552 = vunpack.c.l.s4 1966171168
        %v2553 = vunpack.c.0.s8 %v2552
        %v2554 = vlaneseq
        %v2555 = vshrl.u32 %v2554, 7
        %v2556 = vsub.s32 %v2553, %v2555
        %v2557 = vrot.slane %v2543, %v2556
        %v2558 = vcombine.high %v2550, %v2550
        %v2559 = vcombine.high %v2557, %v2557
        %v2560 = vlaneseq
        %v2561 = vshrl.u32 %v2560, 7
        %v2562 = vsub.s32 0, %v2561
        %v2563 = vrot.slane %v2550, %v2562
        %v2564 = vlaneseq
        %v2565 = vshrl.u32 %v2564, 7
        %v2566 = vsub.s32 0, %v2565
        %v2567 = vrot.slane %v2557, %v2566
        %v2568 = vlaneseq
        %v2569 = vshrl.u32 %v2568, 7
        %v2570 = vsub.s32 0, %v2569
        %v2571 = vrot.slane %v2558, %v2570
        %v2572 = vlaneseq
        %v2573 = vshrl.u32 %v2572, 7
        %v2574 = vsub.s32 0, %v2573
        %v2575 = vrot.slane %v2559, %v2574
        %v2580 = vmul.f32 %v2527, %v2563
        %v2581 = vmul.f32 %v2528, %v2563
        %v2582 = vmul.f32 %v2529, %v2567
        %v2583 = vmul.f32 %v2530, %v2567
        %v2584 = vmul.f32 %v2531, %v2571
        %v2585 = vmul.f32 %v2532, %v2571
        %v2586 = vmul.f32 %v2533, %v2575
        %v2587 = vmul.f32 %v2534, %v2575
        %2588 = vst.msk [vmem:[%s277] sm:$0xff] %vm298, %v2580
        %2589 = vst.msk [vmem:[%s277 + $0x8] sm:$0xff] %vm298, %v2581
        %2590 = vst.msk [vmem:[%s277 + $0x10] sm:$0xff] %vm298, %v2582
        %2591 = vst.msk [vmem:[%s277 + $0x18] sm:$0xff] %vm298, %v2583
        %2592 = vst.msk [vmem:[%s277 + $0x20] sm:$0xff] %vm298, %v2584
        %2593 = vst.msk [vmem:[%s277 + $0x28] sm:$0xff] %vm298, %v2585
        %2594 = vst.msk [vmem:[%s277 + $0x30] sm:$0xff] %vm298, %v2586
        %2595 = vst.msk [vmem:[%s277 + $0x38] sm:$0xff] %vm298, %v2587
        %v2596 = vld [vmem:[%s289] sm:$0xff]
        %v2597 = vld [vmem:[%s289 + $0x8] sm:$0xff]
        %v2598 = vld [vmem:[%s289 + $0x10] sm:$0xff]
        %v2599 = vld [vmem:[%s289 + $0x18] sm:$0xff]
        %v2600 = vld [vmem:[%s289 + $0x20] sm:$0xff]
        %v2601 = vld [vmem:[%s289 + $0x28] sm:$0xff]
        %v2602 = vld [vmem:[%s289 + $0x30] sm:$0xff]
        %v2603 = vld [vmem:[%s289 + $0x38] sm:$0xff]
        %v2604 = vlaneseq
        %v2605 = vshrl.u32 %v2604, 7
        %v2606 = vsub.s32 0, %v2605
        %v2607 = vrot.slane %v2526, %v2606
        %2609 = vbcast.lane.b32.xlu0 %v2607, 256
        %v2610 = vpop.permute.xlu0 %2609
        %s2612 = sor.u32 256, 8
        %2613 = vbcast.lane.b32.xlu0 %v2607, %s2612
        %v2614 = vpop.permute.xlu0 %2613
        %v2615 = vlaneseq
        %v2616 = vshrl.u32 %v2615, 7
        %v2617 = vsub.s32 1, %v2616
        %v2618 = vrot.slane %v2526, %v2617
        %2620 = vbcast.lane.b32.xlu0 %v2618, 256
        %v2621 = vpop.permute.xlu0 %2620
        %s2623 = sor.u32 256, 8
        %2624 = vbcast.lane.b32.xlu0 %v2618, %s2623
        %v2625 = vpop.permute.xlu0 %2624
        %v2626 = vlaneseq
        %v2627 = vshrl.u32 %v2626, 7
        %v2628 = vsub.s32 2, %v2627
        %v2629 = vrot.slane %v2526, %v2628
        %2631 = vbcast.lane.b32.xlu0 %v2629, 256
        %v2632 = vpop.permute.xlu0 %2631
        %s2634 = sor.u32 256, 8
        %2635 = vbcast.lane.b32.xlu0 %v2629, %s2634
        %v2636 = vpop.permute.xlu0 %2635
        %v2637 = vlaneseq
        %v2638 = vshrl.u32 %v2637, 7
        %v2639 = vsub.s32 3, %v2638
        %v2640 = vrot.slane %v2526, %v2639
        %2642 = vbcast.lane.b32.xlu0 %v2640, 256
        %v2643 = vpop.permute.xlu0 %2642
        %s2645 = sor.u32 256, 8
        %2646 = vbcast.lane.b32.xlu0 %v2640, %s2645
        %v2647 = vpop.permute.xlu0 %2646
        %v2648 = vmul.f32 %v2596, %v2610
        %v2649 = vmul.f32 %v2597, %v2614
        %v2650 = vmul.f32 %v2598, %v2621
        %v2651 = vmul.f32 %v2599, %v2625
        %v2652 = vmul.f32 %v2600, %v2632
        %v2653 = vmul.f32 %v2601, %v2636
        %v2654 = vmul.f32 %v2602, %v2643
        %v2655 = vmul.f32 %v2603, %v2647
        %2656 = vst.msk [vmem:[%s284] sm:$0xff] %vm298, %v2648
        %2657 = vst.msk [vmem:[%s284 + $0x8] sm:$0xff] %vm298, %v2649
        %2658 = vst.msk [vmem:[%s284 + $0x10] sm:$0xff] %vm298, %v2650
        %2659 = vst.msk [vmem:[%s284 + $0x18] sm:$0xff] %vm298, %v2651
        %2660 = vst.msk [vmem:[%s284 + $0x20] sm:$0xff] %vm298, %v2652
        %2661 = vst.msk [vmem:[%s284 + $0x28] sm:$0xff] %vm298, %v2653
        %2662 = vst.msk [vmem:[%s284 + $0x30] sm:$0xff] %vm298, %v2654
        %2663 = vst.msk [vmem:[%s284 + $0x38] sm:$0xff] %vm298, %v2655
        %s2664 = sand.u32 %s146, 1
        %s2665 = scalar_lea.sflag [#allocation9], %s2664
        %s2666 = sand.u32 %s146, 1
        %s2667 = smul.addr %s2666, 64
        %s2668 = scalar_lea.vmem [#allocation13], %s2667
        %s2669 = sand.u32 %s172, 1
        %s2670 = scalar_lea.sflag [#allocation15], %s2669
        %s2671 = sand.u32 %s172, 1
        %s2672 = smul.addr %s2671, 64
        %s2673 = scalar_lea.vmem [#allocation14], %s2672
        // Predicated region
        $region49: #{triplet_attention.1} parent=39 // pred_check
          %p2674 = pneg %p156
        $region50: #{triplet_attention.1} parent=39 // pred_check_branch
          %2676 = sbr.rel (%p2674) target = $region52
        $region51: #{triplet_attention.1} parent=39 // pred_region
          %s2678 = ssub.s32 1024, 1024
          %2679 = vsyncadd %s2665, %s2678
          %s2680 = smul.addr %s28, 8
          %s2681 = smul.addr %s2680, 128
          %s2682 = scalar_lea.hbm %s5, %s2681
          %s2683 = sshll.u32 %s2668, 4
          %s2684 = int_to_ptr.vmem [resolvable:$true] %s2683
          %2689 = dma.vmem_to_hbm [thread:$0]  %s2684, 1024, %s2682, %s2665, 128, 128, 8
        $region52: #{triplet_attention.1} parent=39 // pred_fallthru
          _
        // Predicated region
        $region53: #{triplet_attention.1} parent=39 // pred_check
          %p2690 = pneg %p182
        $region54: #{triplet_attention.1} parent=39 // pred_check_branch
          %2692 = sbr.rel (%p2690) target = $region56
        $region55: #{triplet_attention.1} parent=39 // pred_region
          %s2694 = ssub.s32 1024, 1024
          %2695 = vsyncadd %s2670, %s2694
          %s2696 = smul.addr %s28, 8
          %s2697 = smul.addr %s2696, 128
          %s2698 = scalar_lea.hbm %s6, %s2697
          %s2699 = sshll.u32 %s2673, 4
          %s2700 = int_to_ptr.vmem [resolvable:$true] %s2699
          %2705 = dma.vmem_to_hbm [thread:$0]  %s2700, 1024, %s2698, %s2670, 128, 128, 8
        $region56: #{triplet_attention.1} parent=39 // pred_fallthru
          _
      $region40: #{triplet_attention.1} parent=5 // pred_fallthru
        _
      %p2706 = scmp.le.s32.totalorder 2, %s23
      // Predicated region
      $region57: #{triplet_attention.1} parent=5 // pred_check
        %p2707 = pneg %p2706
      $region58: #{triplet_attention.1} parent=5 // pred_check_branch
        %2709 = sbr.rel (%p2707) target = $region60
      $region59: #{triplet_attention.1} parent=5 // pred_region
        %s2710 = ssub.s32 %s23, 2
        // Predicated region
        $region61: #{triplet_attention.1} parent=59 // pred_check
          %p2711 = pneg %p162
        $region62: #{triplet_attention.1} parent=59 // pred_check_branch
          %2713 = sbr.rel (%p2711) target = $region64
        $region63: #{triplet_attention.1} parent=59 // pred_region
          %s2714 = sand.u32 %s147, 1
          %s2715 = scalar_lea.sflag [#allocation9], %s2714
          %s2716 = sand.u32 %s147, 1
          %s2717 = smul.addr %s2716, 64
          %s2718 = scalar_lea.vmem [#allocation13], %s2717
          %2719 = dma.done %s2715, 1024
        $region64: #{triplet_attention.1} parent=59 // pred_fallthru
          _
        // Predicated region
        $region65: #{triplet_attention.1} parent=59 // pred_check
          %p2720 = pneg %p188
        $region66: #{triplet_attention.1} parent=59 // pred_check_branch
          %2722 = sbr.rel (%p2720) target = $region68
        $region67: #{triplet_attention.1} parent=59 // pred_region
          %s2723 = sand.u32 %s173, 1
          %s2724 = scalar_lea.sflag [#allocation15], %s2723
          %s2725 = sand.u32 %s173, 1
          %s2726 = smul.addr %s2725, 64
          %s2727 = scalar_lea.vmem [#allocation14], %s2726
          %2728 = dma.done %s2724, 1024
        $region68: #{triplet_attention.1} parent=59 // pred_fallthru
          _
      $region60: #{triplet_attention.1} parent=5 // pred_fallthru
        _
    $region6: #{triplet_attention.1} parent=1 // loop_footer
      %s27 = sadd.s32 1, %s23
    $region7: #{triplet_attention.1} parent=1 // loop_footer_branch
      %22 = sbr.rel target = $region3
    $region8: #{triplet_attention.1} parent=1 // loop_exit
      _
    %2729 = vsyncpa [#allocation9], 1
    %s2730 = scalar_lea.sflag [#allocation9], 1
    %2731 = vsyncpa %s2730, 1
    %2732 = vsyncpa [#allocation15], 1
    %s2733 = scalar_lea.sflag [#allocation15], 1
    %2734 = vsyncpa %s2733, 1
    %2735 = vsyncpa [#allocation10], 1
    %s2736 = scalar_lea.sflag [#allocation10], 1
    %2737 = vsyncpa %s2736, 1
    %2738 = vsyncpa [#allocation12], 1

</llo_original>
